<compile_context>
chip_gen: v7x
topology: tpu7x:2x2x1
jax: 0.10.0
libtpu: 0.0.40
codegen_flags: <defaults>
</compile_context>

<pallas_src>
import functools

import jax
import jax.numpy as jnp
from jax.experimental import pallas as pl
from jax.experimental.pallas import tpu as pltpu


def _round_up(x, m):
    return (x + m - 1) // m * m


_VMEM_LIMIT = 48 * 1024 * 1024     # stay well under v7x's 64 MiB / TC
_VMEM_TARGET = 24 * 1024 * 1024    # target working set when picking batch tile


def _pick_tb(n, h, w):
    """Batch-tile size: power of two in [8, 128], ~<=24 MiB per grid step,
    preferring >=2 grid steps so v7x's second TensorCore is used."""
    ho1, wo1 = h // 2, w // 2
    ho2, wo2 = h // 4, w // 4
    ho3, wo3 = h // 8, w // 8
    ho4, wo4 = h // 16, w // 16
    flat_pad = _round_up(64 * ho4 * wo4, 128)
    per_img = 2 * (ho1 + 1) * (wo1 + 1) * 32 * 2          # layer-1 input (double buffered)
    per_img += (ho2 + 1) * (wo2 + 1) * 128 * 2            # s2 scratch (bf16)
    per_img += (ho3 + 1) * (wo3 + 1) * 128 * 2            # s3 scratch
    per_img += (ho4 + 1) * (wo4 + 1) * 256 * 2            # s4 scratch
    per_img += flat_pad * 2 + 2 * 128 * 4                 # fc scratch + output block
    n8 = max(8, _round_up(n, 8))
    cap = min(128, max(8, n8 // 2))                       # keep grid >= 2 when batch allows
    tb = 8
    while tb * 2 <= cap and per_img * tb * 2 <= _VMEM_TARGET:
        tb *= 2
    return tb


def _pick_cb(tb, ho, wo, k):
    """Images per matmul chunk (power of two dividing tb); target M ~256-512."""
    m_target = 512 if k <= 64 else 256
    cb = 8
    while cb * 2 <= tb and ho * wo * cb * 2 <= m_target:
        cb *= 2
    return cb


def _pick_rows(ho, wo, cb, cout):
    """Output-row chunk (even divisor of ho) keeping the f32 accumulator <= ~128 KiB."""
    max_m = max(256, (128 * 1024) // (4 * cout))
    if ho * wo * cb <= max_m or ho % 2 != 0:
        return ho
    best = 2
    for d in range(2, ho + 1, 2):
        if ho % d == 0 and d * wo * cb <= max_m:
            best = d
    return best


# --------------------------- fused network kernel ---------------------------

def _fused_conv_mlp_kernel(
        x1_ref, wc1_ref, bc1_ref, wc2_ref, bc2_ref, wc3_ref, bc3_ref,
        wc4_ref, bc4_ref, wf1_ref, bf1_ref, wf2_ref, bf2_ref,
        o_ref, s2_ref, s3_ref, s4_ref, fc_ref,
        *, tb, dims, flat, flat_pad, n_valid):
    """One batch tile: 4x (conv4x4/2 + ReLU) -> fc1 + ReLU -> fc2 -> log_softmax.

    Activation layout everywhere: (H2, W2, batch, hp*2C + wp*C + c) where the
    stored element is padded_input[n, c, 2*H2 + hp, 2*W2 + wp].
    """
    (ho1, wo1, cp1, co1), (ho2, wo2, cp2, co2), \
        (ho3, wo3, cp3, co3), (ho4, wo4, cp4, co4) = dims

    # ---- zero the (never-written) padding border lanes of each scratch ----
    def zero_pads(s_ref, h2, w2, c):
        zr = jnp.zeros((1, w2 + 1, tb, 2 * c), s_ref.dtype)
        s_ref[0:1, :, :, 0:2 * c] = zr                      # padded top row (hp = 0)
        s_ref[h2:h2 + 1, :, :, 2 * c:4 * c] = zr            # padded bottom row (hp = 1)
        zc = jnp.zeros((h2 + 1, 1, tb, c), s_ref.dtype)
        s_ref[:, 0:1, :, 0:c] = zc                          # padded left col (wp = 0)
        s_ref[:, 0:1, :, 2 * c:3 * c] = zc
        s_ref[:, w2:w2 + 1, :, c:2 * c] = zc                # padded right col (wp = 1)
        s_ref[:, w2:w2 + 1, :, 3 * c:4 * c] = zc

    zero_pads(s2_ref, ho2, wo2, co1)
    zero_pads(s3_ref, ho3, wo3, co2)
    zero_pads(s4_ref, ho4, wo4, co3)
    if flat_pad > flat:
        fc_ref[:, flat:flat_pad] = jnp.zeros((tb, flat_pad - flat), fc_ref.dtype)

    # ---- writers: scatter a conv output chunk into the next layer's input ----
    def scratch_writer(s_ref, wo, cout):
        def write(y, i0, cb, oh0, rh):                      # y: (rh*wo*cb, cout) bf16
            for ph in range(2):
                yh = y.reshape(rh // 2, 2, wo * cb, cout)[:, ph]
                for pw in range(2):
                    blk = yh.reshape(rh // 2, wo // 2, 2, cb, cout)[:, :, pw]
                    f0 = (1 - ph) * 2 * cout + (1 - pw) * cout
                    h0 = oh0 // 2 + ph
                    s_ref[h0:h0 + rh // 2, pw:pw + wo // 2,
                          i0:i0 + cb, f0:f0 + cout] = blk
        return write

    def fc_writer(wo, cout):
        def write(y, i0, cb, oh0, rh):
            yr = y.reshape(rh, wo, cb, cout)
            for hh in range(rh):
                for ww in range(wo):
                    col = ((oh0 + hh) * wo + ww) * cout     # (h, w, c)-major columns
                    fc_ref[i0:i0 + cb, col:col + cout] = yr[hh, ww]
        return write

    # ---- one conv layer: 4 tap-block matmuls (K = 4*Cin) per chunk ----
    def conv(in_ref, w_ref, bias_ref, writer, ho, wo, cp, cout):
        k = 4 * cp
        cb = _pick_cb(tb, ho, wo, k)
        rh = _pick_rows(ho, wo, cb, cout)
        m = rh * wo * cb
        for i0 in range(0, tb, cb):
            for oh0 in range(0, ho, rh):
                acc = jnp.zeros((m, cout), jnp.float32)
                for a in range(2):
                    for b in range(2):
                        patch = in_ref[a + oh0:a + oh0 + rh, b:b + wo,
                                       i0:i0 + cb, :]
                        patch = patch.reshape(m, k)
                        r0 = (a * 2 + b) * k
                        acc = acc + jnp.dot(patch, w_ref[r0:r0 + k, :],
                                            preferred_element_type=jnp.float32)
                y = jnp.maximum(acc + bias_ref[...], 0.0).astype(jnp.bfloat16)
                writer(y, i0, cb, oh0, rh)

    conv(x1_ref, wc1_ref, bc1_ref, scratch_writer(s2_ref, wo1, co1), ho1, wo1, cp1, co1)
    conv(s2_ref, wc2_ref, bc2_ref, scratch_writer(s3_ref, wo2, co2), ho2, wo2, cp2, co2)
    conv(s3_ref, wc3_ref, bc3_ref, scratch_writer(s4_ref, wo3, co3), ho3, wo3, cp3, co3)
    conv(s4_ref, wc4_ref, bc4_ref, fc_writer(wo4, co4), ho4, wo4, cp4, co4)

    # ---- MLP tail: fc1 + ReLU + fc2 + masked log_softmax (all in f32) ----
    xf = fc_ref[...]
    hmid = jnp.dot(xf, wf1_ref[...], preferred_element_type=jnp.float32)
    hmid = jnp.maximum(hmid + bf1_ref[...], 0.0)
    logits = jnp.dot(hmid.astype(jnp.bfloat16), wf2_ref[...],
                     preferred_element_type=jnp.float32) + bf2_ref[...]
    col = jax.lax.broadcasted_iota(jnp.int32, logits.shape, 1)
    logits = jnp.where(col < n_valid, logits, jnp.float32(-1e30))
    mx = jnp.max(logits, axis=-1, keepdims=True)
    sh = logits - mx
    lse = jnp.log(jnp.sum(jnp.exp(sh), axis=-1, keepdims=True))
    o_ref[...] = (sh - lse).astype(o_ref.dtype)


# ------------------------------ parameters ------------------------------

def init_params(key, out_dim, imshape_1, imshape_2, in_chan=3):
    """Parameters in PyTorch layout: conv (Cout, Cin, 4, 4); linear (out, in)."""
    conv_channels = [(in_chan, 32), (32, 32), (32, 64), (64, 64)]
    flat = 64 * imshape_1 * imshape_2 // 256
    keys = jax.random.split(key, 2 * len(conv_channels) + 4)
    ki = 0
    params = {"conv": []}
    for cin, cout in conv_channels:
        w = 0.05 * jax.random.normal(keys[ki], (cout, cin, 4, 4), jnp.float32); ki += 1
        b = 0.05 * jax.random.normal(keys[ki], (cout,), jnp.float32); ki += 1
        params["conv"].append((w, b))
    w1 = 0.05 * jax.random.normal(keys[ki], (128, flat), jnp.float32); ki += 1
    b1 = 0.05 * jax.random.normal(keys[ki], (128,), jnp.float32); ki += 1
    w2 = 0.05 * jax.random.normal(keys[ki], (out_dim, 128), jnp.float32); ki += 1
    b2 = 0.05 * jax.random.normal(keys[ki], (out_dim,), jnp.float32); ki += 1
    params["fc1"] = (w1, b1)
    params["fc2"] = (w2, b2)
    return params


def prepare_params(params, imshape_1, imshape_2):
    """One-time weight relayout / padding / bf16 cast into kernel-friendly form."""
    prep = {"conv": []}
    for (w, b) in params["conv"]:
        cout, cin = w.shape[0], w.shape[1]
        cp = _round_up(cin, 8)
        wpad = jnp.pad(w, ((0, 0), (0, cp - cin), (0, 0), (0, 0)))     # (co, ci, kh, kw)
        # kh = 2a + hp, kw = 2b + wp  ->  (co, ci, a, hp, b, wp)
        wpad = wpad.reshape(cout, cp, 2, 2, 2, 2)
        # rows ordered (a, b, hp, wp, ci); block (a, b) has K = 4*cp rows
        w_mat = jnp.transpose(wpad, (2, 4, 3, 5, 1, 0)).reshape(16 * cp, cout)
        prep["conv"].append((w_mat.astype(jnp.bfloat16),
                             b.reshape(1, cout).astype(jnp.float32)))

    hf, wf = imshape_1 // 16, imshape_2 // 16
    c_last = params["conv"][-1][0].shape[0]
    w1, b1 = params["fc1"]
    hid, flat = w1.shape
    # Fold torch's NCHW flatten into an fc1 column permutation: our kernel
    # flattens (h, w, c), torch flattens (c, h, w).
    w1 = w1.reshape(hid, c_last, hf, wf).transpose(0, 2, 3, 1).reshape(hid, flat)
    k1p = _round_up(flat, 128)
    w1_mat = jnp.pad(jnp.transpose(w1), ((0, k1p - flat), (0, 0)))

    w2, b2 = params["fc2"]
    out_dim = w2.shape[0]
    npad = _round_up(out_dim, 128)
    w2_mat = jnp.pad(jnp.transpose(w2), ((0, 0), (0, npad - out_dim)))

    prep["fc1"] = (w1_mat.astype(jnp.bfloat16),
                   b1.reshape(1, hid).astype(jnp.float32))
    prep["fc2"] = (w2_mat.astype(jnp.bfloat16),
                   jnp.pad(b2, (0, npad - out_dim)).reshape(1, npad).astype(jnp.float32))
    return prep


# ------------------------------ forward pass ------------------------------

def _prep_input(x, cp1, n_pad):
    """NCHW f32 -> (H/2+1, W/2+1, N_pad, 4*Cp) bf16 folded layer-1 input."""
    n, cin, h, w = x.shape
    ho1, wo1 = h // 2, w // 2
    xq = jnp.pad(x, ((0, n_pad - n), (0, cp1 - cin), (1, 1), (1, 1)))
    xq = xq.reshape(n_pad, cp1, ho1 + 1, 2, wo1 + 1, 2)       # (n, c, h2, hp, w2, wp)
    xq = jnp.transpose(xq, (2, 4, 0, 3, 5, 1))                # (h2, w2, n, hp, wp, c)
    return xq.reshape(ho1 + 1, wo1 + 1, n_pad, 4 * cp1).astype(jnp.bfloat16)


def conv_forward(x_nchw, prep, *, out_dim):
    n, _, h, w = x_nchw.shape
    assert h % 16 == 0 and w % 16 == 0, "spatial dims must be multiples of 16"

    conv_p = prep["conv"]
    cp1 = conv_p[0][0].shape[0] // 16
    tb = _pick_tb(n, h, w)
    n_pad = _round_up(n, tb)
    x1 = _prep_input(x_nchw.astype(jnp.float32), cp1, n_pad)

    dims = []
    hh, ww = h, w
    for (wm, _) in conv_p:
        hh, ww = hh // 2, ww // 2
        dims.append((hh, ww, wm.shape[0] // 16, wm.shape[1]))
    dims = tuple(dims)

    flat = 64 * (h // 16) * (w // 16)
    wf1, bf1 = prep["fc1"]
    wf2, bf2 = prep["fc2"]
    flat_pad = wf1.shape[0]
    npad = wf2.shape[1]

    def _full_spec(arr):
        nd = arr.ndim
        return pl.BlockSpec(arr.shape, lambda i, nd=nd: (0,) * nd)

    in_specs = [pl.BlockSpec((h // 2 + 1, w // 2 + 1, tb, 4 * cp1),
                             lambda i: (0, 0, i, 0))]
    operands = [x1]
    for (wm, bm) in conv_p:
        in_specs += [_full_spec(wm), _full_spec(bm)]
        operands += [wm, bm]
    in_specs += [_full_spec(wf1), _full_spec(bf1), _full_spec(wf2), _full_spec(bf2)]
    operands += [wf1, bf1, wf2, bf2]

    kernel = functools.partial(
        _fused_conv_mlp_kernel, tb=tb, dims=dims,
        flat=flat, flat_pad=flat_pad, n_valid=out_dim)

    out = pl.pallas_call(
        kernel,
        grid=(n_pad // tb,),
        in_specs=in_specs,
        out_specs=pl.BlockSpec((tb, npad), lambda i: (i, 0)),
        out_shape=jax.ShapeDtypeStruct((n_pad, npad), jnp.float32),
        scratch_shapes=[
            pltpu.VMEM((h // 4 + 1, w // 4 + 1, tb, 4 * dims[0][3]), jnp.bfloat16),
            pltpu.VMEM((h // 8 + 1, w // 8 + 1, tb, 4 * dims[1][3]), jnp.bfloat16),
            pltpu.VMEM((h // 16 + 1, w // 16 + 1, tb, 4 * dims[2][3]), jnp.bfloat16),
            pltpu.VMEM((tb, flat_pad), jnp.bfloat16),
        ],
        compiler_params=pltpu.CompilerParams(
            dimension_semantics=("parallel",),
            vmem_limit_bytes=_VMEM_LIMIT),
    )(*operands)
    return out[:n, :out_dim]


# --------------------------- pure-JAX reference ---------------------------

def _reference_forward(x, params):
    """XLA reference with the same bf16-operand / f32-accumulate numerics."""
    h = jnp.transpose(x, (0, 2, 3, 1)).astype(jnp.bfloat16)
    for (w, b) in params["conv"]:
        y = jax.lax.conv_general_dilated(
            h, w.astype(jnp.bfloat16), (2, 2), [(1, 1), (1, 1)],
            dimension_numbers=("NHWC", "OIHW", "NHWC"),
            preferred_element_type=jnp.float32)
        h = jnp.maximum(y + b, 0.0).astype(jnp.bfloat16)
    n = h.shape[0]
    hf = jnp.transpose(h, (0, 3, 1, 2)).reshape(n, -1)      # torch NCHW flatten
    w1, b1 = params["fc1"]
    w2, b2 = params["fc2"]
    z = jnp.maximum(jnp.dot(hf, jnp.transpose(w1).astype(jnp.bfloat16),
                            preferred_element_type=jnp.float32) + b1, 0.0)
    logits = jnp.dot(z.astype(jnp.bfloat16),
                     jnp.transpose(w2).astype(jnp.bfloat16),
                     preferred_element_type=jnp.float32) + b2
    return jax.nn.log_softmax(logits, axis=-1)


# ----------------------------------- main -----------------------------------

if __name__ == "__main__":
    out_dim = 10
    imshape_1 = imshape_2 = 16
    in_chan = 3
    batch = 2

    key = jax.random.PRNGKey(0)
    pkey, xkey = jax.random.split(key)
    params = init_params(pkey, out_dim, imshape_1, imshape_2, in_chan)
    prep = prepare_params(params, imshape_1, imshape_2)
    x = jax.random.normal(xkey, (batch, in_chan, imshape_1, imshape_2), jnp.float32)

    fwd = jax.jit(functools.partial(conv_forward, out_dim=out_dim))
    out = jax.block_until_ready(fwd(x, prep))

    assert out.shape == (batch, out_dim)
    # log_softmax rows must normalize.
    assert jnp.allclose(jnp.sum(jnp.exp(out), axis=1), 1.0, atol=1e-3)
    # Match the pure-JAX (torch-semantics) reference.
    ref = jax.block_until_ready(jax.jit(_reference_forward)(x, params))
    assert jnp.allclose(out, ref, atol=5e-3), (out, ref)
    print("KERNEL_OK")
</pallas_src>

<mosaic_0001>
module attributes {stable_mosaic.version = 11 : i64} {
  func.func @_fused_conv_mlp_kernel(%arg0: i32, %arg1: memref<9x9x8x32xbf16, #tpu.memory_space<vmem>>, %arg2: memref<128x32xbf16, #tpu.memory_space<vmem>>, %arg3: memref<1x32xf32, #tpu.memory_space<vmem>>, %arg4: memref<512x32xbf16, #tpu.memory_space<vmem>>, %arg5: memref<1x32xf32, #tpu.memory_space<vmem>>, %arg6: memref<512x64xbf16, #tpu.memory_space<vmem>>, %arg7: memref<1x64xf32, #tpu.memory_space<vmem>>, %arg8: memref<1024x64xbf16, #tpu.memory_space<vmem>>, %arg9: memref<1x64xf32, #tpu.memory_space<vmem>>, %arg10: memref<128x128xbf16, #tpu.memory_space<vmem>>, %arg11: memref<1x128xf32, #tpu.memory_space<vmem>>, %arg12: memref<128x128xbf16, #tpu.memory_space<vmem>>, %arg13: memref<1x128xf32, #tpu.memory_space<vmem>>, %arg14: memref<8x128xf32, #tpu.memory_space<vmem>>, %arg15: memref<5x5x8x128xbf16, #tpu.memory_space<vmem>>, %arg16: memref<3x3x8x128xbf16, #tpu.memory_space<vmem>>, %arg17: memref<2x2x8x256xbf16, #tpu.memory_space<vmem>>, %arg18: memref<8x128xbf16, #tpu.memory_space<vmem>>) attributes {dimension_semantics = [#tpu.dimension_semantics<parallel>], iteration_bounds = array<i64: 1>, scalar_prefetch = 0 : i64, scratch_operands = 4 : i64, tpu.core_type = #tpu.core_type<tc>, window_params = [{transform_indices = @transform_0, window_bounds = array<i64: 9, 9, 8, 32>}, {pipeline_mode = #tpu.pipeline_mode<synchronous>, transform_indices = @transform_1, window_bounds = array<i64: 128, 32>}, {pipeline_mode = #tpu.pipeline_mode<synchronous>, transform_indices = @transform_2, window_bounds = array<i64: 1, 32>}, {pipeline_mode = #tpu.pipeline_mode<synchronous>, transform_indices = @transform_3, window_bounds = array<i64: 512, 32>}, {pipeline_mode = #tpu.pipeline_mode<synchronous>, transform_indices = @transform_4, window_bounds = array<i64: 1, 32>}, {pipeline_mode = #tpu.pipeline_mode<synchronous>, transform_indices = @transform_5, window_bounds = array<i64: 512, 64>}, {pipeline_mode = #tpu.pipeline_mode<synchronous>, transform_indices = @transform_6, window_bounds = array<i64: 1, 64>}, {pipeline_mode = #tpu.pipeline_mode<synchronous>, transform_indices = @transform_7, window_bounds = array<i64: 1024, 64>}, {pipeline_mode = #tpu.pipeline_mode<synchronous>, transform_indices = @transform_8, window_bounds = array<i64: 1, 64>}, {pipeline_mode = #tpu.pipeline_mode<synchronous>, transform_indices = @transform_9, window_bounds = array<i64: 128, 128>}, {pipeline_mode = #tpu.pipeline_mode<synchronous>, transform_indices = @transform_10, window_bounds = array<i64: 1, 128>}, {pipeline_mode = #tpu.pipeline_mode<synchronous>, transform_indices = @transform_11, window_bounds = array<i64: 128, 128>}, {pipeline_mode = #tpu.pipeline_mode<synchronous>, transform_indices = @transform_12, window_bounds = array<i64: 1, 128>}, {transform_indices = @transform_13, window_bounds = array<i64: 8, 128>}]} {
    %cst = arith.constant 0.000000e+00 : bf16
    %0 = vector.broadcast %cst : bf16 to vector<1x5x8x64xbf16>
    %c0 = arith.constant 0 : index
    %c0_0 = arith.constant 0 : index
    %c0_1 = arith.constant 0 : index
    %c0_2 = arith.constant 0 : index
    %1 = vector.load %arg15[%c0, %c0_0, %c0_1, %c0_2] : memref<5x5x8x128xbf16, #tpu.memory_space<vmem>>, vector<1x5x8x64xbf16>
    tpu.vector_store %arg15[%c0, %c0_0, %c0_1, %c0_2], %0 {strides = array<i32>} : memref<5x5x8x128xbf16, #tpu.memory_space<vmem>>, vector<1x5x8x64xbf16>,
    %c4 = arith.constant 4 : index
    %c0_3 = arith.constant 0 : index
    %c0_4 = arith.constant 0 : index
    %c64 = arith.constant 64 : index
    %2 = vector.load %arg15[%c4, %c0_3, %c0_4, %c64] : memref<5x5x8x128xbf16, #tpu.memory_space<vmem>>, vector<1x5x8x64xbf16>
    tpu.vector_store %arg15[%c4, %c0_3, %c0_4, %c64], %0 {strides = array<i32>} : memref<5x5x8x128xbf16, #tpu.memory_space<vmem>>, vector<1x5x8x64xbf16>,
    %cst_5 = arith.constant 0.000000e+00 : bf16
    %3 = vector.broadcast %cst_5 : bf16 to vector<5x1x8x32xbf16>
    %c0_6 = arith.constant 0 : index
    %c0_7 = arith.constant 0 : index
    %c0_8 = arith.constant 0 : index
    %c0_9 = arith.constant 0 : index
    %4 = vector.load %arg15[%c0_6, %c0_7, %c0_8, %c0_9] : memref<5x5x8x128xbf16, #tpu.memory_space<vmem>>, vector<5x1x8x32xbf16>
    tpu.vector_store %arg15[%c0_6, %c0_7, %c0_8, %c0_9], %3 {strides = array<i32>} : memref<5x5x8x128xbf16, #tpu.memory_space<vmem>>, vector<5x1x8x32xbf16>,
    %c0_10 = arith.constant 0 : index
    %c0_11 = arith.constant 0 : index
    %c0_12 = arith.constant 0 : index
    %c64_13 = arith.constant 64 : index
    %5 = vector.load %arg15[%c0_10, %c0_11, %c0_12, %c64_13] : memref<5x5x8x128xbf16, #tpu.memory_space<vmem>>, vector<5x1x8x32xbf16>
    tpu.vector_store %arg15[%c0_10, %c0_11, %c0_12, %c64_13], %3 {strides = array<i32>} : memref<5x5x8x128xbf16, #tpu.memory_space<vmem>>, vector<5x1x8x32xbf16>,
    %c0_14 = arith.constant 0 : index
    %c4_15 = arith.constant 4 : index
    %c0_16 = arith.constant 0 : index
    %c32 = arith.constant 32 : index
    %6 = vector.load %arg15[%c0_14, %c4_15, %c0_16, %c32] : memref<5x5x8x128xbf16, #tpu.memory_space<vmem>>, vector<5x1x8x32xbf16>
    tpu.vector_store %arg15[%c0_14, %c4_15, %c0_16, %c32], %3 {strides = array<i32>} : memref<5x5x8x128xbf16, #tpu.memory_space<vmem>>, vector<5x1x8x32xbf16>,
    %c0_17 = arith.constant 0 : index
    %c4_18 = arith.constant 4 : index
    %c0_19 = arith.constant 0 : index
    %c96 = arith.constant 96 : index
    %7 = vector.load %arg15[%c0_17, %c4_18, %c0_19, %c96] : memref<5x5x8x128xbf16, #tpu.memory_space<vmem>>, vector<5x1x8x32xbf16>
    tpu.vector_store %arg15[%c0_17, %c4_18, %c0_19, %c96], %3 {strides = array<i32>} : memref<5x5x8x128xbf16, #tpu.memory_space<vmem>>, vector<5x1x8x32xbf16>,
    %cst_20 = arith.constant 0.000000e+00 : bf16
    %8 = vector.broadcast %cst_20 : bf16 to vector<1x3x8x64xbf16>
    %c0_21 = arith.constant 0 : index
    %c0_22 = arith.constant 0 : index
    %c0_23 = arith.constant 0 : index
    %c0_24 = arith.constant 0 : index
    %9 = vector.load %arg16[%c0_21, %c0_22, %c0_23, %c0_24] : memref<3x3x8x128xbf16, #tpu.memory_space<vmem>>, vector<1x3x8x64xbf16>
    tpu.vector_store %arg16[%c0_21, %c0_22, %c0_23, %c0_24], %8 {strides = array<i32>} : memref<3x3x8x128xbf16, #tpu.memory_space<vmem>>, vector<1x3x8x64xbf16>,
    %c2 = arith.constant 2 : index
    %c0_25 = arith.constant 0 : index
    %c0_26 = arith.constant 0 : index
    %c64_27 = arith.constant 64 : index
    %10 = vector.load %arg16[%c2, %c0_25, %c0_26, %c64_27] : memref<3x3x8x128xbf16, #tpu.memory_space<vmem>>, vector<1x3x8x64xbf16>
    tpu.vector_store %arg16[%c2, %c0_25, %c0_26, %c64_27], %8 {strides = array<i32>} : memref<3x3x8x128xbf16, #tpu.memory_space<vmem>>, vector<1x3x8x64xbf16>,
    %cst_28 = arith.constant 0.000000e+00 : bf16
    %11 = vector.broadcast %cst_28 : bf16 to vector<3x1x8x32xbf16>
    %c0_29 = arith.constant 0 : index
    %c0_30 = arith.constant 0 : index
    %c0_31 = arith.constant 0 : index
    %c0_32 = arith.constant 0 : index
    %12 = vector.load %arg16[%c0_29, %c0_30, %c0_31, %c0_32] : memref<3x3x8x128xbf16, #tpu.memory_space<vmem>>, vector<3x1x8x32xbf16>
    tpu.vector_store %arg16[%c0_29, %c0_30, %c0_31, %c0_32], %11 {strides = array<i32>} : memref<3x3x8x128xbf16, #tpu.memory_space<vmem>>, vector<3x1x8x32xbf16>,
    %c0_33 = arith.constant 0 : index
    %c0_34 = arith.constant 0 : index
    %c0_35 = arith.constant 0 : index
    %c64_36 = arith.constant 64 : index
    %13 = vector.load %arg16[%c0_33, %c0_34, %c0_35, %c64_36] : memref<3x3x8x128xbf16, #tpu.memory_space<vmem>>, vector<3x1x8x32xbf16>
    tpu.vector_store %arg16[%c0_33, %c0_34, %c0_35, %c64_36], %11 {strides = array<i32>} : memref<3x3x8x128xbf16, #tpu.memory_space<vmem>>, vector<3x1x8x32xbf16>,
    %c0_37 = arith.constant 0 : index
    %c2_38 = arith.constant 2 : index
    %c0_39 = arith.constant 0 : index
    %c32_40 = arith.constant 32 : index
    %14 = vector.load %arg16[%c0_37, %c2_38, %c0_39, %c32_40] : memref<3x3x8x128xbf16, #tpu.memory_space<vmem>>, vector<3x1x8x32xbf16>
    tpu.vector_store %arg16[%c0_37, %c2_38, %c0_39, %c32_40], %11 {strides = array<i32>} : memref<3x3x8x128xbf16, #tpu.memory_space<vmem>>, vector<3x1x8x32xbf16>,
    %c0_41 = arith.constant 0 : index
    %c2_42 = arith.constant 2 : index
    %c0_43 = arith.constant 0 : index
    %c96_44 = arith.constant 96 : index
    %15 = vector.load %arg16[%c0_41, %c2_42, %c0_43, %c96_44] : memref<3x3x8x128xbf16, #tpu.memory_space<vmem>>, vector<3x1x8x32xbf16>
    tpu.vector_store %arg16[%c0_41, %c2_42, %c0_43, %c96_44], %11 {strides = array<i32>} : memref<3x3x8x128xbf16, #tpu.memory_space<vmem>>, vector<3x1x8x32xbf16>,
    %cst_45 = arith.constant 0.000000e+00 : bf16
    %16 = vector.broadcast %cst_45 : bf16 to vector<1x2x8x128xbf16>
    %c0_46 = arith.constant 0 : index
    %c0_47 = arith.constant 0 : index
    %c0_48 = arith.constant 0 : index
    %c0_49 = arith.constant 0 : index
    %17 = vector.load %arg17[%c0_46, %c0_47, %c0_48, %c0_49] : memref<2x2x8x256xbf16, #tpu.memory_space<vmem>>, vector<1x2x8x128xbf16>
    tpu.vector_store %arg17[%c0_46, %c0_47, %c0_48, %c0_49], %16 {strides = array<i32>} : memref<2x2x8x256xbf16, #tpu.memory_space<vmem>>, vector<1x2x8x128xbf16>,
    %c1 = arith.constant 1 : index
    %c0_50 = arith.constant 0 : index
    %c0_51 = arith.constant 0 : index
    %c128 = arith.constant 128 : index
    %18 = vector.load %arg17[%c1, %c0_50, %c0_51, %c128] : memref<2x2x8x256xbf16, #tpu.memory_space<vmem>>, vector<1x2x8x128xbf16>
    tpu.vector_store %arg17[%c1, %c0_50, %c0_51, %c128], %16 {strides = array<i32>} : memref<2x2x8x256xbf16, #tpu.memory_space<vmem>>, vector<1x2x8x128xbf16>,
    %cst_52 = arith.constant 0.000000e+00 : bf16
    %19 = vector.broadcast %cst_52 : bf16 to vector<2x1x8x64xbf16>
    %c0_53 = arith.constant 0 : index
    %c0_54 = arith.constant 0 : index
    %c0_55 = arith.constant 0 : index
    %c0_56 = arith.constant 0 : index
    %20 = vector.load %arg17[%c0_53, %c0_54, %c0_55, %c0_56] : memref<2x2x8x256xbf16, #tpu.memory_space<vmem>>, vector<2x1x8x64xbf16>
    tpu.vector_store %arg17[%c0_53, %c0_54, %c0_55, %c0_56], %19 {strides = array<i32>} : memref<2x2x8x256xbf16, #tpu.memory_space<vmem>>, vector<2x1x8x64xbf16>,
    %c0_57 = arith.constant 0 : index
    %c0_58 = arith.constant 0 : index
    %c0_59 = arith.constant 0 : index
    %c128_60 = arith.constant 128 : index
    %21 = vector.load %arg17[%c0_57, %c0_58, %c0_59, %c128_60] : memref<2x2x8x256xbf16, #tpu.memory_space<vmem>>, vector<2x1x8x64xbf16>
    tpu.vector_store %arg17[%c0_57, %c0_58, %c0_59, %c128_60], %19 {strides = array<i32>} : memref<2x2x8x256xbf16, #tpu.memory_space<vmem>>, vector<2x1x8x64xbf16>,
    %c0_61 = arith.constant 0 : index
    %c1_62 = arith.constant 1 : index
    %c0_63 = arith.constant 0 : index
    %c64_64 = arith.constant 64 : index
    %22 = vector.load %arg17[%c0_61, %c1_62, %c0_63, %c64_64] : memref<2x2x8x256xbf16, #tpu.memory_space<vmem>>, vector<2x1x8x64xbf16>
    tpu.vector_store %arg17[%c0_61, %c1_62, %c0_63, %c64_64], %19 {strides = array<i32>} : memref<2x2x8x256xbf16, #tpu.memory_space<vmem>>, vector<2x1x8x64xbf16>,
    %c0_65 = arith.constant 0 : index
    %c1_66 = arith.constant 1 : index
    %c0_67 = arith.constant 0 : index
    %c192 = arith.constant 192 : index
    %23 = vector.load %arg17[%c0_65, %c1_66, %c0_67, %c192] : memref<2x2x8x256xbf16, #tpu.memory_space<vmem>>, vector<2x1x8x64xbf16>
    tpu.vector_store %arg17[%c0_65, %c1_66, %c0_67, %c192], %19 {strides = array<i32>} : memref<2x2x8x256xbf16, #tpu.memory_space<vmem>>, vector<2x1x8x64xbf16>,
    %cst_68 = arith.constant 0.000000e+00 : bf16
    %24 = vector.broadcast %cst_68 : bf16 to vector<8x64xbf16>
    %c0_69 = arith.constant 0 : index
    %c64_70 = arith.constant 64 : index
    %25 = vector.load %arg18[%c0_69, %c64_70] : memref<8x128xbf16, #tpu.memory_space<vmem>>, vector<8x64xbf16>
    tpu.vector_store %arg18[%c0_69, %c64_70], %24 {strides = array<i32>} : memref<8x128xbf16, #tpu.memory_space<vmem>>, vector<8x64xbf16>,
    %cst_71 = arith.constant 0.000000e+00 : f32
    %26 = vector.broadcast %cst_71 : f32 to vector<512x32xf32>
    %c0_72 = arith.constant 0 : index
    %c0_73 = arith.constant 0 : index
    %c0_74 = arith.constant 0 : index
    %c0_75 = arith.constant 0 : index
    %27 = vector.load %arg1[%c0_72, %c0_73, %c0_74, %c0_75] : memref<9x9x8x32xbf16, #tpu.memory_space<vmem>>, vector<8x8x8x32xbf16>
    %28 = vector.shape_cast %27 : vector<8x8x8x32xbf16> to vector<512x32xbf16>
    %c0_76 = arith.constant 0 : index
    %c0_77 = arith.constant 0 : index
    %29 = vector.load %arg2[%c0_76, %c0_77] : memref<128x32xbf16, #tpu.memory_space<vmem>>, vector<32x32xbf16>
    %cst_78 = arith.constant dense<0.000000e+00> : vector<512x32xf32>
    %30 = tpu.matmul %28, %29, %cst_78 {dimension_numbers = #tpu.dot_dimension_numbers<[1], [0], [0], [1], [0, 0, 1, 1], [], []>} : vector<512x32xbf16>, vector<32x32xbf16>, vector<512x32xf32> -> vector<512x32xf32>
    %31 = arith.addf %26, %30 : vector<512x32xf32>
    %c0_79 = arith.constant 0 : index
    %c1_80 = arith.constant 1 : index
    %c0_81 = arith.constant 0 : index
    %c0_82 = arith.constant 0 : index
    %32 = vector.load %arg1[%c0_79, %c1_80, %c0_81, %c0_82] : memref<9x9x8x32xbf16, #tpu.memory_space<vmem>>, vector<8x8x8x32xbf16>
    %33 = vector.shape_cast %32 : vector<8x8x8x32xbf16> to vector<512x32xbf16>
    %c32_83 = arith.constant 32 : index
    %c0_84 = arith.constant 0 : index
    %34 = vector.load %arg2[%c32_83, %c0_84] : memref<128x32xbf16, #tpu.memory_space<vmem>>, vector<32x32xbf16>
    %cst_85 = arith.constant dense<0.000000e+00> : vector<512x32xf32>
    %35 = tpu.matmul %33, %34, %cst_85 {dimension_numbers = #tpu.dot_dimension_numbers<[1], [0], [0], [1], [0, 0, 1, 1], [], []>} : vector<512x32xbf16>, vector<32x32xbf16>, vector<512x32xf32> -> vector<512x32xf32>
    %36 = arith.addf %31, %35 : vector<512x32xf32>
    %c1_86 = arith.constant 1 : index
    %c0_87 = arith.constant 0 : index
    %c0_88 = arith.constant 0 : index
    %c0_89 = arith.constant 0 : index
    %37 = vector.load %arg1[%c1_86, %c0_87, %c0_88, %c0_89] : memref<9x9x8x32xbf16, #tpu.memory_space<vmem>>, vector<8x8x8x32xbf16>
    %38 = vector.shape_cast %37 : vector<8x8x8x32xbf16> to vector<512x32xbf16>
    %c64_90 = arith.constant 64 : index
    %c0_91 = arith.constant 0 : index
    %39 = vector.load %arg2[%c64_90, %c0_91] : memref<128x32xbf16, #tpu.memory_space<vmem>>, vector<32x32xbf16>
    %cst_92 = arith.constant dense<0.000000e+00> : vector<512x32xf32>
    %40 = tpu.matmul %38, %39, %cst_92 {dimension_numbers = #tpu.dot_dimension_numbers<[1], [0], [0], [1], [0, 0, 1, 1], [], []>} : vector<512x32xbf16>, vector<32x32xbf16>, vector<512x32xf32> -> vector<512x32xf32>
    %41 = arith.addf %36, %40 : vector<512x32xf32>
    %c1_93 = arith.constant 1 : index
    %c1_94 = arith.constant 1 : index
    %c0_95 = arith.constant 0 : index
    %c0_96 = arith.constant 0 : index
    %42 = vector.load %arg1[%c1_93, %c1_94, %c0_95, %c0_96] : memref<9x9x8x32xbf16, #tpu.memory_space<vmem>>, vector<8x8x8x32xbf16>
    %43 = vector.shape_cast %42 : vector<8x8x8x32xbf16> to vector<512x32xbf16>
    %c96_97 = arith.constant 96 : index
    %c0_98 = arith.constant 0 : index
    %44 = vector.load %arg2[%c96_97, %c0_98] : memref<128x32xbf16, #tpu.memory_space<vmem>>, vector<32x32xbf16>
    %cst_99 = arith.constant dense<0.000000e+00> : vector<512x32xf32>
    %45 = tpu.matmul %43, %44, %cst_99 {dimension_numbers = #tpu.dot_dimension_numbers<[1], [0], [0], [1], [0, 0, 1, 1], [], []>} : vector<512x32xbf16>, vector<32x32xbf16>, vector<512x32xf32> -> vector<512x32xf32>
    %46 = arith.addf %41, %45 : vector<512x32xf32>
    %c0_100 = arith.constant 0 : index
    %c0_101 = arith.constant 0 : index
    %47 = vector.load %arg3[%c0_100, %c0_101] : memref<1x32xf32, #tpu.memory_space<vmem>>, vector<1x32xf32>
    %48 = vector.broadcast %47 : vector<1x32xf32> to vector<512x32xf32>
    %49 = arith.addf %46, %48 : vector<512x32xf32>
    %cst_102 = arith.constant 0.000000e+00 : f32
    %50 = vector.broadcast %cst_102 : f32 to vector<512x32xf32>
    %51 = arith.maximumf %49, %50 : vector<512x32xf32>
    %52 = arith.truncf %51 : vector<512x32xf32> to vector<512x32xbf16>
    %53 = vector.shape_cast %52 : vector<512x32xbf16> to vector<4x2x64x32xbf16>
    %54 = vector.extract_strided_slice %53 {offsets = [0, 0, 0, 0], sizes = [4, 1, 64, 32], strides = [1, 1, 1, 1]} : vector<4x2x64x32xbf16> to vector<4x1x64x32xbf16>
    %55 = vector.shape_cast %54 : vector<4x1x64x32xbf16> to vector<4x64x32xbf16>
    %56 = vector.shape_cast %55 : vector<4x64x32xbf16> to vector<4x4x2x8x32xbf16>
    %57 = vector.extract_strided_slice %56 {offsets = [0, 0, 0, 0, 0], sizes = [4, 4, 1, 8, 32], strides = [1, 1, 1, 1, 1]} : vector<4x4x2x8x32xbf16> to vector<4x4x1x8x32xbf16>
    %58 = vector.shape_cast %57 : vector<4x4x1x8x32xbf16> to vector<4x4x8x32xbf16>
    %c0_103 = arith.constant 0 : index
    %c0_104 = arith.constant 0 : index
    %c0_105 = arith.constant 0 : index
    %c96_106 = arith.constant 96 : index
    %59 = vector.load %arg15[%c0_103, %c0_104, %c0_105, %c96_106] : memref<5x5x8x128xbf16, #tpu.memory_space<vmem>>, vector<4x4x8x32xbf16>
    tpu.vector_store %arg15[%c0_103, %c0_104, %c0_105, %c96_106], %58 {strides = array<i32>} : memref<5x5x8x128xbf16, #tpu.memory_space<vmem>>, vector<4x4x8x32xbf16>,
    %60 = vector.shape_cast %55 : vector<4x64x32xbf16> to vector<4x4x2x8x32xbf16>
    %61 = vector.extract_strided_slice %60 {offsets = [0, 0, 1, 0, 0], sizes = [4, 4, 1, 8, 32], strides = [1, 1, 1, 1, 1]} : vector<4x4x2x8x32xbf16> to vector<4x4x1x8x32xbf16>
    %62 = vector.shape_cast %61 : vector<4x4x1x8x32xbf16> to vector<4x4x8x32xbf16>
    %c0_107 = arith.constant 0 : index
    %c1_108 = arith.constant 1 : index
    %c0_109 = arith.constant 0 : index
    %c64_110 = arith.constant 64 : index
    %63 = vector.load %arg15[%c0_107, %c1_108, %c0_109, %c64_110] : memref<5x5x8x128xbf16, #tpu.memory_space<vmem>>, vector<4x4x8x32xbf16>
    tpu.vector_store %arg15[%c0_107, %c1_108, %c0_109, %c64_110], %62 {strides = array<i32>} : memref<5x5x8x128xbf16, #tpu.memory_space<vmem>>, vector<4x4x8x32xbf16>,
    %64 = vector.shape_cast %52 : vector<512x32xbf16> to vector<4x2x64x32xbf16>
    %65 = vector.extract_strided_slice %64 {offsets = [0, 1, 0, 0], sizes = [4, 1, 64, 32], strides = [1, 1, 1, 1]} : vector<4x2x64x32xbf16> to vector<4x1x64x32xbf16>
    %66 = vector.shape_cast %65 : vector<4x1x64x32xbf16> to vector<4x64x32xbf16>
    %67 = vector.shape_cast %66 : vector<4x64x32xbf16> to vector<4x4x2x8x32xbf16>
    %68 = vector.extract_strided_slice %67 {offsets = [0, 0, 0, 0, 0], sizes = [4, 4, 1, 8, 32], strides = [1, 1, 1, 1, 1]} : vector<4x4x2x8x32xbf16> to vector<4x4x1x8x32xbf16>
    %69 = vector.shape_cast %68 : vector<4x4x1x8x32xbf16> to vector<4x4x8x32xbf16>
    %c1_111 = arith.constant 1 : index
    %c0_112 = arith.constant 0 : index
    %c0_113 = arith.constant 0 : index
    %c32_114 = arith.constant 32 : index
    %70 = vector.load %arg15[%c1_111, %c0_112, %c0_113, %c32_114] : memref<5x5x8x128xbf16, #tpu.memory_space<vmem>>, vector<4x4x8x32xbf16>
    tpu.vector_store %arg15[%c1_111, %c0_112, %c0_113, %c32_114], %69 {strides = array<i32>} : memref<5x5x8x128xbf16, #tpu.memory_space<vmem>>, vector<4x4x8x32xbf16>,
    %71 = vector.shape_cast %66 : vector<4x64x32xbf16> to vector<4x4x2x8x32xbf16>
    %72 = vector.extract_strided_slice %71 {offsets = [0, 0, 1, 0, 0], sizes = [4, 4, 1, 8, 32], strides = [1, 1, 1, 1, 1]} : vector<4x4x2x8x32xbf16> to vector<4x4x1x8x32xbf16>
    %73 = vector.shape_cast %72 : vector<4x4x1x8x32xbf16> to vector<4x4x8x32xbf16>
    %c1_115 = arith.constant 1 : index
    %c1_116 = arith.constant 1 : index
    %c0_117 = arith.constant 0 : index
    %c0_118 = arith.constant 0 : index
    %74 = vector.load %arg15[%c1_115, %c1_116, %c0_117, %c0_118] : memref<5x5x8x128xbf16, #tpu.memory_space<vmem>>, vector<4x4x8x32xbf16>
    tpu.vector_store %arg15[%c1_115, %c1_116, %c0_117, %c0_118], %73 {strides = array<i32>} : memref<5x5x8x128xbf16, #tpu.memory_space<vmem>>, vector<4x4x8x32xbf16>,
    %cst_119 = arith.constant 0.000000e+00 : f32
    %75 = vector.broadcast %cst_119 : f32 to vector<128x32xf32>
    %c0_120 = arith.constant 0 : index
    %c0_121 = arith.constant 0 : index
    %c0_122 = arith.constant 0 : index
    %c0_123 = arith.constant 0 : index
    %76 = vector.load %arg15[%c0_120, %c0_121, %c0_122, %c0_123] : memref<5x5x8x128xbf16, #tpu.memory_space<vmem>>, vector<4x4x8x128xbf16>
    %77 = vector.shape_cast %76 : vector<4x4x8x128xbf16> to vector<128x128xbf16>
    %c0_124 = arith.constant 0 : index
    %c0_125 = arith.constant 0 : index
    %78 = vector.load %arg4[%c0_124, %c0_125] : memref<512x32xbf16, #tpu.memory_space<vmem>>, vector<128x32xbf16>
    %cst_126 = arith.constant dense<0.000000e+00> : vector<128x32xf32>
    %79 = tpu.matmul %77, %78, %cst_126 {dimension_numbers = #tpu.dot_dimension_numbers<[1], [0], [0], [1], [0, 0, 1, 1], [], []>} : vector<128x128xbf16>, vector<128x32xbf16>, vector<128x32xf32> -> vector<128x32xf32>
    %80 = arith.addf %75, %79 : vector<128x32xf32>
    %c0_127 = arith.constant 0 : index
    %c1_128 = arith.constant 1 : index
    %c0_129 = arith.constant 0 : index
    %c0_130 = arith.constant 0 : index
    %81 = vector.load %arg15[%c0_127, %c1_128, %c0_129, %c0_130] : memref<5x5x8x128xbf16, #tpu.memory_space<vmem>>, vector<4x4x8x128xbf16>
    %82 = vector.shape_cast %81 : vector<4x4x8x128xbf16> to vector<128x128xbf16>
    %c128_131 = arith.constant 128 : index
    %c0_132 = arith.constant 0 : index
    %83 = vector.load %arg4[%c128_131, %c0_132] : memref<512x32xbf16, #tpu.memory_space<vmem>>, vector<128x32xbf16>
    %cst_133 = arith.constant dense<0.000000e+00> : vector<128x32xf32>
    %84 = tpu.matmul %82, %83, %cst_133 {dimension_numbers = #tpu.dot_dimension_numbers<[1], [0], [0], [1], [0, 0, 1, 1], [], []>} : vector<128x128xbf16>, vector<128x32xbf16>, vector<128x32xf32> -> vector<128x32xf32>
    %85 = arith.addf %80, %84 : vector<128x32xf32>
    %c1_134 = arith.constant 1 : index
    %c0_135 = arith.constant 0 : index
    %c0_136 = arith.constant 0 : index
    %c0_137 = arith.constant 0 : index
    %86 = vector.load %arg15[%c1_134, %c0_135, %c0_136, %c0_137] : memref<5x5x8x128xbf16, #tpu.memory_space<vmem>>, vector<4x4x8x128xbf16>
    %87 = vector.shape_cast %86 : vector<4x4x8x128xbf16> to vector<128x128xbf16>
    %c256 = arith.constant 256 : index
    %c0_138 = arith.constant 0 : index
    %88 = vector.load %arg4[%c256, %c0_138] : memref<512x32xbf16, #tpu.memory_space<vmem>>, vector<128x32xbf16>
    %cst_139 = arith.constant dense<0.000000e+00> : vector<128x32xf32>
    %89 = tpu.matmul %87, %88, %cst_139 {dimension_numbers = #tpu.dot_dimension_numbers<[1], [0], [0], [1], [0, 0, 1, 1], [], []>} : vector<128x128xbf16>, vector<128x32xbf16>, vector<128x32xf32> -> vector<128x32xf32>
    %90 = arith.addf %85, %89 : vector<128x32xf32>
    %c1_140 = arith.constant 1 : index
    %c1_141 = arith.constant 1 : index
    %c0_142 = arith.constant 0 : index
    %c0_143 = arith.constant 0 : index
    %91 = vector.load %arg15[%c1_140, %c1_141, %c0_142, %c0_143] : memref<5x5x8x128xbf16, #tpu.memory_space<vmem>>, vector<4x4x8x128xbf16>
    %92 = vector.shape_cast %91 : vector<4x4x8x128xbf16> to vector<128x128xbf16>
    %c384 = arith.constant 384 : index
    %c0_144 = arith.constant 0 : index
    %93 = vector.load %arg4[%c384, %c0_144] : memref<512x32xbf16, #tpu.memory_space<vmem>>, vector<128x32xbf16>
    %cst_145 = arith.constant dense<0.000000e+00> : vector<128x32xf32>
    %94 = tpu.matmul %92, %93, %cst_145 {dimension_numbers = #tpu.dot_dimension_numbers<[1], [0], [0], [1], [0, 0, 1, 1], [], []>} : vector<128x128xbf16>, vector<128x32xbf16>, vector<128x32xf32> -> vector<128x32xf32>
    %95 = arith.addf %90, %94 : vector<128x32xf32>
    %c0_146 = arith.constant 0 : index
    %c0_147 = arith.constant 0 : index
    %96 = vector.load %arg5[%c0_146, %c0_147] : memref<1x32xf32, #tpu.memory_space<vmem>>, vector<1x32xf32>
    %97 = vector.broadcast %96 : vector<1x32xf32> to vector<128x32xf32>
    %98 = arith.addf %95, %97 : vector<128x32xf32>
    %cst_148 = arith.constant 0.000000e+00 : f32
    %99 = vector.broadcast %cst_148 : f32 to vector<128x32xf32>
    %100 = arith.maximumf %98, %99 : vector<128x32xf32>
    %101 = arith.truncf %100 : vector<128x32xf32> to vector<128x32xbf16>
    %102 = vector.shape_cast %101 : vector<128x32xbf16> to vector<2x2x32x32xbf16>
    %103 = vector.extract_strided_slice %102 {offsets = [0, 0, 0, 0], sizes = [2, 1, 32, 32], strides = [1, 1, 1, 1]} : vector<2x2x32x32xbf16> to vector<2x1x32x32xbf16>
    %104 = vector.shape_cast %103 : vector<2x1x32x32xbf16> to vector<2x32x32xbf16>
    %105 = vector.shape_cast %104 : vector<2x32x32xbf16> to vector<2x2x2x8x32xbf16>
    %106 = vector.extract_strided_slice %105 {offsets = [0, 0, 0, 0, 0], sizes = [2, 2, 1, 8, 32], strides = [1, 1, 1, 1, 1]} : vector<2x2x2x8x32xbf16> to vector<2x2x1x8x32xbf16>
    %107 = vector.shape_cast %106 : vector<2x2x1x8x32xbf16> to vector<2x2x8x32xbf16>
    %c0_149 = arith.constant 0 : index
    %c0_150 = arith.constant 0 : index
    %c0_151 = arith.constant 0 : index
    %c96_152 = arith.constant 96 : index
    %108 = vector.load %arg16[%c0_149, %c0_150, %c0_151, %c96_152] : memref<3x3x8x128xbf16, #tpu.memory_space<vmem>>, vector<2x2x8x32xbf16>
    tpu.vector_store %arg16[%c0_149, %c0_150, %c0_151, %c96_152], %107 {strides = array<i32>} : memref<3x3x8x128xbf16, #tpu.memory_space<vmem>>, vector<2x2x8x32xbf16>,
    %109 = vector.shape_cast %104 : vector<2x32x32xbf16> to vector<2x2x2x8x32xbf16>
    %110 = vector.extract_strided_slice %109 {offsets = [0, 0, 1, 0, 0], sizes = [2, 2, 1, 8, 32], strides = [1, 1, 1, 1, 1]} : vector<2x2x2x8x32xbf16> to vector<2x2x1x8x32xbf16>
    %111 = vector.shape_cast %110 : vector<2x2x1x8x32xbf16> to vector<2x2x8x32xbf16>
    %c0_153 = arith.constant 0 : index
    %c1_154 = arith.constant 1 : index
    %c0_155 = arith.constant 0 : index
    %c64_156 = arith.constant 64 : index
    %112 = vector.load %arg16[%c0_153, %c1_154, %c0_155, %c64_156] : memref<3x3x8x128xbf16, #tpu.memory_space<vmem>>, vector<2x2x8x32xbf16>
    tpu.vector_store %arg16[%c0_153, %c1_154, %c0_155, %c64_156], %111 {strides = array<i32>} : memref<3x3x8x128xbf16, #tpu.memory_space<vmem>>, vector<2x2x8x32xbf16>,
    %113 = vector.shape_cast %101 : vector<128x32xbf16> to vector<2x2x32x32xbf16>
    %114 = vector.extract_strided_slice %113 {offsets = [0, 1, 0, 0], sizes = [2, 1, 32, 32], strides = [1, 1, 1, 1]} : vector<2x2x32x32xbf16> to vector<2x1x32x32xbf16>
    %115 = vector.shape_cast %114 : vector<2x1x32x32xbf16> to vector<2x32x32xbf16>
    %116 = vector.shape_cast %115 : vector<2x32x32xbf16> to vector<2x2x2x8x32xbf16>
    %117 = vector.extract_strided_slice %116 {offsets = [0, 0, 0, 0, 0], sizes = [2, 2, 1, 8, 32], strides = [1, 1, 1, 1, 1]} : vector<2x2x2x8x32xbf16> to vector<2x2x1x8x32xbf16>
    %118 = vector.shape_cast %117 : vector<2x2x1x8x32xbf16> to vector<2x2x8x32xbf16>
    %c1_157 = arith.constant 1 : index
    %c0_158 = arith.constant 0 : index
    %c0_159 = arith.constant 0 : index
    %c32_160 = arith.constant 32 : index
    %119 = vector.load %arg16[%c1_157, %c0_158, %c0_159, %c32_160] : memref<3x3x8x128xbf16, #tpu.memory_space<vmem>>, vector<2x2x8x32xbf16>
    tpu.vector_store %arg16[%c1_157, %c0_158, %c0_159, %c32_160], %118 {strides = array<i32>} : memref<3x3x8x128xbf16, #tpu.memory_space<vmem>>, vector<2x2x8x32xbf16>,
    %120 = vector.shape_cast %115 : vector<2x32x32xbf16> to vector<2x2x2x8x32xbf16>
    %121 = vector.extract_strided_slice %120 {offsets = [0, 0, 1, 0, 0], sizes = [2, 2, 1, 8, 32], strides = [1, 1, 1, 1, 1]} : vector<2x2x2x8x32xbf16> to vector<2x2x1x8x32xbf16>
    %122 = vector.shape_cast %121 : vector<2x2x1x8x32xbf16> to vector<2x2x8x32xbf16>
    %c1_161 = arith.constant 1 : index
    %c1_162 = arith.constant 1 : index
    %c0_163 = arith.constant 0 : index
    %c0_164 = arith.constant 0 : index
    %123 = vector.load %arg16[%c1_161, %c1_162, %c0_163, %c0_164] : memref<3x3x8x128xbf16, #tpu.memory_space<vmem>>, vector<2x2x8x32xbf16>
    tpu.vector_store %arg16[%c1_161, %c1_162, %c0_163, %c0_164], %122 {strides = array<i32>} : memref<3x3x8x128xbf16, #tpu.memory_space<vmem>>, vector<2x2x8x32xbf16>,
    %cst_165 = arith.constant 0.000000e+00 : f32
    %124 = vector.broadcast %cst_165 : f32 to vector<32x64xf32>
    %c0_166 = arith.constant 0 : index
    %c0_167 = arith.constant 0 : index
    %c0_168 = arith.constant 0 : index
    %c0_169 = arith.constant 0 : index
    %125 = vector.load %arg16[%c0_166, %c0_167, %c0_168, %c0_169] : memref<3x3x8x128xbf16, #tpu.memory_space<vmem>>, vector<2x2x8x128xbf16>
    %126 = vector.shape_cast %125 : vector<2x2x8x128xbf16> to vector<32x128xbf16>
    %c0_170 = arith.constant 0 : index
    %c0_171 = arith.constant 0 : index
    %127 = vector.load %arg6[%c0_170, %c0_171] : memref<512x64xbf16, #tpu.memory_space<vmem>>, vector<128x64xbf16>
    %cst_172 = arith.constant dense<0.000000e+00> : vector<32x64xf32>
    %128 = tpu.matmul %126, %127, %cst_172 {dimension_numbers = #tpu.dot_dimension_numbers<[1], [0], [0], [1], [0, 0, 1, 1], [], []>} : vector<32x128xbf16>, vector<128x64xbf16>, vector<32x64xf32> -> vector<32x64xf32>
    %129 = arith.addf %124, %128 : vector<32x64xf32>
    %c0_173 = arith.constant 0 : index
    %c1_174 = arith.constant 1 : index
    %c0_175 = arith.constant 0 : index
    %c0_176 = arith.constant 0 : index
    %130 = vector.load %arg16[%c0_173, %c1_174, %c0_175, %c0_176] : memref<3x3x8x128xbf16, #tpu.memory_space<vmem>>, vector<2x2x8x128xbf16>
    %131 = vector.shape_cast %130 : vector<2x2x8x128xbf16> to vector<32x128xbf16>
    %c128_177 = arith.constant 128 : index
    %c0_178 = arith.constant 0 : index
    %132 = vector.load %arg6[%c128_177, %c0_178] : memref<512x64xbf16, #tpu.memory_space<vmem>>, vector<128x64xbf16>
    %cst_179 = arith.constant dense<0.000000e+00> : vector<32x64xf32>
    %133 = tpu.matmul %131, %132, %cst_179 {dimension_numbers = #tpu.dot_dimension_numbers<[1], [0], [0], [1], [0, 0, 1, 1], [], []>} : vector<32x128xbf16>, vector<128x64xbf16>, vector<32x64xf32> -> vector<32x64xf32>
    %134 = arith.addf %129, %133 : vector<32x64xf32>
    %c1_180 = arith.constant 1 : index
    %c0_181 = arith.constant 0 : index
    %c0_182 = arith.constant 0 : index
    %c0_183 = arith.constant 0 : index
    %135 = vector.load %arg16[%c1_180, %c0_181, %c0_182, %c0_183] : memref<3x3x8x128xbf16, #tpu.memory_space<vmem>>, vector<2x2x8x128xbf16>
    %136 = vector.shape_cast %135 : vector<2x2x8x128xbf16> to vector<32x128xbf16>
    %c256_184 = arith.constant 256 : index
    %c0_185 = arith.constant 0 : index
    %137 = vector.load %arg6[%c256_184, %c0_185] : memref<512x64xbf16, #tpu.memory_space<vmem>>, vector<128x64xbf16>
    %cst_186 = arith.constant dense<0.000000e+00> : vector<32x64xf32>
    %138 = tpu.matmul %136, %137, %cst_186 {dimension_numbers = #tpu.dot_dimension_numbers<[1], [0], [0], [1], [0, 0, 1, 1], [], []>} : vector<32x128xbf16>, vector<128x64xbf16>, vector<32x64xf32> -> vector<32x64xf32>
    %139 = arith.addf %134, %138 : vector<32x64xf32>
    %c1_187 = arith.constant 1 : index
    %c1_188 = arith.constant 1 : index
    %c0_189 = arith.constant 0 : index
    %c0_190 = arith.constant 0 : index
    %140 = vector.load %arg16[%c1_187, %c1_188, %c0_189, %c0_190] : memref<3x3x8x128xbf16, #tpu.memory_space<vmem>>, vector<2x2x8x128xbf16>
    %141 = vector.shape_cast %140 : vector<2x2x8x128xbf16> to vector<32x128xbf16>
    %c384_191 = arith.constant 384 : index
    %c0_192 = arith.constant 0 : index
    %142 = vector.load %arg6[%c384_191, %c0_192] : memref<512x64xbf16, #tpu.memory_space<vmem>>, vector<128x64xbf16>
    %cst_193 = arith.constant dense<0.000000e+00> : vector<32x64xf32>
    %143 = tpu.matmul %141, %142, %cst_193 {dimension_numbers = #tpu.dot_dimension_numbers<[1], [0], [0], [1], [0, 0, 1, 1], [], []>} : vector<32x128xbf16>, vector<128x64xbf16>, vector<32x64xf32> -> vector<32x64xf32>
    %144 = arith.addf %139, %143 : vector<32x64xf32>
    %c0_194 = arith.constant 0 : index
    %c0_195 = arith.constant 0 : index
    %145 = vector.load %arg7[%c0_194, %c0_195] : memref<1x64xf32, #tpu.memory_space<vmem>>, vector<1x64xf32>
    %146 = vector.broadcast %145 : vector<1x64xf32> to vector<32x64xf32>
    %147 = arith.addf %144, %146 : vector<32x64xf32>
    %cst_196 = arith.constant 0.000000e+00 : f32
    %148 = vector.broadcast %cst_196 : f32 to vector<32x64xf32>
    %149 = arith.maximumf %147, %148 : vector<32x64xf32>
    %150 = arith.truncf %149 : vector<32x64xf32> to vector<32x64xbf16>
    %151 = vector.shape_cast %150 : vector<32x64xbf16> to vector<1x2x16x64xbf16>
    %152 = vector.extract_strided_slice %151 {offsets = [0, 0, 0, 0], sizes = [1, 1, 16, 64], strides = [1, 1, 1, 1]} : vector<1x2x16x64xbf16> to vector<1x1x16x64xbf16>
    %153 = vector.shape_cast %152 : vector<1x1x16x64xbf16> to vector<1x16x64xbf16>
    %154 = vector.shape_cast %153 : vector<1x16x64xbf16> to vector<1x1x2x8x64xbf16>
    %155 = vector.extract_strided_slice %154 {offsets = [0, 0, 0, 0, 0], sizes = [1, 1, 1, 8, 64], strides = [1, 1, 1, 1, 1]} : vector<1x1x2x8x64xbf16> to vector<1x1x1x8x64xbf16>
    %156 = vector.shape_cast %155 : vector<1x1x1x8x64xbf16> to vector<1x1x8x64xbf16>
    %c0_197 = arith.constant 0 : index
    %c0_198 = arith.constant 0 : index
    %c0_199 = arith.constant 0 : index
    %c192_200 = arith.constant 192 : index
    %157 = vector.load %arg17[%c0_197, %c0_198, %c0_199, %c192_200] : memref<2x2x8x256xbf16, #tpu.memory_space<vmem>>, vector<1x1x8x64xbf16>
    tpu.vector_store %arg17[%c0_197, %c0_198, %c0_199, %c192_200], %156 {strides = array<i32>} : memref<2x2x8x256xbf16, #tpu.memory_space<vmem>>, vector<1x1x8x64xbf16>,
    %158 = vector.shape_cast %153 : vector<1x16x64xbf16> to vector<1x1x2x8x64xbf16>
    %159 = vector.extract_strided_slice %158 {offsets = [0, 0, 1, 0, 0], sizes = [1, 1, 1, 8, 64], strides = [1, 1, 1, 1, 1]} : vector<1x1x2x8x64xbf16> to vector<1x1x1x8x64xbf16>
    %160 = vector.shape_cast %159 : vector<1x1x1x8x64xbf16> to vector<1x1x8x64xbf16>
    %c0_201 = arith.constant 0 : index
    %c1_202 = arith.constant 1 : index
    %c0_203 = arith.constant 0 : index
    %c128_204 = arith.constant 128 : index
    %161 = vector.load %arg17[%c0_201, %c1_202, %c0_203, %c128_204] : memref<2x2x8x256xbf16, #tpu.memory_space<vmem>>, vector<1x1x8x64xbf16>
    tpu.vector_store %arg17[%c0_201, %c1_202, %c0_203, %c128_204], %160 {strides = array<i32>} : memref<2x2x8x256xbf16, #tpu.memory_space<vmem>>, vector<1x1x8x64xbf16>,
    %162 = vector.shape_cast %150 : vector<32x64xbf16> to vector<1x2x16x64xbf16>
    %163 = vector.extract_strided_slice %162 {offsets = [0, 1, 0, 0], sizes = [1, 1, 16, 64], strides = [1, 1, 1, 1]} : vector<1x2x16x64xbf16> to vector<1x1x16x64xbf16>
    %164 = vector.shape_cast %163 : vector<1x1x16x64xbf16> to vector<1x16x64xbf16>
    %165 = vector.shape_cast %164 : vector<1x16x64xbf16> to vector<1x1x2x8x64xbf16>
    %166 = vector.extract_strided_slice %165 {offsets = [0, 0, 0, 0, 0], sizes = [1, 1, 1, 8, 64], strides = [1, 1, 1, 1, 1]} : vector<1x1x2x8x64xbf16> to vector<1x1x1x8x64xbf16>
    %167 = vector.shape_cast %166 : vector<1x1x1x8x64xbf16> to vector<1x1x8x64xbf16>
    %c1_205 = arith.constant 1 : index
    %c0_206 = arith.constant 0 : index
    %c0_207 = arith.constant 0 : index
    %c64_208 = arith.constant 64 : index
    %168 = vector.load %arg17[%c1_205, %c0_206, %c0_207, %c64_208] : memref<2x2x8x256xbf16, #tpu.memory_space<vmem>>, vector<1x1x8x64xbf16>
    tpu.vector_store %arg17[%c1_205, %c0_206, %c0_207, %c64_208], %167 {strides = array<i32>} : memref<2x2x8x256xbf16, #tpu.memory_space<vmem>>, vector<1x1x8x64xbf16>,
    %169 = vector.shape_cast %164 : vector<1x16x64xbf16> to vector<1x1x2x8x64xbf16>
    %170 = vector.extract_strided_slice %169 {offsets = [0, 0, 1, 0, 0], sizes = [1, 1, 1, 8, 64], strides = [1, 1, 1, 1, 1]} : vector<1x1x2x8x64xbf16> to vector<1x1x1x8x64xbf16>
    %171 = vector.shape_cast %170 : vector<1x1x1x8x64xbf16> to vector<1x1x8x64xbf16>
    %c1_209 = arith.constant 1 : index
    %c1_210 = arith.constant 1 : index
    %c0_211 = arith.constant 0 : index
    %c0_212 = arith.constant 0 : index
    %172 = vector.load %arg17[%c1_209, %c1_210, %c0_211, %c0_212] : memref<2x2x8x256xbf16, #tpu.memory_space<vmem>>, vector<1x1x8x64xbf16>
    tpu.vector_store %arg17[%c1_209, %c1_210, %c0_211, %c0_212], %171 {strides = array<i32>} : memref<2x2x8x256xbf16, #tpu.memory_space<vmem>>, vector<1x1x8x64xbf16>,
    %cst_213 = arith.constant 0.000000e+00 : f32
    %173 = vector.broadcast %cst_213 : f32 to vector<8x64xf32>
    %c0_214 = arith.constant 0 : index
    %c0_215 = arith.constant 0 : index
    %c0_216 = arith.constant 0 : index
    %c0_217 = arith.constant 0 : index
    %174 = vector.load %arg17[%c0_214, %c0_215, %c0_216, %c0_217] : memref<2x2x8x256xbf16, #tpu.memory_space<vmem>>, vector<1x1x8x256xbf16>
    %175 = vector.shape_cast %174 : vector<1x1x8x256xbf16> to vector<8x256xbf16>
    %c0_218 = arith.constant 0 : index
    %c0_219 = arith.constant 0 : index
    %176 = vector.load %arg8[%c0_218, %c0_219] : memref<1024x64xbf16, #tpu.memory_space<vmem>>, vector<256x64xbf16>
    %cst_220 = arith.constant dense<0.000000e+00> : vector<8x64xf32>
    %177 = tpu.matmul %175, %176, %cst_220 {dimension_numbers = #tpu.dot_dimension_numbers<[1], [0], [0], [1], [0, 0, 1, 1], [], []>} : vector<8x256xbf16>, vector<256x64xbf16>, vector<8x64xf32> -> vector<8x64xf32>
    %178 = arith.addf %173, %177 : vector<8x64xf32>
    %c0_221 = arith.constant 0 : index
    %c1_222 = arith.constant 1 : index
    %c0_223 = arith.constant 0 : index
    %c0_224 = arith.constant 0 : index
    %179 = vector.load %arg17[%c0_221, %c1_222, %c0_223, %c0_224] : memref<2x2x8x256xbf16, #tpu.memory_space<vmem>>, vector<1x1x8x256xbf16>
    %180 = vector.shape_cast %179 : vector<1x1x8x256xbf16> to vector<8x256xbf16>
    %c256_225 = arith.constant 256 : index
    %c0_226 = arith.constant 0 : index
    %181 = vector.load %arg8[%c256_225, %c0_226] : memref<1024x64xbf16, #tpu.memory_space<vmem>>, vector<256x64xbf16>
    %cst_227 = arith.constant dense<0.000000e+00> : vector<8x64xf32>
    %182 = tpu.matmul %180, %181, %cst_227 {dimension_numbers = #tpu.dot_dimension_numbers<[1], [0], [0], [1], [0, 0, 1, 1], [], []>} : vector<8x256xbf16>, vector<256x64xbf16>, vector<8x64xf32> -> vector<8x64xf32>
    %183 = arith.addf %178, %182 : vector<8x64xf32>
    %c1_228 = arith.constant 1 : index
    %c0_229 = arith.constant 0 : index
    %c0_230 = arith.constant 0 : index
    %c0_231 = arith.constant 0 : index
    %184 = vector.load %arg17[%c1_228, %c0_229, %c0_230, %c0_231] : memref<2x2x8x256xbf16, #tpu.memory_space<vmem>>, vector<1x1x8x256xbf16>
    %185 = vector.shape_cast %184 : vector<1x1x8x256xbf16> to vector<8x256xbf16>
    %c512 = arith.constant 512 : index
    %c0_232 = arith.constant 0 : index
    %186 = vector.load %arg8[%c512, %c0_232] : memref<1024x64xbf16, #tpu.memory_space<vmem>>, vector<256x64xbf16>
    %cst_233 = arith.constant dense<0.000000e+00> : vector<8x64xf32>
    %187 = tpu.matmul %185, %186, %cst_233 {dimension_numbers = #tpu.dot_dimension_numbers<[1], [0], [0], [1], [0, 0, 1, 1], [], []>} : vector<8x256xbf16>, vector<256x64xbf16>, vector<8x64xf32> -> vector<8x64xf32>
    %188 = arith.addf %183, %187 : vector<8x64xf32>
    %c1_234 = arith.constant 1 : index
    %c1_235 = arith.constant 1 : index
    %c0_236 = arith.constant 0 : index
    %c0_237 = arith.constant 0 : index
    %189 = vector.load %arg17[%c1_234, %c1_235, %c0_236, %c0_237] : memref<2x2x8x256xbf16, #tpu.memory_space<vmem>>, vector<1x1x8x256xbf16>
    %190 = vector.shape_cast %189 : vector<1x1x8x256xbf16> to vector<8x256xbf16>
    %c768 = arith.constant 768 : index
    %c0_238 = arith.constant 0 : index
    %191 = vector.load %arg8[%c768, %c0_238] : memref<1024x64xbf16, #tpu.memory_space<vmem>>, vector<256x64xbf16>
    %cst_239 = arith.constant dense<0.000000e+00> : vector<8x64xf32>
    %192 = tpu.matmul %190, %191, %cst_239 {dimension_numbers = #tpu.dot_dimension_numbers<[1], [0], [0], [1], [0, 0, 1, 1], [], []>} : vector<8x256xbf16>, vector<256x64xbf16>, vector<8x64xf32> -> vector<8x64xf32>
    %193 = arith.addf %188, %192 : vector<8x64xf32>
    %c0_240 = arith.constant 0 : index
    %c0_241 = arith.constant 0 : index
    %194 = vector.load %arg9[%c0_240, %c0_241] : memref<1x64xf32, #tpu.memory_space<vmem>>, vector<1x64xf32>
    %195 = vector.broadcast %194 : vector<1x64xf32> to vector<8x64xf32>
    %196 = arith.addf %193, %195 : vector<8x64xf32>
    %cst_242 = arith.constant 0.000000e+00 : f32
    %197 = vector.broadcast %cst_242 : f32 to vector<8x64xf32>
    %198 = arith.maximumf %196, %197 : vector<8x64xf32>
    %199 = arith.truncf %198 : vector<8x64xf32> to vector<8x64xbf16>
    %200 = vector.shape_cast %199 : vector<8x64xbf16> to vector<1x1x8x64xbf16>
    %201 = vector.shape_cast %200 : vector<1x1x8x64xbf16> to vector<8x64xbf16>
    %c0_243 = arith.constant 0 : index
    %c0_244 = arith.constant 0 : index
    %202 = vector.load %arg18[%c0_243, %c0_244] : memref<8x128xbf16, #tpu.memory_space<vmem>>, vector<8x64xbf16>
    tpu.vector_store %arg18[%c0_243, %c0_244], %201 {strides = array<i32>} : memref<8x128xbf16, #tpu.memory_space<vmem>>, vector<8x64xbf16>,
    %c0_245 = arith.constant 0 : index
    %c0_246 = arith.constant 0 : index
    %203 = vector.load %arg18[%c0_245, %c0_246] : memref<8x128xbf16, #tpu.memory_space<vmem>>, vector<8x128xbf16>
    %c0_247 = arith.constant 0 : index
    %c0_248 = arith.constant 0 : index
    %204 = vector.load %arg10[%c0_247, %c0_248] : memref<128x128xbf16, #tpu.memory_space<vmem>>, vector<128x128xbf16>
    %cst_249 = arith.constant dense<0.000000e+00> : vector<8x128xf32>
    %205 = tpu.matmul %203, %204, %cst_249 {dimension_numbers = #tpu.dot_dimension_numbers<[1], [0], [0], [1], [0, 0, 1, 1], [], []>} : vector<8x128xbf16>, vector<128x128xbf16>, vector<8x128xf32> -> vector<8x128xf32>
    %c0_250 = arith.constant 0 : index
    %c0_251 = arith.constant 0 : index
    %206 = vector.load %arg11[%c0_250, %c0_251] : memref<1x128xf32, #tpu.memory_space<vmem>>, vector<1x128xf32>
    %207 = vector.broadcast %206 : vector<1x128xf32> to vector<8x128xf32>
    %208 = arith.addf %205, %207 : vector<8x128xf32>
    %cst_252 = arith.constant 0.000000e+00 : f32
    %209 = vector.broadcast %cst_252 : f32 to vector<8x128xf32>
    %210 = arith.maximumf %208, %209 : vector<8x128xf32>
    %211 = arith.truncf %210 : vector<8x128xf32> to vector<8x128xbf16>
    %c0_253 = arith.constant 0 : index
    %c0_254 = arith.constant 0 : index
    %212 = vector.load %arg12[%c0_253, %c0_254] : memref<128x128xbf16, #tpu.memory_space<vmem>>, vector<128x128xbf16>
    %cst_255 = arith.constant dense<0.000000e+00> : vector<8x128xf32>
    %213 = tpu.matmul %211, %212, %cst_255 {dimension_numbers = #tpu.dot_dimension_numbers<[1], [0], [0], [1], [0, 0, 1, 1], [], []>} : vector<8x128xbf16>, vector<128x128xbf16>, vector<8x128xf32> -> vector<8x128xf32>
    %c0_256 = arith.constant 0 : index
    %c0_257 = arith.constant 0 : index
    %214 = vector.load %arg13[%c0_256, %c0_257] : memref<1x128xf32, #tpu.memory_space<vmem>>, vector<1x128xf32>
    %215 = vector.broadcast %214 : vector<1x128xf32> to vector<8x128xf32>
    %216 = arith.addf %213, %215 : vector<8x128xf32>
    %217 = tpu.iota {dimensions = array<i32: 1>} : vector<8x128xi32>
    %c10_i32 = arith.constant 10 : i32
    %218 = vector.broadcast %c10_i32 : i32 to vector<8x128xi32>
    %219 = arith.cmpi slt, %217, %218 : vector<8x128xi32>
    %cst_258 = arith.constant -1.000000e+30 : f32
    %220 = vector.broadcast %cst_258 : f32 to vector<8x128xf32>
    %221 = arith.select %219, %216, %220 : vector<8x128xi1>, vector<8x128xf32>
    %cst_259 = arith.constant dense<0xFF800000> : vector<8xf32>
    %222 = vector.multi_reduction <maximumf>, %221, %cst_259 [1] : vector<8x128xf32> to vector<8xf32>
    %223 = vector.shape_cast %222 : vector<8xf32> to vector<8x1xf32>
    %224 = vector.broadcast %223 : vector<8x1xf32> to vector<8x128xf32>
    %225 = arith.subf %221, %224 : vector<8x128xf32>
    %226 = math.exp %225 : vector<8x128xf32>
    %cst_260 = arith.constant dense<0.000000e+00> : vector<8xf32>
    %227 = vector.multi_reduction <add>, %226, %cst_260 [1] : vector<8x128xf32> to vector<8xf32>
    %228 = vector.shape_cast %227 : vector<8xf32> to vector<8x1xf32>
    %229 = math.log %228 : vector<8x1xf32>
    %230 = vector.broadcast %229 : vector<8x1xf32> to vector<8x128xf32>
    %231 = arith.subf %225, %230 : vector<8x128xf32>
    %c0_261 = arith.constant 0 : index
    %c0_262 = arith.constant 0 : index
    %232 = vector.load %arg14[%c0_261, %c0_262] : memref<8x128xf32, #tpu.memory_space<vmem>>, vector<8x128xf32>
    tpu.vector_store %arg14[%c0_261, %c0_262], %231 {strides = array<i32>} : memref<8x128xf32, #tpu.memory_space<vmem>>, vector<8x128xf32>,
    return
  }
  func.func @transform_0(%arg0: i32) -> (i32, i32, i32, i32) {
    %c0_i32 = arith.constant 0 : i32
    %c0_i32_0 = arith.constant 0 : i32
    %c0_i32_1 = arith.constant 0 : i32
    %c0_i32_2 = arith.constant 0 : i32
    return %c0_i32, %c0_i32_0, %arg0, %c0_i32_1 : i32, i32, i32, i32
  }
  func.func @transform_1(%arg0: i32) -> (i32, i32) {
    %c0_i32 = arith.constant 0 : i32
    %c0_i32_0 = arith.constant 0 : i32
    %c0_i32_1 = arith.constant 0 : i32
    return %c0_i32, %c0_i32_0 : i32, i32
  }
  func.func @transform_2(%arg0: i32) -> (i32, i32) {
    %c0_i32 = arith.constant 0 : i32
    %c0_i32_0 = arith.constant 0 : i32
    %c0_i32_1 = arith.constant 0 : i32
    return %c0_i32, %c0_i32_0 : i32, i32
  }
  func.func @transform_3(%arg0: i32) -> (i32, i32) {
    %c0_i32 = arith.constant 0 : i32
    %c0_i32_0 = arith.constant 0 : i32
    %c0_i32_1 = arith.constant 0 : i32
    return %c0_i32, %c0_i32_0 : i32, i32
  }
  func.func @transform_4(%arg0: i32) -> (i32, i32) {
    %c0_i32 = arith.constant 0 : i32
    %c0_i32_0 = arith.constant 0 : i32
    %c0_i32_1 = arith.constant 0 : i32
    return %c0_i32, %c0_i32_0 : i32, i32
  }
  func.func @transform_5(%arg0: i32) -> (i32, i32) {
    %c0_i32 = arith.constant 0 : i32
    %c0_i32_0 = arith.constant 0 : i32
    %c0_i32_1 = arith.constant 0 : i32
    return %c0_i32, %c0_i32_0 : i32, i32
  }
  func.func @transform_6(%arg0: i32) -> (i32, i32) {
    %c0_i32 = arith.constant 0 : i32
    %c0_i32_0 = arith.constant 0 : i32
    %c0_i32_1 = arith.constant 0 : i32
    return %c0_i32, %c0_i32_0 : i32, i32
  }
  func.func @transform_7(%arg0: i32) -> (i32, i32) {
    %c0_i32 = arith.constant 0 : i32
    %c0_i32_0 = arith.constant 0 : i32
    %c0_i32_1 = arith.constant 0 : i32
    return %c0_i32, %c0_i32_0 : i32, i32
  }
  func.func @transform_8(%arg0: i32) -> (i32, i32) {
    %c0_i32 = arith.constant 0 : i32
    %c0_i32_0 = arith.constant 0 : i32
    %c0_i32_1 = arith.constant 0 : i32
    return %c0_i32, %c0_i32_0 : i32, i32
  }
  func.func @transform_9(%arg0: i32) -> (i32, i32) {
    %c0_i32 = arith.constant 0 : i32
    %c0_i32_0 = arith.constant 0 : i32
    %c0_i32_1 = arith.constant 0 : i32
    return %c0_i32, %c0_i32_0 : i32, i32
  }
  func.func @transform_10(%arg0: i32) -> (i32, i32) {
    %c0_i32 = arith.constant 0 : i32
    %c0_i32_0 = arith.constant 0 : i32
    %c0_i32_1 = arith.constant 0 : i32
    return %c0_i32, %c0_i32_0 : i32, i32
  }
  func.func @transform_11(%arg0: i32) -> (i32, i32) {
    %c0_i32 = arith.constant 0 : i32
    %c0_i32_0 = arith.constant 0 : i32
    %c0_i32_1 = arith.constant 0 : i32
    return %c0_i32, %c0_i32_0 : i32, i32
  }
  func.func @transform_12(%arg0: i32) -> (i32, i32) {
    %c0_i32 = arith.constant 0 : i32
    %c0_i32_0 = arith.constant 0 : i32
    %c0_i32_1 = arith.constant 0 : i32
    return %c0_i32, %c0_i32_0 : i32, i32
  }
  func.func @transform_13(%arg0: i32) -> (i32, i32) {
    %c0_i32 = arith.constant 0 : i32
    %c0_i32_0 = arith.constant 0 : i32
    return %arg0, %c0_i32 : i32, i32
  }
}

</mosaic_0001>

<llo_original>
// kernel: conv_forward.1
$region0: #{conv_forward.1}
  #allocation0 [shape = 'u32[]', space=smem, size = 0x4, offset = 0x4, fixed_abs, tag = 'smem constant byte address 0x4 - core index']
  #allocation1 [shape = 'u32[144,128]{1,0:T(1,128)}', space=vmem, size = 0x12000, scoped, tag = 'internal scratch']
  #allocation2 [shape = 'bf16[5,5,8,128]{3,2,1,0:T(8,128)(2,1)}', space=vmem, size = 0xc800, scoped, tag = 'scratch operand']
  #allocation3 [shape = 'bf16[3,3,8,128]{3,2,1,0:T(8,128)(2,1)}', space=vmem, size = 0x4800, scoped, tag = 'scratch operand']
  #allocation4 [shape = 'bf16[2,2,8,256]{3,2,1,0:T(8,128)(2,1)}', space=vmem, size = 0x4000, scoped, tag = 'scratch operand']
  #allocation5 [shape = 'bf16[8,128]{1,0:T(8,128)(2,1)}', space=vmem, size = 0x800, scoped, tag = 'scratch operand']
  %s0 = inlined_call_operand.vmem [shape: bf16[9,9,8,32], index: 0, kind: input, shape index: {}]
  %s1 = inlined_call_operand.vmem [shape: bf16[128,32], index: 1, kind: input, shape index: {}]
  %s2 = inlined_call_operand.vmem [shape: f32[1,32], index: 2, kind: input, shape index: {}]
  %s3 = inlined_call_operand.vmem [shape: bf16[512,32], index: 3, kind: input, shape index: {}]
  %s4 = inlined_call_operand.vmem [shape: f32[1,32], index: 4, kind: input, shape index: {}]
  %s5 = inlined_call_operand.vmem [shape: bf16[512,64], index: 5, kind: input, shape index: {}]
  %s6 = inlined_call_operand.vmem [shape: f32[1,64], index: 6, kind: input, shape index: {}]
  %s7 = inlined_call_operand.vmem [shape: bf16[1024,64], index: 7, kind: input, shape index: {}]
  %s8 = inlined_call_operand.vmem [shape: f32[1,64], index: 8, kind: input, shape index: {}]
  %s9 = inlined_call_operand.vmem [shape: bf16[128,128], index: 9, kind: input, shape index: {}]
  %s10 = inlined_call_operand.vmem [shape: f32[1,128], index: 10, kind: input, shape index: {}]
  %s11 = inlined_call_operand.vmem [shape: bf16[128,128], index: 11, kind: input, shape index: {}]
  %s12 = inlined_call_operand.vmem [shape: f32[1,128], index: 12, kind: input, shape index: {}]
  %s13 = inlined_call_operand.vmem [shape: f32[8,128], index: 13, kind: output, shape index: {}]
  %s14 = sld [smem:[#allocation0]]
  $region62: #{conv_forward.1} parent=0
    _
  %s16 = ssub.s32 1, %s14
  %s17 = scalar_select 0, %s16, %s14
  // Predicated region
  $region2: #{conv_forward.1} parent=0 // pred_check
    _
  $region3: #{conv_forward.1} parent=0 // pred_check_branch
    %19 = sbr.rel (0) target = $region5
  $region4: #{conv_forward.1} parent=0 // pred_region
    _
  $region5: #{conv_forward.1} parent=0 // pred_fallthru
    _
  // Predicated region
  $region6: #{conv_forward.1} parent=0 // pred_check
    _
  $region7: #{conv_forward.1} parent=0 // pred_check_branch
    %21 = sbr.rel (0) target = $region9
  $region8: #{conv_forward.1} parent=0 // pred_region
    _
  $region9: #{conv_forward.1} parent=0 // pred_fallthru
    _
  // Predicated region
  $region10: #{conv_forward.1} parent=0 // pred_check
    _
  $region11: #{conv_forward.1} parent=0 // pred_check_branch
    %23 = sbr.rel (0) target = $region13
  $region12: #{conv_forward.1} parent=0 // pred_region
    _
  $region13: #{conv_forward.1} parent=0 // pred_fallthru
    _
  // Predicated region
  $region14: #{conv_forward.1} parent=0 // pred_check
    _
  $region15: #{conv_forward.1} parent=0 // pred_check_branch
    %25 = sbr.rel (0) target = $region17
  $region16: #{conv_forward.1} parent=0 // pred_region
    _
  $region17: #{conv_forward.1} parent=0 // pred_fallthru
    _
  // Predicated region
  $region18: #{conv_forward.1} parent=0 // pred_check
    _
  $region19: #{conv_forward.1} parent=0 // pred_check_branch
    %27 = sbr.rel (0) target = $region21
  $region20: #{conv_forward.1} parent=0 // pred_region
    _
  $region21: #{conv_forward.1} parent=0 // pred_fallthru
    _
  // Predicated region
  $region22: #{conv_forward.1} parent=0 // pred_check
    _
  $region23: #{conv_forward.1} parent=0 // pred_check_branch
    %29 = sbr.rel (0) target = $region25
  $region24: #{conv_forward.1} parent=0 // pred_region
    _
  $region25: #{conv_forward.1} parent=0 // pred_fallthru
    _
  // Predicated region
  $region26: #{conv_forward.1} parent=0 // pred_check
    _
  $region27: #{conv_forward.1} parent=0 // pred_check_branch
    %31 = sbr.rel (0) target = $region29
  $region28: #{conv_forward.1} parent=0 // pred_region
    _
  $region29: #{conv_forward.1} parent=0 // pred_fallthru
    _
  // Predicated region
  $region30: #{conv_forward.1} parent=0 // pred_check
    _
  $region31: #{conv_forward.1} parent=0 // pred_check_branch
    %33 = sbr.rel (0) target = $region33
  $region32: #{conv_forward.1} parent=0 // pred_region
    _
  $region33: #{conv_forward.1} parent=0 // pred_fallthru
    _
  // Predicated region
  $region34: #{conv_forward.1} parent=0 // pred_check
    _
  $region35: #{conv_forward.1} parent=0 // pred_check_branch
    %35 = sbr.rel (0) target = $region37
  $region36: #{conv_forward.1} parent=0 // pred_region
    _
  $region37: #{conv_forward.1} parent=0 // pred_fallthru
    _
  // Predicated region
  $region38: #{conv_forward.1} parent=0 // pred_check
    _
  $region39: #{conv_forward.1} parent=0 // pred_check_branch
    %37 = sbr.rel (0) target = $region41
  $region40: #{conv_forward.1} parent=0 // pred_region
    _
  $region41: #{conv_forward.1} parent=0 // pred_fallthru
    _
  // Predicated region
  $region42: #{conv_forward.1} parent=0 // pred_check
    _
  $region43: #{conv_forward.1} parent=0 // pred_check_branch
    %39 = sbr.rel (0) target = $region45
  $region44: #{conv_forward.1} parent=0 // pred_region
    _
  $region45: #{conv_forward.1} parent=0 // pred_fallthru
    _
  // Predicated region
  $region46: #{conv_forward.1} parent=0 // pred_check
    _
  $region47: #{conv_forward.1} parent=0 // pred_check_branch
    %41 = sbr.rel (0) target = $region49
  $region48: #{conv_forward.1} parent=0 // pred_region
    _
  $region49: #{conv_forward.1} parent=0 // pred_fallthru
    _
  // Predicated region
  $region50: #{conv_forward.1} parent=0 // pred_check
    _
  $region51: #{conv_forward.1} parent=0 // pred_check_branch
    %43 = sbr.rel (0) target = $region53
  $region52: #{conv_forward.1} parent=0 // pred_region
    _
  $region53: #{conv_forward.1} parent=0 // pred_fallthru
    _
  %vm45 = vcmask 519168
  %46 = vst.msk [vmem:[#allocation2] sm:$0xf] %vm45, 0
  %47 = vst.msk [vmem:[#allocation2 + $0x4] sm:$0xf] %vm45, 0
  %48 = vst.msk [vmem:[#allocation2 + $0x8] sm:$0xf] %vm45, 0
  %49 = vst.msk [vmem:[#allocation2 + $0xc] sm:$0xf] %vm45, 0
  %50 = vst.msk [vmem:[#allocation2 + $0x10] sm:$0xf] %vm45, 0
  %s51 = scalar_lea.vmem [#allocation2], 80
  %vm52 = vcmask 1043968
  %53 = vst.msk [vmem:[%s51] sm:$0xf] %vm52, 0
  %54 = vst.msk [vmem:[%s51 + $0x4] sm:$0xf] %vm52, 0
  %55 = vst.msk [vmem:[%s51 + $0x8] sm:$0xf] %vm52, 0
  %56 = vst.msk [vmem:[%s51 + $0xc] sm:$0xf] %vm52, 0
  %57 = vst.msk [vmem:[%s51 + $0x10] sm:$0xf] %vm52, 0
  %vm58 = vcmask 257024
  %59 = vst.msk [vmem:[#allocation2] sm:$0xf] %vm58, 0
  %60 = vst.msk [vmem:[#allocation2 + $0x14] sm:$0xf] %vm58, 0
  %61 = vst.msk [vmem:[#allocation2 + $0x28] sm:$0xf] %vm58, 0
  %62 = vst.msk [vmem:[#allocation2 + $0x3c] sm:$0xf] %vm58, 0
  %63 = vst.msk [vmem:[#allocation2 + $0x50] sm:$0xf] %vm58, 0
  %vm64 = vcmask 781824
  %65 = vst.msk [vmem:[#allocation2] sm:$0xf] %vm64, 0
  %66 = vst.msk [vmem:[#allocation2 + $0x14] sm:$0xf] %vm64, 0
  %67 = vst.msk [vmem:[#allocation2 + $0x28] sm:$0xf] %vm64, 0
  %68 = vst.msk [vmem:[#allocation2 + $0x3c] sm:$0xf] %vm64, 0
  %69 = vst.msk [vmem:[#allocation2 + $0x50] sm:$0xf] %vm64, 0
  %s70 = scalar_lea.vmem [#allocation2], 16
  %vm71 = vcmask 519424
  %72 = vst.msk [vmem:[%s70] sm:$0xf] %vm71, 0
  %73 = vst.msk [vmem:[%s70 + $0x14] sm:$0xf] %vm71, 0
  %74 = vst.msk [vmem:[%s70 + $0x28] sm:$0xf] %vm71, 0
  %75 = vst.msk [vmem:[%s70 + $0x3c] sm:$0xf] %vm71, 0
  %76 = vst.msk [vmem:[%s70 + $0x50] sm:$0xf] %vm71, 0
  %vm77 = vcmask 1044224
  %78 = vst.msk [vmem:[%s70] sm:$0xf] %vm77, 0
  %79 = vst.msk [vmem:[%s70 + $0x14] sm:$0xf] %vm77, 0
  %80 = vst.msk [vmem:[%s70 + $0x28] sm:$0xf] %vm77, 0
  %81 = vst.msk [vmem:[%s70 + $0x3c] sm:$0xf] %vm77, 0
  %82 = vst.msk [vmem:[%s70 + $0x50] sm:$0xf] %vm77, 0
  %83 = vst.msk [vmem:[#allocation3] sm:$0xf] %vm45, 0
  %84 = vst.msk [vmem:[#allocation3 + $0x4] sm:$0xf] %vm45, 0
  %85 = vst.msk [vmem:[#allocation3 + $0x8] sm:$0xf] %vm45, 0
  %s86 = scalar_lea.vmem [#allocation3], 24
  %87 = vst.msk [vmem:[%s86] sm:$0xf] %vm52, 0
  %88 = vst.msk [vmem:[%s86 + $0x4] sm:$0xf] %vm52, 0
  %89 = vst.msk [vmem:[%s86 + $0x8] sm:$0xf] %vm52, 0
  %90 = vst.msk [vmem:[#allocation3] sm:$0xf] %vm58, 0
  %91 = vst.msk [vmem:[#allocation3 + $0xc] sm:$0xf] %vm58, 0
  %92 = vst.msk [vmem:[#allocation3 + $0x18] sm:$0xf] %vm58, 0
  %93 = vst.msk [vmem:[#allocation3] sm:$0xf] %vm64, 0
  %94 = vst.msk [vmem:[#allocation3 + $0xc] sm:$0xf] %vm64, 0
  %95 = vst.msk [vmem:[#allocation3 + $0x18] sm:$0xf] %vm64, 0
  %s96 = scalar_lea.vmem [#allocation3], 8
  %97 = vst.msk [vmem:[%s96] sm:$0xf] %vm71, 0
  %98 = vst.msk [vmem:[%s96 + $0xc] sm:$0xf] %vm71, 0
  %99 = vst.msk [vmem:[%s96 + $0x18] sm:$0xf] %vm71, 0
  %100 = vst.msk [vmem:[%s96] sm:$0xf] %vm77, 0
  %101 = vst.msk [vmem:[%s96 + $0xc] sm:$0xf] %vm77, 0
  %102 = vst.msk [vmem:[%s96 + $0x18] sm:$0xf] %vm77, 0
  %103 = vst [vmem:[#allocation4] sm:$0xf] 0
  %104 = vst [vmem:[#allocation4 + $0x8] sm:$0xf] 0
  %s105 = scalar_lea.vmem [#allocation4], 16
  %106 = vst [vmem:[%s105 + $0x4] sm:$0xf] 0
  %107 = vst [vmem:[%s105 + $0xc] sm:$0xf] 0
  %108 = vst.msk [vmem:[#allocation4] sm:$0xf] %vm45, 0
  %109 = vst.msk [vmem:[#allocation4 + $0x10] sm:$0xf] %vm45, 0
  %110 = vst.msk [vmem:[#allocation4 + $0x4] sm:$0xf] %vm45, 0
  %111 = vst.msk [vmem:[#allocation4 + $0x14] sm:$0xf] %vm45, 0
  %s112 = scalar_lea.vmem [#allocation4], 8
  %113 = vst.msk [vmem:[%s112] sm:$0xf] %vm52, 0
  %114 = vst.msk [vmem:[%s112 + $0x10] sm:$0xf] %vm52, 0
  %115 = vst.msk [vmem:[%s112 + $0x4] sm:$0xf] %vm52, 0
  %116 = vst.msk [vmem:[%s112 + $0x14] sm:$0xf] %vm52, 0
  %117 = vst.msk [vmem:[#allocation5] sm:$0xf] %vm52, 0
  %v118 = vld [vmem:[%s0] sm:$0xf]
  %v119 = vld [vmem:[%s0 + $0x4] sm:$0xf]
  %v120 = vld [vmem:[%s0 + $0x8] sm:$0xf]
  %v121 = vld [vmem:[%s0 + $0xc] sm:$0xf]
  %v122 = vld [vmem:[%s0 + $0x10] sm:$0xf]
  %v123 = vld [vmem:[%s0 + $0x14] sm:$0xf]
  %v124 = vld [vmem:[%s0 + $0x18] sm:$0xf]
  %v125 = vld [vmem:[%s0 + $0x1c] sm:$0xf]
  %v126 = vld [vmem:[%s0 + $0x24] sm:$0xf]
  %v127 = vld [vmem:[%s0 + $0x28] sm:$0xf]
  %v128 = vld [vmem:[%s0 + $0x2c] sm:$0xf]
  %v129 = vld [vmem:[%s0 + $0x30] sm:$0xf]
  %v130 = vld [vmem:[%s0 + $0x34] sm:$0xf]
  %v131 = vld [vmem:[%s0 + $0x38] sm:$0xf]
  %v132 = vld [vmem:[%s0 + $0x3c] sm:$0xf]
  %v133 = vld [vmem:[%s0 + $0x40] sm:$0xf]
  %v134 = vld [vmem:[%s0 + $0x48] sm:$0xf]
  %v135 = vld [vmem:[%s0 + $0x4c] sm:$0xf]
  %v136 = vld [vmem:[%s0 + $0x50] sm:$0xf]
  %v137 = vld [vmem:[%s0 + $0x54] sm:$0xf]
  %v138 = vld [vmem:[%s0 + $0x58] sm:$0xf]
  %v139 = vld [vmem:[%s0 + $0x5c] sm:$0xf]
  %v140 = vld [vmem:[%s0 + $0x60] sm:$0xf]
  %v141 = vld [vmem:[%s0 + $0x64] sm:$0xf]
  %v142 = vld [vmem:[%s0 + $0x6c] sm:$0xf]
  %v143 = vld [vmem:[%s0 + $0x70] sm:$0xf]
  %v144 = vld [vmem:[%s0 + $0x74] sm:$0xf]
  %v145 = vld [vmem:[%s0 + $0x78] sm:$0xf]
  %v146 = vld [vmem:[%s0 + $0x7c] sm:$0xf]
  %v147 = vld [vmem:[%s0 + $0x80] sm:$0xf]
  %v148 = vld [vmem:[%s0 + $0x84] sm:$0xf]
  %v149 = vld [vmem:[%s0 + $0x88] sm:$0xf]
  %v150 = vld [vmem:[%s0 + $0x90] sm:$0xf]
  %v151 = vld [vmem:[%s0 + $0x94] sm:$0xf]
  %v152 = vld [vmem:[%s0 + $0x98] sm:$0xf]
  %v153 = vld [vmem:[%s0 + $0x9c] sm:$0xf]
  %v154 = vld [vmem:[%s0 + $0xa0] sm:$0xf]
  %v155 = vld [vmem:[%s0 + $0xa4] sm:$0xf]
  %v156 = vld [vmem:[%s0 + $0xa8] sm:$0xf]
  %v157 = vld [vmem:[%s0 + $0xac] sm:$0xf]
  %v158 = vld [vmem:[%s0 + $0xb4] sm:$0xf]
  %v159 = vld [vmem:[%s0 + $0xb8] sm:$0xf]
  %v160 = vld [vmem:[%s0 + $0xbc] sm:$0xf]
  %v161 = vld [vmem:[%s0 + $0xc0] sm:$0xf]
  %v162 = vld [vmem:[%s0 + $0xc4] sm:$0xf]
  %v163 = vld [vmem:[%s0 + $0xc8] sm:$0xf]
  %v164 = vld [vmem:[%s0 + $0xcc] sm:$0xf]
  %v165 = vld [vmem:[%s0 + $0xd0] sm:$0xf]
  %v166 = vld [vmem:[%s0 + $0xd8] sm:$0xf]
  %v167 = vld [vmem:[%s0 + $0xdc] sm:$0xf]
  %v168 = vld [vmem:[%s0 + $0xe0] sm:$0xf]
  %v169 = vld [vmem:[%s0 + $0xe4] sm:$0xf]
  %v170 = vld [vmem:[%s0 + $0xe8] sm:$0xf]
  %v171 = vld [vmem:[%s0 + $0xec] sm:$0xf]
  %v172 = vld [vmem:[%s0 + $0xf0] sm:$0xf]
  %v173 = vld [vmem:[%s0 + $0xf4] sm:$0xf]
  %v174 = vld [vmem:[%s0 + $0xfc] sm:$0xf]
  %v175 = vld [vmem:[%s0 + $0x100] sm:$0xf]
  %v176 = vld [vmem:[%s0 + $0x104] sm:$0xf]
  %v177 = vld [vmem:[%s0 + $0x108] sm:$0xf]
  %v178 = vld [vmem:[%s0 + $0x10c] sm:$0xf]
  %v179 = vld [vmem:[%s0 + $0x110] sm:$0xf]
  %v180 = vld [vmem:[%s0 + $0x114] sm:$0xf]
  %v181 = vld [vmem:[%s0 + $0x118] sm:$0xf]
  %v182 = vld [vmem:[%s1] sm:$0xf]
  %v183 = vld [vmem:[%s1 + $0x4] sm:$0xf]
  %v184 = vld [vmem:[%s1 + $0x8] sm:$0xf]
  %v185 = vld [vmem:[%s1 + $0xc] sm:$0xf]
  %s186 = scalar_lea.vmem %s0, 4
  %v187 = vld [vmem:[%s186] sm:$0xf]
  %v188 = vld [vmem:[%s186 + $0x4] sm:$0xf]
  %v189 = vld [vmem:[%s186 + $0x8] sm:$0xf]
  %v190 = vld [vmem:[%s186 + $0xc] sm:$0xf]
  %v191 = vld [vmem:[%s186 + $0x10] sm:$0xf]
  %v192 = vld [vmem:[%s186 + $0x14] sm:$0xf]
  %v193 = vld [vmem:[%s186 + $0x18] sm:$0xf]
  %v194 = vld [vmem:[%s186 + $0x1c] sm:$0xf]
  %v195 = vld [vmem:[%s186 + $0x24] sm:$0xf]
  %v196 = vld [vmem:[%s186 + $0x28] sm:$0xf]
  %v197 = vld [vmem:[%s186 + $0x2c] sm:$0xf]
  %v198 = vld [vmem:[%s186 + $0x30] sm:$0xf]
  %v199 = vld [vmem:[%s186 + $0x34] sm:$0xf]
  %v200 = vld [vmem:[%s186 + $0x38] sm:$0xf]
  %v201 = vld [vmem:[%s186 + $0x3c] sm:$0xf]
  %v202 = vld [vmem:[%s186 + $0x40] sm:$0xf]
  %v203 = vld [vmem:[%s186 + $0x48] sm:$0xf]
  %v204 = vld [vmem:[%s186 + $0x4c] sm:$0xf]
  %v205 = vld [vmem:[%s186 + $0x50] sm:$0xf]
  %v206 = vld [vmem:[%s186 + $0x54] sm:$0xf]
  %v207 = vld [vmem:[%s186 + $0x58] sm:$0xf]
  %v208 = vld [vmem:[%s186 + $0x5c] sm:$0xf]
  %v209 = vld [vmem:[%s186 + $0x60] sm:$0xf]
  %v210 = vld [vmem:[%s186 + $0x64] sm:$0xf]
  %v211 = vld [vmem:[%s186 + $0x6c] sm:$0xf]
  %v212 = vld [vmem:[%s186 + $0x70] sm:$0xf]
  %v213 = vld [vmem:[%s186 + $0x74] sm:$0xf]
  %v214 = vld [vmem:[%s186 + $0x78] sm:$0xf]
  %v215 = vld [vmem:[%s186 + $0x7c] sm:$0xf]
  %v216 = vld [vmem:[%s186 + $0x80] sm:$0xf]
  %v217 = vld [vmem:[%s186 + $0x84] sm:$0xf]
  %v218 = vld [vmem:[%s186 + $0x88] sm:$0xf]
  %v219 = vld [vmem:[%s186 + $0x90] sm:$0xf]
  %v220 = vld [vmem:[%s186 + $0x94] sm:$0xf]
  %v221 = vld [vmem:[%s186 + $0x98] sm:$0xf]
  %v222 = vld [vmem:[%s186 + $0x9c] sm:$0xf]
  %v223 = vld [vmem:[%s186 + $0xa0] sm:$0xf]
  %v224 = vld [vmem:[%s186 + $0xa4] sm:$0xf]
  %v225 = vld [vmem:[%s186 + $0xa8] sm:$0xf]
  %v226 = vld [vmem:[%s186 + $0xac] sm:$0xf]
  %v227 = vld [vmem:[%s186 + $0xb4] sm:$0xf]
  %v228 = vld [vmem:[%s186 + $0xb8] sm:$0xf]
  %v229 = vld [vmem:[%s186 + $0xbc] sm:$0xf]
  %v230 = vld [vmem:[%s186 + $0xc0] sm:$0xf]
  %v231 = vld [vmem:[%s186 + $0xc4] sm:$0xf]
  %v232 = vld [vmem:[%s186 + $0xc8] sm:$0xf]
  %v233 = vld [vmem:[%s186 + $0xcc] sm:$0xf]
  %v234 = vld [vmem:[%s186 + $0xd0] sm:$0xf]
  %v235 = vld [vmem:[%s186 + $0xd8] sm:$0xf]
  %v236 = vld [vmem:[%s186 + $0xdc] sm:$0xf]
  %v237 = vld [vmem:[%s186 + $0xe0] sm:$0xf]
  %v238 = vld [vmem:[%s186 + $0xe4] sm:$0xf]
  %v239 = vld [vmem:[%s186 + $0xe8] sm:$0xf]
  %v240 = vld [vmem:[%s186 + $0xec] sm:$0xf]
  %v241 = vld [vmem:[%s186 + $0xf0] sm:$0xf]
  %v242 = vld [vmem:[%s186 + $0xf4] sm:$0xf]
  %v243 = vld [vmem:[%s186 + $0xfc] sm:$0xf]
  %v244 = vld [vmem:[%s186 + $0x100] sm:$0xf]
  %v245 = vld [vmem:[%s186 + $0x104] sm:$0xf]
  %v246 = vld [vmem:[%s186 + $0x108] sm:$0xf]
  %v247 = vld [vmem:[%s186 + $0x10c] sm:$0xf]
  %v248 = vld [vmem:[%s186 + $0x110] sm:$0xf]
  %v249 = vld [vmem:[%s186 + $0x114] sm:$0xf]
  %v250 = vld [vmem:[%s186 + $0x118] sm:$0xf]
  %v251 = vld [vmem:[%s1 + $0x10] sm:$0xf]
  %v252 = vld [vmem:[%s1 + $0x14] sm:$0xf]
  %v253 = vld [vmem:[%s1 + $0x18] sm:$0xf]
  %v254 = vld [vmem:[%s1 + $0x1c] sm:$0xf]
  %v319 = vunpack.c.l.b16 %v187
  %v320 = vunpack.c.l.b16 %v188
  %v321 = vunpack.c.l.b16 %v189
  %v322 = vunpack.c.l.b16 %v190
  %v323 = vunpack.c.l.b16 %v191
  %v324 = vunpack.c.l.b16 %v192
  %v325 = vunpack.c.l.b16 %v193
  %v326 = vunpack.c.l.b16 %v194
  %v327 = vunpack.c.l.b16 %v195
  %v328 = vunpack.c.l.b16 %v196
  %v329 = vunpack.c.l.b16 %v197
  %v330 = vunpack.c.l.b16 %v198
  %v331 = vunpack.c.l.b16 %v199
  %v332 = vunpack.c.l.b16 %v200
  %v333 = vunpack.c.l.b16 %v201
  %v334 = vunpack.c.l.b16 %v202
  %v335 = vunpack.c.l.b16 %v203
  %v336 = vunpack.c.l.b16 %v204
  %v337 = vunpack.c.l.b16 %v205
  %v338 = vunpack.c.l.b16 %v206
  %v339 = vunpack.c.l.b16 %v207
  %v340 = vunpack.c.l.b16 %v208
  %v341 = vunpack.c.l.b16 %v209
  %v342 = vunpack.c.l.b16 %v210
  %v343 = vunpack.c.l.b16 %v211
  %v344 = vunpack.c.l.b16 %v212
  %v345 = vunpack.c.l.b16 %v213
  %v346 = vunpack.c.l.b16 %v214
  %v347 = vunpack.c.l.b16 %v215
  %v348 = vunpack.c.l.b16 %v216
  %v349 = vunpack.c.l.b16 %v217
  %v350 = vunpack.c.l.b16 %v218
  %v351 = vunpack.c.l.b16 %v219
  %v352 = vunpack.c.l.b16 %v220
  %v353 = vunpack.c.l.b16 %v221
  %v354 = vunpack.c.l.b16 %v222
  %v355 = vunpack.c.l.b16 %v223
  %v356 = vunpack.c.l.b16 %v224
  %v357 = vunpack.c.l.b16 %v225
  %v358 = vunpack.c.l.b16 %v226
  %v359 = vunpack.c.l.b16 %v227
  %v360 = vunpack.c.l.b16 %v228
  %v361 = vunpack.c.l.b16 %v229
  %v362 = vunpack.c.l.b16 %v230
  %v363 = vunpack.c.l.b16 %v231
  %v364 = vunpack.c.l.b16 %v232
  %v365 = vunpack.c.l.b16 %v233
  %v366 = vunpack.c.l.b16 %v234
  %v367 = vunpack.c.l.b16 %v235
  %v368 = vunpack.c.l.b16 %v236
  %v369 = vunpack.c.l.b16 %v237
  %v370 = vunpack.c.l.b16 %v238
  %v371 = vunpack.c.l.b16 %v239
  %v372 = vunpack.c.l.b16 %v240
  %v373 = vunpack.c.l.b16 %v241
  %v374 = vunpack.c.l.b16 %v242
  %v375 = vunpack.c.l.b16 %v243
  %v376 = vunpack.c.l.b16 %v244
  %v377 = vunpack.c.l.b16 %v245
  %v378 = vunpack.c.l.b16 %v246
  %v379 = vunpack.c.l.b16 %v247
  %v380 = vunpack.c.l.b16 %v248
  %v381 = vunpack.c.l.b16 %v249
  %v382 = vunpack.c.l.b16 %v250
  %v383 = vpack.c.b16 %v320, %v319
  %v384 = vpack.c.b16 %v322, %v321
  %v385 = vpack.c.b16 %v324, %v323
  %v386 = vpack.c.b16 %v326, %v325
  %v387 = vpack.c.b16 %v328, %v327
  %v388 = vpack.c.b16 %v330, %v329
  %v389 = vpack.c.b16 %v332, %v331
  %v390 = vpack.c.b16 %v334, %v333
  %v391 = vpack.c.b16 %v336, %v335
  %v392 = vpack.c.b16 %v338, %v337
  %v393 = vpack.c.b16 %v340, %v339
  %v394 = vpack.c.b16 %v342, %v341
  %v395 = vpack.c.b16 %v344, %v343
  %v396 = vpack.c.b16 %v346, %v345
  %v397 = vpack.c.b16 %v348, %v347
  %v398 = vpack.c.b16 %v350, %v349
  %v399 = vpack.c.b16 %v352, %v351
  %v400 = vpack.c.b16 %v354, %v353
  %v401 = vpack.c.b16 %v356, %v355
  %v402 = vpack.c.b16 %v358, %v357
  %v403 = vpack.c.b16 %v360, %v359
  %v404 = vpack.c.b16 %v362, %v361
  %v405 = vpack.c.b16 %v364, %v363
  %v406 = vpack.c.b16 %v366, %v365
  %v407 = vpack.c.b16 %v368, %v367
  %v408 = vpack.c.b16 %v370, %v369
  %v409 = vpack.c.b16 %v372, %v371
  %v410 = vpack.c.b16 %v374, %v373
  %v411 = vpack.c.b16 %v376, %v375
  %v412 = vpack.c.b16 %v378, %v377
  %v413 = vpack.c.b16 %v380, %v379
  %v414 = vpack.c.b16 %v382, %v381
  %v419 = vunpack.c.l.b16 %v251
  %v420 = vunpack.c.l.b16 %v252
  %v421 = vunpack.c.l.b16 %v253
  %v422 = vunpack.c.l.b16 %v254
  %v423 = vpack.c.b16 %v420, %v419
  %v424 = vpack.c.b16 %v422, %v421
  %vm427 = vcmask 261120
  %v429 = vsel %vm427, %v383, 0
  %v432 = vsel %vm427, %v384, 0
  %v435 = vsel %vm427, %v385, 0
  %v438 = vsel %vm427, %v386, 0
  %v441 = vsel %vm427, %v387, 0
  %v444 = vsel %vm427, %v388, 0
  %v447 = vsel %vm427, %v389, 0
  %v450 = vsel %vm427, %v390, 0
  %v453 = vsel %vm427, %v391, 0
  %v456 = vsel %vm427, %v392, 0
  %v459 = vsel %vm427, %v393, 0
  %v462 = vsel %vm427, %v394, 0
  %v465 = vsel %vm427, %v395, 0
  %v468 = vsel %vm427, %v396, 0
  %v471 = vsel %vm427, %v397, 0
  %v474 = vsel %vm427, %v398, 0
  %v477 = vsel %vm427, %v399, 0
  %v480 = vsel %vm427, %v400, 0
  %v483 = vsel %vm427, %v401, 0
  %v486 = vsel %vm427, %v402, 0
  %v489 = vsel %vm427, %v403, 0
  %v492 = vsel %vm427, %v404, 0
  %v495 = vsel %vm427, %v405, 0
  %v498 = vsel %vm427, %v406, 0
  %v501 = vsel %vm427, %v407, 0
  %v504 = vsel %vm427, %v408, 0
  %v507 = vsel %vm427, %v409, 0
  %v510 = vsel %vm427, %v410, 0
  %v513 = vsel %vm427, %v411, 0
  %v516 = vsel %vm427, %v412, 0
  %v519 = vsel %vm427, %v413, 0
  %v522 = vsel %vm427, %v414, 0
  %524 = vmatprep.subr.bf16.mxu0 0
  %525 = vmatpush1.bf16.msra.mxu0 %v423
  %526 = vmatprep.subr.bf16.mxu0 0
  %527 = vmatpush1.bf16.msra.mxu0 %v424
  %528 = vmatprep.subr.bf16.mxu0 0
  %529 = vmatpush1.bf16.msra.mxu0 0
  %530 = vmatprep.subr.bf16.mxu0 0
  %531 = vmatpush1.bf16.msra.mxu0 0
  %532 = vmatprep.subr.bf16.mxu0 0
  %533 = vmatpush1.bf16.msra.mxu0 0
  %534 = vmatprep.subr.bf16.mxu0 0
  %535 = vmatpush1.bf16.msra.mxu0 0
  %536 = vmatprep.subr.bf16.mxu0 0
  %537 = vmatpush1.bf16.msra.mxu0 0
  %538 = vmatprep.subr.bf16.mxu0 0
  %539 = vmatpush1.bf16.msra.mxu0 0
  %540 = vmatprep.subr.bf16.mxu0 0
  %541 = vmatpush1.bf16.msra.mxu0 0
  %542 = vmatprep.subr.bf16.mxu0 0
  %543 = vmatpush1.bf16.msra.mxu0 0
  %544 = vmatprep.subr.bf16.mxu0 0
  %545 = vmatpush1.bf16.msra.mxu0 0
  %546 = vmatprep.subr.bf16.mxu0 0
  %547 = vmatpush1.bf16.msra.mxu0 0
  %548 = vmatprep.subr.bf16.mxu0 0
  %549 = vmatpush1.bf16.msra.mxu0 0
  %550 = vmatprep.subr.bf16.mxu0 0
  %551 = vmatpush1.bf16.msra.mxu0 0
  %552 = vmatprep.subr.bf16.mxu0 0
  %553 = vmatpush1.bf16.msra.mxu0 0
  %554 = vmatprep.subr.bf16.mxu0 0
  %555 = vmatpush1.bf16.msra.mxu0 0
  %556 = vmatprep.mubr.bf16.mxu0 0
  %557 = vmatmul.mubr.bf16.gmra.mrb[0].mxu0 %v429
  %v558 = vpop.f32.mrb[0].mxu0
  %v559 = vadd.f32 0.0, %v558
  %v560 = vpop.f32.mrb[0].mxu0
  %v561 = vpop.f32.mrb[0].mxu0
  %v562 = vadd.f32 0.0, %v561
  %v563 = vpop.f32.mrb[0].mxu0
  %564 = vmatprep.mubr.bf16.mxu0 0
  %565 = vmatmul.mubr.bf16.gmra.mrb[0].mxu0 %v432
  %v566 = vpop.f32.mrb[0].mxu0
  %v567 = vadd.f32 0.0, %v566
  %v568 = vpop.f32.mrb[0].mxu0
  %v569 = vpop.f32.mrb[0].mxu0
  %v570 = vadd.f32 0.0, %v569
  %v571 = vpop.f32.mrb[0].mxu0
  %572 = vmatprep.mubr.bf16.mxu0 0
  %573 = vmatmul.mubr.bf16.gmra.mrb[0].mxu0 %v435
  %v574 = vpop.f32.mrb[0].mxu0
  %v575 = vadd.f32 0.0, %v574
  %v576 = vpop.f32.mrb[0].mxu0
  %v577 = vpop.f32.mrb[0].mxu0
  %v578 = vadd.f32 0.0, %v577
  %v579 = vpop.f32.mrb[0].mxu0
  %580 = vmatprep.mubr.bf16.mxu0 0
  %581 = vmatmul.mubr.bf16.gmra.mrb[0].mxu0 %v438
  %v582 = vpop.f32.mrb[0].mxu0
  %v583 = vadd.f32 0.0, %v582
  %v584 = vpop.f32.mrb[0].mxu0
  %v585 = vpop.f32.mrb[0].mxu0
  %v586 = vadd.f32 0.0, %v585
  %v587 = vpop.f32.mrb[0].mxu0
  %588 = vmatprep.mubr.bf16.mxu0 0
  %589 = vmatmul.mubr.bf16.gmra.mrb[0].mxu0 %v441
  %v590 = vpop.f32.mrb[0].mxu0
  %v591 = vadd.f32 0.0, %v590
  %v592 = vpop.f32.mrb[0].mxu0
  %v593 = vpop.f32.mrb[0].mxu0
  %v594 = vadd.f32 0.0, %v593
  %v595 = vpop.f32.mrb[0].mxu0
  %596 = vmatprep.mubr.bf16.mxu0 0
  %597 = vmatmul.mubr.bf16.gmra.mrb[0].mxu0 %v444
  %v598 = vpop.f32.mrb[0].mxu0
  %v599 = vadd.f32 0.0, %v598
  %v600 = vpop.f32.mrb[0].mxu0
  %v601 = vpop.f32.mrb[0].mxu0
  %v602 = vadd.f32 0.0, %v601
  %v603 = vpop.f32.mrb[0].mxu0
  %604 = vmatprep.mubr.bf16.mxu0 0
  %605 = vmatmul.mubr.bf16.gmra.mrb[0].mxu0 %v447
  %v606 = vpop.f32.mrb[0].mxu0
  %v607 = vadd.f32 0.0, %v606
  %v608 = vpop.f32.mrb[0].mxu0
  %v609 = vpop.f32.mrb[0].mxu0
  %v610 = vadd.f32 0.0, %v609
  %v611 = vpop.f32.mrb[0].mxu0
  %612 = vmatprep.mubr.bf16.mxu0 0
  %613 = vmatmul.mubr.bf16.gmra.mrb[0].mxu0 %v450
  %v614 = vpop.f32.mrb[0].mxu0
  %v615 = vadd.f32 0.0, %v614
  %v616 = vpop.f32.mrb[0].mxu0
  %v617 = vpop.f32.mrb[0].mxu0
  %v618 = vadd.f32 0.0, %v617
  %v619 = vpop.f32.mrb[0].mxu0
  %620 = vmatprep.mubr.bf16.mxu0 0
  %621 = vmatmul.mubr.bf16.gmra.mrb[0].mxu0 %v453
  %v622 = vpop.f32.mrb[0].mxu0
  %v623 = vadd.f32 0.0, %v622
  %v624 = vpop.f32.mrb[0].mxu0
  %v625 = vpop.f32.mrb[0].mxu0
  %v626 = vadd.f32 0.0, %v625
  %v627 = vpop.f32.mrb[0].mxu0
  %628 = vmatprep.mubr.bf16.mxu0 0
  %629 = vmatmul.mubr.bf16.gmra.mrb[0].mxu0 %v456
  %v630 = vpop.f32.mrb[0].mxu0
  %v631 = vadd.f32 0.0, %v630
  %v632 = vpop.f32.mrb[0].mxu0
  %v633 = vpop.f32.mrb[0].mxu0
  %v634 = vadd.f32 0.0, %v633
  %v635 = vpop.f32.mrb[0].mxu0
  %636 = vmatprep.mubr.bf16.mxu0 0
  %637 = vmatmul.mubr.bf16.gmra.mrb[0].mxu0 %v459
  %v638 = vpop.f32.mrb[0].mxu0
  %v639 = vadd.f32 0.0, %v638
  %v640 = vpop.f32.mrb[0].mxu0
  %v641 = vpop.f32.mrb[0].mxu0
  %v642 = vadd.f32 0.0, %v641
  %v643 = vpop.f32.mrb[0].mxu0
  %644 = vmatprep.mubr.bf16.mxu0 0
  %645 = vmatmul.mubr.bf16.gmra.mrb[0].mxu0 %v462
  %v646 = vpop.f32.mrb[0].mxu0
  %v647 = vadd.f32 0.0, %v646
  %v648 = vpop.f32.mrb[0].mxu0
  %v649 = vpop.f32.mrb[0].mxu0
  %v650 = vadd.f32 0.0, %v649
  %v651 = vpop.f32.mrb[0].mxu0
  %652 = vmatprep.mubr.bf16.mxu0 0
  %653 = vmatmul.mubr.bf16.gmra.mrb[0].mxu0 %v465
  %v654 = vpop.f32.mrb[0].mxu0
  %v655 = vadd.f32 0.0, %v654
  %v656 = vpop.f32.mrb[0].mxu0
  %v657 = vpop.f32.mrb[0].mxu0
  %v658 = vadd.f32 0.0, %v657
  %v659 = vpop.f32.mrb[0].mxu0
  %660 = vmatprep.mubr.bf16.mxu0 0
  %661 = vmatmul.mubr.bf16.gmra.mrb[0].mxu0 %v468
  %v662 = vpop.f32.mrb[0].mxu0
  %v663 = vadd.f32 0.0, %v662
  %v664 = vpop.f32.mrb[0].mxu0
  %v665 = vpop.f32.mrb[0].mxu0
  %v666 = vadd.f32 0.0, %v665
  %v667 = vpop.f32.mrb[0].mxu0
  %668 = vmatprep.mubr.bf16.mxu0 0
  %669 = vmatmul.mubr.bf16.gmra.mrb[0].mxu0 %v471
  %v670 = vpop.f32.mrb[0].mxu0
  %v671 = vadd.f32 0.0, %v670
  %v672 = vpop.f32.mrb[0].mxu0
  %v673 = vpop.f32.mrb[0].mxu0
  %v674 = vadd.f32 0.0, %v673
  %v675 = vpop.f32.mrb[0].mxu0
  %676 = vmatprep.mubr.bf16.mxu0 0
  %677 = vmatmul.mubr.bf16.gmra.mrb[0].mxu0 %v474
  %v678 = vpop.f32.mrb[0].mxu0
  %v679 = vadd.f32 0.0, %v678
  %v680 = vpop.f32.mrb[0].mxu0
  %v681 = vpop.f32.mrb[0].mxu0
  %v682 = vadd.f32 0.0, %v681
  %v683 = vpop.f32.mrb[0].mxu0
  %684 = vmatprep.mubr.bf16.mxu0 0
  %685 = vmatmul.mubr.bf16.gmra.mrb[0].mxu0 %v477
  %v686 = vpop.f32.mrb[0].mxu0
  %v687 = vadd.f32 0.0, %v686
  %v688 = vpop.f32.mrb[0].mxu0
  %v689 = vpop.f32.mrb[0].mxu0
  %v690 = vadd.f32 0.0, %v689
  %v691 = vpop.f32.mrb[0].mxu0
  %692 = vmatprep.mubr.bf16.mxu0 0
  %693 = vmatmul.mubr.bf16.gmra.mrb[0].mxu0 %v480
  %v694 = vpop.f32.mrb[0].mxu0
  %v695 = vadd.f32 0.0, %v694
  %v696 = vpop.f32.mrb[0].mxu0
  %v697 = vpop.f32.mrb[0].mxu0
  %v698 = vadd.f32 0.0, %v697
  %v699 = vpop.f32.mrb[0].mxu0
  %700 = vmatprep.mubr.bf16.mxu0 0
  %701 = vmatmul.mubr.bf16.gmra.mrb[0].mxu0 %v483
  %v702 = vpop.f32.mrb[0].mxu0
  %v703 = vadd.f32 0.0, %v702
  %v704 = vpop.f32.mrb[0].mxu0
  %v705 = vpop.f32.mrb[0].mxu0
  %v706 = vadd.f32 0.0, %v705
  %v707 = vpop.f32.mrb[0].mxu0
  %708 = vmatprep.mubr.bf16.mxu0 0
  %709 = vmatmul.mubr.bf16.gmra.mrb[0].mxu0 %v486
  %v710 = vpop.f32.mrb[0].mxu0
  %v711 = vadd.f32 0.0, %v710
  %v712 = vpop.f32.mrb[0].mxu0
  %v713 = vpop.f32.mrb[0].mxu0
  %v714 = vadd.f32 0.0, %v713
  %v715 = vpop.f32.mrb[0].mxu0
  %716 = vmatprep.mubr.bf16.mxu0 0
  %717 = vmatmul.mubr.bf16.gmra.mrb[0].mxu0 %v489
  %v718 = vpop.f32.mrb[0].mxu0
  %v719 = vadd.f32 0.0, %v718
  %v720 = vpop.f32.mrb[0].mxu0
  %v721 = vpop.f32.mrb[0].mxu0
  %v722 = vadd.f32 0.0, %v721
  %v723 = vpop.f32.mrb[0].mxu0
  %724 = vmatprep.mubr.bf16.mxu0 0
  %725 = vmatmul.mubr.bf16.gmra.mrb[0].mxu0 %v492
  %v726 = vpop.f32.mrb[0].mxu0
  %v727 = vadd.f32 0.0, %v726
  %v728 = vpop.f32.mrb[0].mxu0
  %v729 = vpop.f32.mrb[0].mxu0
  %v730 = vadd.f32 0.0, %v729
  %v731 = vpop.f32.mrb[0].mxu0
  %732 = vmatprep.mubr.bf16.mxu0 0
  %733 = vmatmul.mubr.bf16.gmra.mrb[0].mxu0 %v495
  %v734 = vpop.f32.mrb[0].mxu0
  %v735 = vadd.f32 0.0, %v734
  %v736 = vpop.f32.mrb[0].mxu0
  %v737 = vpop.f32.mrb[0].mxu0
  %v738 = vadd.f32 0.0, %v737
  %v739 = vpop.f32.mrb[0].mxu0
  %740 = vmatprep.mubr.bf16.mxu0 0
  %741 = vmatmul.mubr.bf16.gmra.mrb[0].mxu0 %v498
  %v742 = vpop.f32.mrb[0].mxu0
  %v743 = vadd.f32 0.0, %v742
  %v744 = vpop.f32.mrb[0].mxu0
  %v745 = vpop.f32.mrb[0].mxu0
  %v746 = vadd.f32 0.0, %v745
  %v747 = vpop.f32.mrb[0].mxu0
  %748 = vmatprep.mubr.bf16.mxu0 0
  %749 = vmatmul.mubr.bf16.gmra.mrb[0].mxu0 %v501
  %v750 = vpop.f32.mrb[0].mxu0
  %v751 = vadd.f32 0.0, %v750
  %v752 = vpop.f32.mrb[0].mxu0
  %v753 = vpop.f32.mrb[0].mxu0
  %v754 = vadd.f32 0.0, %v753
  %v755 = vpop.f32.mrb[0].mxu0
  %756 = vmatprep.mubr.bf16.mxu0 0
  %757 = vmatmul.mubr.bf16.gmra.mrb[0].mxu0 %v504
  %v758 = vpop.f32.mrb[0].mxu0
  %v759 = vadd.f32 0.0, %v758
  %v760 = vpop.f32.mrb[0].mxu0
  %v761 = vpop.f32.mrb[0].mxu0
  %v762 = vadd.f32 0.0, %v761
  %v763 = vpop.f32.mrb[0].mxu0
  %764 = vmatprep.mubr.bf16.mxu0 0
  %765 = vmatmul.mubr.bf16.gmra.mrb[0].mxu0 %v507
  %v766 = vpop.f32.mrb[0].mxu0
  %v767 = vadd.f32 0.0, %v766
  %v768 = vpop.f32.mrb[0].mxu0
  %v769 = vpop.f32.mrb[0].mxu0
  %v770 = vadd.f32 0.0, %v769
  %v771 = vpop.f32.mrb[0].mxu0
  %772 = vmatprep.mubr.bf16.mxu0 0
  %773 = vmatmul.mubr.bf16.gmra.mrb[0].mxu0 %v510
  %v774 = vpop.f32.mrb[0].mxu0
  %v775 = vadd.f32 0.0, %v774
  %v776 = vpop.f32.mrb[0].mxu0
  %v777 = vpop.f32.mrb[0].mxu0
  %v778 = vadd.f32 0.0, %v777
  %v779 = vpop.f32.mrb[0].mxu0
  %780 = vmatprep.mubr.bf16.mxu0 0
  %781 = vmatmul.mubr.bf16.gmra.mrb[0].mxu0 %v513
  %v782 = vpop.f32.mrb[0].mxu0
  %v783 = vadd.f32 0.0, %v782
  %v784 = vpop.f32.mrb[0].mxu0
  %v785 = vpop.f32.mrb[0].mxu0
  %v786 = vadd.f32 0.0, %v785
  %v787 = vpop.f32.mrb[0].mxu0
  %788 = vmatprep.mubr.bf16.mxu0 0
  %789 = vmatmul.mubr.bf16.gmra.mrb[0].mxu0 %v516
  %v790 = vpop.f32.mrb[0].mxu0
  %v791 = vadd.f32 0.0, %v790
  %v792 = vpop.f32.mrb[0].mxu0
  %v793 = vpop.f32.mrb[0].mxu0
  %v794 = vadd.f32 0.0, %v793
  %v795 = vpop.f32.mrb[0].mxu0
  %796 = vmatprep.mubr.bf16.mxu0 0
  %797 = vmatmul.mubr.bf16.gmra.mrb[0].mxu0 %v519
  %v798 = vpop.f32.mrb[0].mxu0
  %v799 = vadd.f32 0.0, %v798
  %v800 = vpop.f32.mrb[0].mxu0
  %v801 = vpop.f32.mrb[0].mxu0
  %v802 = vadd.f32 0.0, %v801
  %v803 = vpop.f32.mrb[0].mxu0
  %804 = vmatprep.mubr.bf16.mxu0 0
  %805 = vmatmul.mubr.bf16.gmra.mrb[0].mxu0 %v522
  %v806 = vpop.f32.mrb[0].mxu0
  %v807 = vadd.f32 0.0, %v806
  %v808 = vpop.f32.mrb[0].mxu0
  %v809 = vpop.f32.mrb[0].mxu0
  %v810 = vadd.f32 0.0, %v809
  %v811 = vpop.f32.mrb[0].mxu0
  %812 = vdwg.mxu0
  %v877 = vunpack.c.l.b16 %v118
  %v878 = vunpack.c.l.b16 %v119
  %v879 = vunpack.c.l.b16 %v120
  %v880 = vunpack.c.l.b16 %v121
  %v881 = vunpack.c.l.b16 %v122
  %v882 = vunpack.c.l.b16 %v123
  %v883 = vunpack.c.l.b16 %v124
  %v884 = vunpack.c.l.b16 %v125
  %v885 = vunpack.c.l.b16 %v126
  %v886 = vunpack.c.l.b16 %v127
  %v887 = vunpack.c.l.b16 %v128
  %v888 = vunpack.c.l.b16 %v129
  %v889 = vunpack.c.l.b16 %v130
  %v890 = vunpack.c.l.b16 %v131
  %v891 = vunpack.c.l.b16 %v132
  %v892 = vunpack.c.l.b16 %v133
  %v893 = vunpack.c.l.b16 %v134
  %v894 = vunpack.c.l.b16 %v135
  %v895 = vunpack.c.l.b16 %v136
  %v896 = vunpack.c.l.b16 %v137
  %v897 = vunpack.c.l.b16 %v138
  %v898 = vunpack.c.l.b16 %v139
  %v899 = vunpack.c.l.b16 %v140
  %v900 = vunpack.c.l.b16 %v141
  %v901 = vunpack.c.l.b16 %v142
  %v902 = vunpack.c.l.b16 %v143
  %v903 = vunpack.c.l.b16 %v144
  %v904 = vunpack.c.l.b16 %v145
  %v905 = vunpack.c.l.b16 %v146
  %v906 = vunpack.c.l.b16 %v147
  %v907 = vunpack.c.l.b16 %v148
  %v908 = vunpack.c.l.b16 %v149
  %v909 = vunpack.c.l.b16 %v150
  %v910 = vunpack.c.l.b16 %v151
  %v911 = vunpack.c.l.b16 %v152
  %v912 = vunpack.c.l.b16 %v153
  %v913 = vunpack.c.l.b16 %v154
  %v914 = vunpack.c.l.b16 %v155
  %v915 = vunpack.c.l.b16 %v156
  %v916 = vunpack.c.l.b16 %v157
  %v917 = vunpack.c.l.b16 %v158
  %v918 = vunpack.c.l.b16 %v159
  %v919 = vunpack.c.l.b16 %v160
  %v920 = vunpack.c.l.b16 %v161
  %v921 = vunpack.c.l.b16 %v162
  %v922 = vunpack.c.l.b16 %v163
  %v923 = vunpack.c.l.b16 %v164
  %v924 = vunpack.c.l.b16 %v165
  %v925 = vunpack.c.l.b16 %v166
  %v926 = vunpack.c.l.b16 %v167
  %v927 = vunpack.c.l.b16 %v168
  %v928 = vunpack.c.l.b16 %v169
  %v929 = vunpack.c.l.b16 %v170
  %v930 = vunpack.c.l.b16 %v171
  %v931 = vunpack.c.l.b16 %v172
  %v932 = vunpack.c.l.b16 %v173
  %v933 = vunpack.c.l.b16 %v174
  %v934 = vunpack.c.l.b16 %v175
  %v935 = vunpack.c.l.b16 %v176
  %v936 = vunpack.c.l.b16 %v177
  %v937 = vunpack.c.l.b16 %v178
  %v938 = vunpack.c.l.b16 %v179
  %v939 = vunpack.c.l.b16 %v180
  %v940 = vunpack.c.l.b16 %v181
  %v941 = vpack.c.b16 %v878, %v877
  %v942 = vpack.c.b16 %v880, %v879
  %v943 = vpack.c.b16 %v882, %v881
  %v944 = vpack.c.b16 %v884, %v883
  %v945 = vpack.c.b16 %v886, %v885
  %v946 = vpack.c.b16 %v888, %v887
  %v947 = vpack.c.b16 %v890, %v889
  %v948 = vpack.c.b16 %v892, %v891
  %v949 = vpack.c.b16 %v894, %v893
  %v950 = vpack.c.b16 %v896, %v895
  %v951 = vpack.c.b16 %v898, %v897
  %v952 = vpack.c.b16 %v900, %v899
  %v953 = vpack.c.b16 %v902, %v901
  %v954 = vpack.c.b16 %v904, %v903
  %v955 = vpack.c.b16 %v906, %v905
  %v956 = vpack.c.b16 %v908, %v907
  %v957 = vpack.c.b16 %v910, %v909
  %v958 = vpack.c.b16 %v912, %v911
  %v959 = vpack.c.b16 %v914, %v913
  %v960 = vpack.c.b16 %v916, %v915
  %v961 = vpack.c.b16 %v918, %v917
  %v962 = vpack.c.b16 %v920, %v919
  %v963 = vpack.c.b16 %v922, %v921
  %v964 = vpack.c.b16 %v924, %v923
  %v965 = vpack.c.b16 %v926, %v925
  %v966 = vpack.c.b16 %v928, %v927
  %v967 = vpack.c.b16 %v930, %v929
  %v968 = vpack.c.b16 %v932, %v931
  %v969 = vpack.c.b16 %v934, %v933
  %v970 = vpack.c.b16 %v936, %v935
  %v971 = vpack.c.b16 %v938, %v937
  %v972 = vpack.c.b16 %v940, %v939
  %v977 = vunpack.c.l.b16 %v182
  %v978 = vunpack.c.l.b16 %v183
  %v979 = vunpack.c.l.b16 %v184
  %v980 = vunpack.c.l.b16 %v185
  %v981 = vpack.c.b16 %v978, %v977
  %v982 = vpack.c.b16 %v980, %v979
  %v986 = vsel %vm427, %v941, 0
  %v989 = vsel %vm427, %v942, 0
  %v992 = vsel %vm427, %v943, 0
  %v995 = vsel %vm427, %v944, 0
  %v998 = vsel %vm427, %v945, 0
  %v1001 = vsel %vm427, %v946, 0
  %v1004 = vsel %vm427, %v947, 0
  %v1007 = vsel %vm427, %v948, 0
  %v1010 = vsel %vm427, %v949, 0
  %v1013 = vsel %vm427, %v950, 0
  %v1016 = vsel %vm427, %v951, 0
  %v1019 = vsel %vm427, %v952, 0
  %v1022 = vsel %vm427, %v953, 0
  %v1025 = vsel %vm427, %v954, 0
  %v1028 = vsel %vm427, %v955, 0
  %v1031 = vsel %vm427, %v956, 0
  %v1034 = vsel %vm427, %v957, 0
  %v1037 = vsel %vm427, %v958, 0
  %v1040 = vsel %vm427, %v959, 0
  %v1043 = vsel %vm427, %v960, 0
  %v1046 = vsel %vm427, %v961, 0
  %v1049 = vsel %vm427, %v962, 0
  %v1052 = vsel %vm427, %v963, 0
  %v1055 = vsel %vm427, %v964, 0
  %v1058 = vsel %vm427, %v965, 0
  %v1061 = vsel %vm427, %v966, 0
  %v1064 = vsel %vm427, %v967, 0
  %v1067 = vsel %vm427, %v968, 0
  %v1070 = vsel %vm427, %v969, 0
  %v1073 = vsel %vm427, %v970, 0
  %v1076 = vsel %vm427, %v971, 0
  %v1079 = vsel %vm427, %v972, 0
  %1081 = vmatprep.subr.bf16.mxu0 0
  %1082 = vmatpush1.bf16.msra.mxu0 %v981
  %1083 = vmatprep.subr.bf16.mxu0 0
  %1084 = vmatpush1.bf16.msra.mxu0 %v982
  %1085 = vmatprep.subr.bf16.mxu0 0
  %1086 = vmatpush1.bf16.msra.mxu0 0
  %1087 = vmatprep.subr.bf16.mxu0 0
  %1088 = vmatpush1.bf16.msra.mxu0 0
  %1089 = vmatprep.subr.bf16.mxu0 0
  %1090 = vmatpush1.bf16.msra.mxu0 0
  %1091 = vmatprep.subr.bf16.mxu0 0
  %1092 = vmatpush1.bf16.msra.mxu0 0
  %1093 = vmatprep.subr.bf16.mxu0 0
  %1094 = vmatpush1.bf16.msra.mxu0 0
  %1095 = vmatprep.subr.bf16.mxu0 0
  %1096 = vmatpush1.bf16.msra.mxu0 0
  %1097 = vmatprep.subr.bf16.mxu0 0
  %1098 = vmatpush1.bf16.msra.mxu0 0
  %1099 = vmatprep.subr.bf16.mxu0 0
  %1100 = vmatpush1.bf16.msra.mxu0 0
  %1101 = vmatprep.subr.bf16.mxu0 0
  %1102 = vmatpush1.bf16.msra.mxu0 0
  %1103 = vmatprep.subr.bf16.mxu0 0
  %1104 = vmatpush1.bf16.msra.mxu0 0
  %1105 = vmatprep.subr.bf16.mxu0 0
  %1106 = vmatpush1.bf16.msra.mxu0 0
  %1107 = vmatprep.subr.bf16.mxu0 0
  %1108 = vmatpush1.bf16.msra.mxu0 0
  %1109 = vmatprep.subr.bf16.mxu0 0
  %1110 = vmatpush1.bf16.msra.mxu0 0
  %1111 = vmatprep.subr.bf16.mxu0 0
  %1112 = vmatpush1.bf16.msra.mxu0 0
  %1113 = vmatprep.mubr.bf16.mxu0 0
  %1114 = vmatmul.mubr.bf16.gmra.mrb[0].mxu0 %v986
  %v1115 = vpop.f32.mrb[0].mxu0
  %v1116 = vadd.f32 %v559, %v1115
  %v1117 = vpop.f32.mrb[0].mxu0
  %v1118 = vpop.f32.mrb[0].mxu0
  %v1119 = vadd.f32 %v562, %v1118
  %v1120 = vpop.f32.mrb[0].mxu0
  %1121 = vmatprep.mubr.bf16.mxu0 0
  %1122 = vmatmul.mubr.bf16.gmra.mrb[0].mxu0 %v989
  %v1123 = vpop.f32.mrb[0].mxu0
  %v1124 = vadd.f32 %v567, %v1123
  %v1125 = vpop.f32.mrb[0].mxu0
  %v1126 = vpop.f32.mrb[0].mxu0
  %v1127 = vadd.f32 %v570, %v1126
  %v1128 = vpop.f32.mrb[0].mxu0
  %1129 = vmatprep.mubr.bf16.mxu0 0
  %1130 = vmatmul.mubr.bf16.gmra.mrb[0].mxu0 %v992
  %v1131 = vpop.f32.mrb[0].mxu0
  %v1132 = vadd.f32 %v575, %v1131
  %v1133 = vpop.f32.mrb[0].mxu0
  %v1134 = vpop.f32.mrb[0].mxu0
  %v1135 = vadd.f32 %v578, %v1134
  %v1136 = vpop.f32.mrb[0].mxu0
  %1137 = vmatprep.mubr.bf16.mxu0 0
  %1138 = vmatmul.mubr.bf16.gmra.mrb[0].mxu0 %v995
  %v1139 = vpop.f32.mrb[0].mxu0
  %v1140 = vadd.f32 %v583, %v1139
  %v1141 = vpop.f32.mrb[0].mxu0
  %v1142 = vpop.f32.mrb[0].mxu0
  %v1143 = vadd.f32 %v586, %v1142
  %v1144 = vpop.f32.mrb[0].mxu0
  %1145 = vmatprep.mubr.bf16.mxu0 0
  %1146 = vmatmul.mubr.bf16.gmra.mrb[0].mxu0 %v998
  %v1147 = vpop.f32.mrb[0].mxu0
  %v1148 = vadd.f32 %v591, %v1147
  %v1149 = vpop.f32.mrb[0].mxu0
  %v1150 = vpop.f32.mrb[0].mxu0
  %v1151 = vadd.f32 %v594, %v1150
  %v1152 = vpop.f32.mrb[0].mxu0
  %1153 = vmatprep.mubr.bf16.mxu0 0
  %1154 = vmatmul.mubr.bf16.gmra.mrb[0].mxu0 %v1001
  %v1155 = vpop.f32.mrb[0].mxu0
  %v1156 = vadd.f32 %v599, %v1155
  %v1157 = vpop.f32.mrb[0].mxu0
  %v1158 = vpop.f32.mrb[0].mxu0
  %v1159 = vadd.f32 %v602, %v1158
  %v1160 = vpop.f32.mrb[0].mxu0
  %1161 = vmatprep.mubr.bf16.mxu0 0
  %1162 = vmatmul.mubr.bf16.gmra.mrb[0].mxu0 %v1004
  %v1163 = vpop.f32.mrb[0].mxu0
  %v1164 = vadd.f32 %v607, %v1163
  %v1165 = vpop.f32.mrb[0].mxu0
  %v1166 = vpop.f32.mrb[0].mxu0
  %v1167 = vadd.f32 %v610, %v1166
  %v1168 = vpop.f32.mrb[0].mxu0
  %1169 = vmatprep.mubr.bf16.mxu0 0
  %1170 = vmatmul.mubr.bf16.gmra.mrb[0].mxu0 %v1007
  %v1171 = vpop.f32.mrb[0].mxu0
  %v1172 = vadd.f32 %v615, %v1171
  %v1173 = vpop.f32.mrb[0].mxu0
  %v1174 = vpop.f32.mrb[0].mxu0
  %v1175 = vadd.f32 %v618, %v1174
  %v1176 = vpop.f32.mrb[0].mxu0
  %1177 = vmatprep.mubr.bf16.mxu0 0
  %1178 = vmatmul.mubr.bf16.gmra.mrb[0].mxu0 %v1010
  %v1179 = vpop.f32.mrb[0].mxu0
  %v1180 = vadd.f32 %v623, %v1179
  %v1181 = vpop.f32.mrb[0].mxu0
  %v1182 = vpop.f32.mrb[0].mxu0
  %v1183 = vadd.f32 %v626, %v1182
  %v1184 = vpop.f32.mrb[0].mxu0
  %1185 = vmatprep.mubr.bf16.mxu0 0
  %1186 = vmatmul.mubr.bf16.gmra.mrb[0].mxu0 %v1013
  %v1187 = vpop.f32.mrb[0].mxu0
  %v1188 = vadd.f32 %v631, %v1187
  %v1189 = vpop.f32.mrb[0].mxu0
  %v1190 = vpop.f32.mrb[0].mxu0
  %v1191 = vadd.f32 %v634, %v1190
  %v1192 = vpop.f32.mrb[0].mxu0
  %1193 = vmatprep.mubr.bf16.mxu0 0
  %1194 = vmatmul.mubr.bf16.gmra.mrb[0].mxu0 %v1016
  %v1195 = vpop.f32.mrb[0].mxu0
  %v1196 = vadd.f32 %v639, %v1195
  %v1197 = vpop.f32.mrb[0].mxu0
  %v1198 = vpop.f32.mrb[0].mxu0
  %v1199 = vadd.f32 %v642, %v1198
  %v1200 = vpop.f32.mrb[0].mxu0
  %1201 = vmatprep.mubr.bf16.mxu0 0
  %1202 = vmatmul.mubr.bf16.gmra.mrb[0].mxu0 %v1019
  %v1203 = vpop.f32.mrb[0].mxu0
  %v1204 = vadd.f32 %v647, %v1203
  %v1205 = vpop.f32.mrb[0].mxu0
  %v1206 = vpop.f32.mrb[0].mxu0
  %v1207 = vadd.f32 %v650, %v1206
  %v1208 = vpop.f32.mrb[0].mxu0
  %1209 = vmatprep.mubr.bf16.mxu0 0
  %1210 = vmatmul.mubr.bf16.gmra.mrb[0].mxu0 %v1022
  %v1211 = vpop.f32.mrb[0].mxu0
  %v1212 = vadd.f32 %v655, %v1211
  %v1213 = vpop.f32.mrb[0].mxu0
  %v1214 = vpop.f32.mrb[0].mxu0
  %v1215 = vadd.f32 %v658, %v1214
  %v1216 = vpop.f32.mrb[0].mxu0
  %1217 = vmatprep.mubr.bf16.mxu0 0
  %1218 = vmatmul.mubr.bf16.gmra.mrb[0].mxu0 %v1025
  %v1219 = vpop.f32.mrb[0].mxu0
  %v1220 = vadd.f32 %v663, %v1219
  %v1221 = vpop.f32.mrb[0].mxu0
  %v1222 = vpop.f32.mrb[0].mxu0
  %v1223 = vadd.f32 %v666, %v1222
  %v1224 = vpop.f32.mrb[0].mxu0
  %1225 = vmatprep.mubr.bf16.mxu0 0
  %1226 = vmatmul.mubr.bf16.gmra.mrb[0].mxu0 %v1028
  %v1227 = vpop.f32.mrb[0].mxu0
  %v1228 = vadd.f32 %v671, %v1227
  %v1229 = vpop.f32.mrb[0].mxu0
  %v1230 = vpop.f32.mrb[0].mxu0
  %v1231 = vadd.f32 %v674, %v1230
  %v1232 = vpop.f32.mrb[0].mxu0
  %1233 = vmatprep.mubr.bf16.mxu0 0
  %1234 = vmatmul.mubr.bf16.gmra.mrb[0].mxu0 %v1031
  %v1235 = vpop.f32.mrb[0].mxu0
  %v1236 = vadd.f32 %v679, %v1235
  %v1237 = vpop.f32.mrb[0].mxu0
  %v1238 = vpop.f32.mrb[0].mxu0
  %v1239 = vadd.f32 %v682, %v1238
  %v1240 = vpop.f32.mrb[0].mxu0
  %1241 = vmatprep.mubr.bf16.mxu0 0
  %1242 = vmatmul.mubr.bf16.gmra.mrb[0].mxu0 %v1034
  %v1243 = vpop.f32.mrb[0].mxu0
  %v1244 = vadd.f32 %v687, %v1243
  %v1245 = vpop.f32.mrb[0].mxu0
  %v1246 = vpop.f32.mrb[0].mxu0
  %v1247 = vadd.f32 %v690, %v1246
  %v1248 = vpop.f32.mrb[0].mxu0
  %1249 = vmatprep.mubr.bf16.mxu0 0
  %1250 = vmatmul.mubr.bf16.gmra.mrb[0].mxu0 %v1037
  %v1251 = vpop.f32.mrb[0].mxu0
  %v1252 = vadd.f32 %v695, %v1251
  %v1253 = vpop.f32.mrb[0].mxu0
  %v1254 = vpop.f32.mrb[0].mxu0
  %v1255 = vadd.f32 %v698, %v1254
  %v1256 = vpop.f32.mrb[0].mxu0
  %1257 = vmatprep.mubr.bf16.mxu0 0
  %1258 = vmatmul.mubr.bf16.gmra.mrb[0].mxu0 %v1040
  %v1259 = vpop.f32.mrb[0].mxu0
  %v1260 = vadd.f32 %v703, %v1259
  %v1261 = vpop.f32.mrb[0].mxu0
  %v1262 = vpop.f32.mrb[0].mxu0
  %v1263 = vadd.f32 %v706, %v1262
  %v1264 = vpop.f32.mrb[0].mxu0
  %1265 = vmatprep.mubr.bf16.mxu0 0
  %1266 = vmatmul.mubr.bf16.gmra.mrb[0].mxu0 %v1043
  %v1267 = vpop.f32.mrb[0].mxu0
  %v1268 = vadd.f32 %v711, %v1267
  %v1269 = vpop.f32.mrb[0].mxu0
  %v1270 = vpop.f32.mrb[0].mxu0
  %v1271 = vadd.f32 %v714, %v1270
  %v1272 = vpop.f32.mrb[0].mxu0
  %1273 = vmatprep.mubr.bf16.mxu0 0
  %1274 = vmatmul.mubr.bf16.gmra.mrb[0].mxu0 %v1046
  %v1275 = vpop.f32.mrb[0].mxu0
  %v1276 = vadd.f32 %v719, %v1275
  %v1277 = vpop.f32.mrb[0].mxu0
  %v1278 = vpop.f32.mrb[0].mxu0
  %v1279 = vadd.f32 %v722, %v1278
  %v1280 = vpop.f32.mrb[0].mxu0
  %1281 = vmatprep.mubr.bf16.mxu0 0
  %1282 = vmatmul.mubr.bf16.gmra.mrb[0].mxu0 %v1049
  %v1283 = vpop.f32.mrb[0].mxu0
  %v1284 = vadd.f32 %v727, %v1283
  %v1285 = vpop.f32.mrb[0].mxu0
  %v1286 = vpop.f32.mrb[0].mxu0
  %v1287 = vadd.f32 %v730, %v1286
  %v1288 = vpop.f32.mrb[0].mxu0
  %1289 = vmatprep.mubr.bf16.mxu0 0
  %1290 = vmatmul.mubr.bf16.gmra.mrb[0].mxu0 %v1052
  %v1291 = vpop.f32.mrb[0].mxu0
  %v1292 = vadd.f32 %v735, %v1291
  %v1293 = vpop.f32.mrb[0].mxu0
  %v1294 = vpop.f32.mrb[0].mxu0
  %v1295 = vadd.f32 %v738, %v1294
  %v1296 = vpop.f32.mrb[0].mxu0
  %1297 = vmatprep.mubr.bf16.mxu0 0
  %1298 = vmatmul.mubr.bf16.gmra.mrb[0].mxu0 %v1055
  %v1299 = vpop.f32.mrb[0].mxu0
  %v1300 = vadd.f32 %v743, %v1299
  %v1301 = vpop.f32.mrb[0].mxu0
  %v1302 = vpop.f32.mrb[0].mxu0
  %v1303 = vadd.f32 %v746, %v1302
  %v1304 = vpop.f32.mrb[0].mxu0
  %1305 = vmatprep.mubr.bf16.mxu0 0
  %1306 = vmatmul.mubr.bf16.gmra.mrb[0].mxu0 %v1058
  %v1307 = vpop.f32.mrb[0].mxu0
  %v1308 = vadd.f32 %v751, %v1307
  %v1309 = vpop.f32.mrb[0].mxu0
  %v1310 = vpop.f32.mrb[0].mxu0
  %v1311 = vadd.f32 %v754, %v1310
  %v1312 = vpop.f32.mrb[0].mxu0
  %1313 = vmatprep.mubr.bf16.mxu0 0
  %1314 = vmatmul.mubr.bf16.gmra.mrb[0].mxu0 %v1061
  %v1315 = vpop.f32.mrb[0].mxu0
  %v1316 = vadd.f32 %v759, %v1315
  %v1317 = vpop.f32.mrb[0].mxu0
  %v1318 = vpop.f32.mrb[0].mxu0
  %v1319 = vadd.f32 %v762, %v1318
  %v1320 = vpop.f32.mrb[0].mxu0
  %1321 = vmatprep.mubr.bf16.mxu0 0
  %1322 = vmatmul.mubr.bf16.gmra.mrb[0].mxu0 %v1064
  %v1323 = vpop.f32.mrb[0].mxu0
  %v1324 = vadd.f32 %v767, %v1323
  %v1325 = vpop.f32.mrb[0].mxu0
  %v1326 = vpop.f32.mrb[0].mxu0
  %v1327 = vadd.f32 %v770, %v1326
  %v1328 = vpop.f32.mrb[0].mxu0
  %1329 = vmatprep.mubr.bf16.mxu0 0
  %1330 = vmatmul.mubr.bf16.gmra.mrb[0].mxu0 %v1067
  %v1331 = vpop.f32.mrb[0].mxu0
  %v1332 = vadd.f32 %v775, %v1331
  %v1333 = vpop.f32.mrb[0].mxu0
  %v1334 = vpop.f32.mrb[0].mxu0
  %v1335 = vadd.f32 %v778, %v1334
  %v1336 = vpop.f32.mrb[0].mxu0
  %1337 = vmatprep.mubr.bf16.mxu0 0
  %1338 = vmatmul.mubr.bf16.gmra.mrb[0].mxu0 %v1070
  %v1339 = vpop.f32.mrb[0].mxu0
  %v1340 = vadd.f32 %v783, %v1339
  %v1341 = vpop.f32.mrb[0].mxu0
  %v1342 = vpop.f32.mrb[0].mxu0
  %v1343 = vadd.f32 %v786, %v1342
  %v1344 = vpop.f32.mrb[0].mxu0
  %1345 = vmatprep.mubr.bf16.mxu0 0
  %1346 = vmatmul.mubr.bf16.gmra.mrb[0].mxu0 %v1073
  %v1347 = vpop.f32.mrb[0].mxu0
  %v1348 = vadd.f32 %v791, %v1347
  %v1349 = vpop.f32.mrb[0].mxu0
  %v1350 = vpop.f32.mrb[0].mxu0
  %v1351 = vadd.f32 %v794, %v1350
  %v1352 = vpop.f32.mrb[0].mxu0
  %1353 = vmatprep.mubr.bf16.mxu0 0
  %1354 = vmatmul.mubr.bf16.gmra.mrb[0].mxu0 %v1076
  %v1355 = vpop.f32.mrb[0].mxu0
  %v1356 = vadd.f32 %v799, %v1355
  %v1357 = vpop.f32.mrb[0].mxu0
  %v1358 = vpop.f32.mrb[0].mxu0
  %v1359 = vadd.f32 %v802, %v1358
  %v1360 = vpop.f32.mrb[0].mxu0
  %1361 = vmatprep.mubr.bf16.mxu0 0
  %1362 = vmatmul.mubr.bf16.gmra.mrb[0].mxu0 %v1079
  %v1363 = vpop.f32.mrb[0].mxu0
  %v1364 = vadd.f32 %v807, %v1363
  %v1365 = vpop.f32.mrb[0].mxu0
  %v1366 = vpop.f32.mrb[0].mxu0
  %v1367 = vadd.f32 %v810, %v1366
  %v1368 = vpop.f32.mrb[0].mxu0
  %1369 = vdwg.mxu0
  %s1370 = scalar_lea.vmem %s0, 36
  %v1371 = vld [vmem:[%s1370] sm:$0xf]
  %v1372 = vld [vmem:[%s1370 + $0x4] sm:$0xf]
  %v1373 = vld [vmem:[%s1370 + $0x8] sm:$0xf]
  %v1374 = vld [vmem:[%s1370 + $0xc] sm:$0xf]
  %v1375 = vld [vmem:[%s1370 + $0x10] sm:$0xf]
  %v1376 = vld [vmem:[%s1370 + $0x14] sm:$0xf]
  %v1377 = vld [vmem:[%s1370 + $0x18] sm:$0xf]
  %v1378 = vld [vmem:[%s1370 + $0x1c] sm:$0xf]
  %v1379 = vld [vmem:[%s1370 + $0x24] sm:$0xf]
  %v1380 = vld [vmem:[%s1370 + $0x28] sm:$0xf]
  %v1381 = vld [vmem:[%s1370 + $0x2c] sm:$0xf]
  %v1382 = vld [vmem:[%s1370 + $0x30] sm:$0xf]
  %v1383 = vld [vmem:[%s1370 + $0x34] sm:$0xf]
  %v1384 = vld [vmem:[%s1370 + $0x38] sm:$0xf]
  %v1385 = vld [vmem:[%s1370 + $0x3c] sm:$0xf]
  %v1386 = vld [vmem:[%s1370 + $0x40] sm:$0xf]
  %v1387 = vld [vmem:[%s1370 + $0x48] sm:$0xf]
  %v1388 = vld [vmem:[%s1370 + $0x4c] sm:$0xf]
  %v1389 = vld [vmem:[%s1370 + $0x50] sm:$0xf]
  %v1390 = vld [vmem:[%s1370 + $0x54] sm:$0xf]
  %v1391 = vld [vmem:[%s1370 + $0x58] sm:$0xf]
  %v1392 = vld [vmem:[%s1370 + $0x5c] sm:$0xf]
  %v1393 = vld [vmem:[%s1370 + $0x60] sm:$0xf]
  %v1394 = vld [vmem:[%s1370 + $0x64] sm:$0xf]
  %v1395 = vld [vmem:[%s1370 + $0x6c] sm:$0xf]
  %v1396 = vld [vmem:[%s1370 + $0x70] sm:$0xf]
  %v1397 = vld [vmem:[%s1370 + $0x74] sm:$0xf]
  %v1398 = vld [vmem:[%s1370 + $0x78] sm:$0xf]
  %v1399 = vld [vmem:[%s1370 + $0x7c] sm:$0xf]
  %v1400 = vld [vmem:[%s1370 + $0x80] sm:$0xf]
  %v1401 = vld [vmem:[%s1370 + $0x84] sm:$0xf]
  %v1402 = vld [vmem:[%s1370 + $0x88] sm:$0xf]
  %v1403 = vld [vmem:[%s1370 + $0x90] sm:$0xf]
  %v1404 = vld [vmem:[%s1370 + $0x94] sm:$0xf]
  %v1405 = vld [vmem:[%s1370 + $0x98] sm:$0xf]
  %v1406 = vld [vmem:[%s1370 + $0x9c] sm:$0xf]
  %v1407 = vld [vmem:[%s1370 + $0xa0] sm:$0xf]
  %v1408 = vld [vmem:[%s1370 + $0xa4] sm:$0xf]
  %v1409 = vld [vmem:[%s1370 + $0xa8] sm:$0xf]
  %v1410 = vld [vmem:[%s1370 + $0xac] sm:$0xf]
  %v1411 = vld [vmem:[%s1370 + $0xb4] sm:$0xf]
  %v1412 = vld [vmem:[%s1370 + $0xb8] sm:$0xf]
  %v1413 = vld [vmem:[%s1370 + $0xbc] sm:$0xf]
  %v1414 = vld [vmem:[%s1370 + $0xc0] sm:$0xf]
  %v1415 = vld [vmem:[%s1370 + $0xc4] sm:$0xf]
  %v1416 = vld [vmem:[%s1370 + $0xc8] sm:$0xf]
  %v1417 = vld [vmem:[%s1370 + $0xcc] sm:$0xf]
  %v1418 = vld [vmem:[%s1370 + $0xd0] sm:$0xf]
  %v1419 = vld [vmem:[%s1370 + $0xd8] sm:$0xf]
  %v1420 = vld [vmem:[%s1370 + $0xdc] sm:$0xf]
  %v1421 = vld [vmem:[%s1370 + $0xe0] sm:$0xf]
  %v1422 = vld [vmem:[%s1370 + $0xe4] sm:$0xf]
  %v1423 = vld [vmem:[%s1370 + $0xe8] sm:$0xf]
  %v1424 = vld [vmem:[%s1370 + $0xec] sm:$0xf]
  %v1425 = vld [vmem:[%s1370 + $0xf0] sm:$0xf]
  %v1426 = vld [vmem:[%s1370 + $0xf4] sm:$0xf]
  %v1427 = vld [vmem:[%s1370 + $0xfc] sm:$0xf]
  %v1428 = vld [vmem:[%s1370 + $0x100] sm:$0xf]
  %v1429 = vld [vmem:[%s1370 + $0x104] sm:$0xf]
  %v1430 = vld [vmem:[%s1370 + $0x108] sm:$0xf]
  %v1431 = vld [vmem:[%s1370 + $0x10c] sm:$0xf]
  %v1432 = vld [vmem:[%s1370 + $0x110] sm:$0xf]
  %v1433 = vld [vmem:[%s1370 + $0x114] sm:$0xf]
  %v1434 = vld [vmem:[%s1370 + $0x118] sm:$0xf]
  %v1435 = vld [vmem:[%s1 + $0x20] sm:$0xf]
  %v1436 = vld [vmem:[%s1 + $0x24] sm:$0xf]
  %v1437 = vld [vmem:[%s1 + $0x28] sm:$0xf]
  %v1438 = vld [vmem:[%s1 + $0x2c] sm:$0xf]
  %v1503 = vunpack.c.l.b16 %v1371
  %v1504 = vunpack.c.l.b16 %v1372
  %v1505 = vunpack.c.l.b16 %v1373
  %v1506 = vunpack.c.l.b16 %v1374
  %v1507 = vunpack.c.l.b16 %v1375
  %v1508 = vunpack.c.l.b16 %v1376
  %v1509 = vunpack.c.l.b16 %v1377
  %v1510 = vunpack.c.l.b16 %v1378
  %v1511 = vunpack.c.l.b16 %v1379
  %v1512 = vunpack.c.l.b16 %v1380
  %v1513 = vunpack.c.l.b16 %v1381
  %v1514 = vunpack.c.l.b16 %v1382
  %v1515 = vunpack.c.l.b16 %v1383
  %v1516 = vunpack.c.l.b16 %v1384
  %v1517 = vunpack.c.l.b16 %v1385
  %v1518 = vunpack.c.l.b16 %v1386
  %v1519 = vunpack.c.l.b16 %v1387
  %v1520 = vunpack.c.l.b16 %v1388
  %v1521 = vunpack.c.l.b16 %v1389
  %v1522 = vunpack.c.l.b16 %v1390
  %v1523 = vunpack.c.l.b16 %v1391
  %v1524 = vunpack.c.l.b16 %v1392
  %v1525 = vunpack.c.l.b16 %v1393
  %v1526 = vunpack.c.l.b16 %v1394
  %v1527 = vunpack.c.l.b16 %v1395
  %v1528 = vunpack.c.l.b16 %v1396
  %v1529 = vunpack.c.l.b16 %v1397
  %v1530 = vunpack.c.l.b16 %v1398
  %v1531 = vunpack.c.l.b16 %v1399
  %v1532 = vunpack.c.l.b16 %v1400
  %v1533 = vunpack.c.l.b16 %v1401
  %v1534 = vunpack.c.l.b16 %v1402
  %v1535 = vunpack.c.l.b16 %v1403
  %v1536 = vunpack.c.l.b16 %v1404
  %v1537 = vunpack.c.l.b16 %v1405
  %v1538 = vunpack.c.l.b16 %v1406
  %v1539 = vunpack.c.l.b16 %v1407
  %v1540 = vunpack.c.l.b16 %v1408
  %v1541 = vunpack.c.l.b16 %v1409
  %v1542 = vunpack.c.l.b16 %v1410
  %v1543 = vunpack.c.l.b16 %v1411
  %v1544 = vunpack.c.l.b16 %v1412
  %v1545 = vunpack.c.l.b16 %v1413
  %v1546 = vunpack.c.l.b16 %v1414
  %v1547 = vunpack.c.l.b16 %v1415
  %v1548 = vunpack.c.l.b16 %v1416
  %v1549 = vunpack.c.l.b16 %v1417
  %v1550 = vunpack.c.l.b16 %v1418
  %v1551 = vunpack.c.l.b16 %v1419
  %v1552 = vunpack.c.l.b16 %v1420
  %v1553 = vunpack.c.l.b16 %v1421
  %v1554 = vunpack.c.l.b16 %v1422
  %v1555 = vunpack.c.l.b16 %v1423
  %v1556 = vunpack.c.l.b16 %v1424
  %v1557 = vunpack.c.l.b16 %v1425
  %v1558 = vunpack.c.l.b16 %v1426
  %v1559 = vunpack.c.l.b16 %v1427
  %v1560 = vunpack.c.l.b16 %v1428
  %v1561 = vunpack.c.l.b16 %v1429
  %v1562 = vunpack.c.l.b16 %v1430
  %v1563 = vunpack.c.l.b16 %v1431
  %v1564 = vunpack.c.l.b16 %v1432
  %v1565 = vunpack.c.l.b16 %v1433
  %v1566 = vunpack.c.l.b16 %v1434
  %v1567 = vpack.c.b16 %v1504, %v1503
  %v1568 = vpack.c.b16 %v1506, %v1505
  %v1569 = vpack.c.b16 %v1508, %v1507
  %v1570 = vpack.c.b16 %v1510, %v1509
  %v1571 = vpack.c.b16 %v1512, %v1511
  %v1572 = vpack.c.b16 %v1514, %v1513
  %v1573 = vpack.c.b16 %v1516, %v1515
  %v1574 = vpack.c.b16 %v1518, %v1517
  %v1575 = vpack.c.b16 %v1520, %v1519
  %v1576 = vpack.c.b16 %v1522, %v1521
  %v1577 = vpack.c.b16 %v1524, %v1523
  %v1578 = vpack.c.b16 %v1526, %v1525
  %v1579 = vpack.c.b16 %v1528, %v1527
  %v1580 = vpack.c.b16 %v1530, %v1529
  %v1581 = vpack.c.b16 %v1532, %v1531
  %v1582 = vpack.c.b16 %v1534, %v1533
  %v1583 = vpack.c.b16 %v1536, %v1535
  %v1584 = vpack.c.b16 %v1538, %v1537
  %v1585 = vpack.c.b16 %v1540, %v1539
  %v1586 = vpack.c.b16 %v1542, %v1541
  %v1587 = vpack.c.b16 %v1544, %v1543
  %v1588 = vpack.c.b16 %v1546, %v1545
  %v1589 = vpack.c.b16 %v1548, %v1547
  %v1590 = vpack.c.b16 %v1550, %v1549
  %v1591 = vpack.c.b16 %v1552, %v1551
  %v1592 = vpack.c.b16 %v1554, %v1553
  %v1593 = vpack.c.b16 %v1556, %v1555
  %v1594 = vpack.c.b16 %v1558, %v1557
  %v1595 = vpack.c.b16 %v1560, %v1559
  %v1596 = vpack.c.b16 %v1562, %v1561
  %v1597 = vpack.c.b16 %v1564, %v1563
  %v1598 = vpack.c.b16 %v1566, %v1565
  %v1603 = vunpack.c.l.b16 %v1435
  %v1604 = vunpack.c.l.b16 %v1436
  %v1605 = vunpack.c.l.b16 %v1437
  %v1606 = vunpack.c.l.b16 %v1438
  %v1607 = vpack.c.b16 %v1604, %v1603
  %v1608 = vpack.c.b16 %v1606, %v1605
  %v1612 = vsel %vm427, %v1567, 0
  %v1615 = vsel %vm427, %v1568, 0
  %v1618 = vsel %vm427, %v1569, 0
  %v1621 = vsel %vm427, %v1570, 0
  %v1624 = vsel %vm427, %v1571, 0
  %v1627 = vsel %vm427, %v1572, 0
  %v1630 = vsel %vm427, %v1573, 0
  %v1633 = vsel %vm427, %v1574, 0
  %v1636 = vsel %vm427, %v1575, 0
  %v1639 = vsel %vm427, %v1576, 0
  %v1642 = vsel %vm427, %v1577, 0
  %v1645 = vsel %vm427, %v1578, 0
  %v1648 = vsel %vm427, %v1579, 0
  %v1651 = vsel %vm427, %v1580, 0
  %v1654 = vsel %vm427, %v1581, 0
  %v1657 = vsel %vm427, %v1582, 0
  %v1660 = vsel %vm427, %v1583, 0
  %v1663 = vsel %vm427, %v1584, 0
  %v1666 = vsel %vm427, %v1585, 0
  %v1669 = vsel %vm427, %v1586, 0
  %v1672 = vsel %vm427, %v1587, 0
  %v1675 = vsel %vm427, %v1588, 0
  %v1678 = vsel %vm427, %v1589, 0
  %v1681 = vsel %vm427, %v1590, 0
  %v1684 = vsel %vm427, %v1591, 0
  %v1687 = vsel %vm427, %v1592, 0
  %v1690 = vsel %vm427, %v1593, 0
  %v1693 = vsel %vm427, %v1594, 0
  %v1696 = vsel %vm427, %v1595, 0
  %v1699 = vsel %vm427, %v1596, 0
  %v1702 = vsel %vm427, %v1597, 0
  %v1705 = vsel %vm427, %v1598, 0
  %1707 = vmatprep.subr.bf16.mxu0 0
  %1708 = vmatpush1.bf16.msra.mxu0 %v1607
  %1709 = vmatprep.subr.bf16.mxu0 0
  %1710 = vmatpush1.bf16.msra.mxu0 %v1608
  %1711 = vmatprep.subr.bf16.mxu0 0
  %1712 = vmatpush1.bf16.msra.mxu0 0
  %1713 = vmatprep.subr.bf16.mxu0 0
  %1714 = vmatpush1.bf16.msra.mxu0 0
  %1715 = vmatprep.subr.bf16.mxu0 0
  %1716 = vmatpush1.bf16.msra.mxu0 0
  %1717 = vmatprep.subr.bf16.mxu0 0
  %1718 = vmatpush1.bf16.msra.mxu0 0
  %1719 = vmatprep.subr.bf16.mxu0 0
  %1720 = vmatpush1.bf16.msra.mxu0 0
  %1721 = vmatprep.subr.bf16.mxu0 0
  %1722 = vmatpush1.bf16.msra.mxu0 0
  %1723 = vmatprep.subr.bf16.mxu0 0
  %1724 = vmatpush1.bf16.msra.mxu0 0
  %1725 = vmatprep.subr.bf16.mxu0 0
  %1726 = vmatpush1.bf16.msra.mxu0 0
  %1727 = vmatprep.subr.bf16.mxu0 0
  %1728 = vmatpush1.bf16.msra.mxu0 0
  %1729 = vmatprep.subr.bf16.mxu0 0
  %1730 = vmatpush1.bf16.msra.mxu0 0
  %1731 = vmatprep.subr.bf16.mxu0 0
  %1732 = vmatpush1.bf16.msra.mxu0 0
  %1733 = vmatprep.subr.bf16.mxu0 0
  %1734 = vmatpush1.bf16.msra.mxu0 0
  %1735 = vmatprep.subr.bf16.mxu0 0
  %1736 = vmatpush1.bf16.msra.mxu0 0
  %1737 = vmatprep.subr.bf16.mxu0 0
  %1738 = vmatpush1.bf16.msra.mxu0 0
  %1739 = vmatprep.mubr.bf16.mxu0 0
  %1740 = vmatmul.mubr.bf16.gmra.mrb[0].mxu0 %v1612
  %v1741 = vpop.f32.mrb[0].mxu0
  %v1742 = vadd.f32 0.0, %v1741
  %v1743 = vpop.f32.mrb[0].mxu0
  %v1744 = vpop.f32.mrb[0].mxu0
  %v1745 = vadd.f32 0.0, %v1744
  %v1746 = vpop.f32.mrb[0].mxu0
  %1747 = vmatprep.mubr.bf16.mxu0 0
  %1748 = vmatmul.mubr.bf16.gmra.mrb[0].mxu0 %v1615
  %v1749 = vpop.f32.mrb[0].mxu0
  %v1750 = vadd.f32 0.0, %v1749
  %v1751 = vpop.f32.mrb[0].mxu0
  %v1752 = vpop.f32.mrb[0].mxu0
  %v1753 = vadd.f32 0.0, %v1752
  %v1754 = vpop.f32.mrb[0].mxu0
  %1755 = vmatprep.mubr.bf16.mxu0 0
  %1756 = vmatmul.mubr.bf16.gmra.mrb[0].mxu0 %v1618
  %v1757 = vpop.f32.mrb[0].mxu0
  %v1758 = vadd.f32 0.0, %v1757
  %v1759 = vpop.f32.mrb[0].mxu0
  %v1760 = vpop.f32.mrb[0].mxu0
  %v1761 = vadd.f32 0.0, %v1760
  %v1762 = vpop.f32.mrb[0].mxu0
  %1763 = vmatprep.mubr.bf16.mxu0 0
  %1764 = vmatmul.mubr.bf16.gmra.mrb[0].mxu0 %v1621
  %v1765 = vpop.f32.mrb[0].mxu0
  %v1766 = vadd.f32 0.0, %v1765
  %v1767 = vpop.f32.mrb[0].mxu0
  %v1768 = vpop.f32.mrb[0].mxu0
  %v1769 = vadd.f32 0.0, %v1768
  %v1770 = vpop.f32.mrb[0].mxu0
  %1771 = vmatprep.mubr.bf16.mxu0 0
  %1772 = vmatmul.mubr.bf16.gmra.mrb[0].mxu0 %v1624
  %v1773 = vpop.f32.mrb[0].mxu0
  %v1774 = vadd.f32 0.0, %v1773
  %v1775 = vpop.f32.mrb[0].mxu0
  %v1776 = vpop.f32.mrb[0].mxu0
  %v1777 = vadd.f32 0.0, %v1776
  %v1778 = vpop.f32.mrb[0].mxu0
  %1779 = vmatprep.mubr.bf16.mxu0 0
  %1780 = vmatmul.mubr.bf16.gmra.mrb[0].mxu0 %v1627
  %v1781 = vpop.f32.mrb[0].mxu0
  %v1782 = vadd.f32 0.0, %v1781
  %v1783 = vpop.f32.mrb[0].mxu0
  %v1784 = vpop.f32.mrb[0].mxu0
  %v1785 = vadd.f32 0.0, %v1784
  %v1786 = vpop.f32.mrb[0].mxu0
  %1787 = vmatprep.mubr.bf16.mxu0 0
  %1788 = vmatmul.mubr.bf16.gmra.mrb[0].mxu0 %v1630
  %v1789 = vpop.f32.mrb[0].mxu0
  %v1790 = vadd.f32 0.0, %v1789
  %v1791 = vpop.f32.mrb[0].mxu0
  %v1792 = vpop.f32.mrb[0].mxu0
  %v1793 = vadd.f32 0.0, %v1792
  %v1794 = vpop.f32.mrb[0].mxu0
  %1795 = vmatprep.mubr.bf16.mxu0 0
  %1796 = vmatmul.mubr.bf16.gmra.mrb[0].mxu0 %v1633
  %v1797 = vpop.f32.mrb[0].mxu0
  %v1798 = vadd.f32 0.0, %v1797
  %v1799 = vpop.f32.mrb[0].mxu0
  %v1800 = vpop.f32.mrb[0].mxu0
  %v1801 = vadd.f32 0.0, %v1800
  %v1802 = vpop.f32.mrb[0].mxu0
  %1803 = vmatprep.mubr.bf16.mxu0 0
  %1804 = vmatmul.mubr.bf16.gmra.mrb[0].mxu0 %v1636
  %v1805 = vpop.f32.mrb[0].mxu0
  %v1806 = vadd.f32 0.0, %v1805
  %v1807 = vpop.f32.mrb[0].mxu0
  %v1808 = vpop.f32.mrb[0].mxu0
  %v1809 = vadd.f32 0.0, %v1808
  %v1810 = vpop.f32.mrb[0].mxu0
  %1811 = vmatprep.mubr.bf16.mxu0 0
  %1812 = vmatmul.mubr.bf16.gmra.mrb[0].mxu0 %v1639
  %v1813 = vpop.f32.mrb[0].mxu0
  %v1814 = vadd.f32 0.0, %v1813
  %v1815 = vpop.f32.mrb[0].mxu0
  %v1816 = vpop.f32.mrb[0].mxu0
  %v1817 = vadd.f32 0.0, %v1816
  %v1818 = vpop.f32.mrb[0].mxu0
  %1819 = vmatprep.mubr.bf16.mxu0 0
  %1820 = vmatmul.mubr.bf16.gmra.mrb[0].mxu0 %v1642
  %v1821 = vpop.f32.mrb[0].mxu0
  %v1822 = vadd.f32 0.0, %v1821
  %v1823 = vpop.f32.mrb[0].mxu0
  %v1824 = vpop.f32.mrb[0].mxu0
  %v1825 = vadd.f32 0.0, %v1824
  %v1826 = vpop.f32.mrb[0].mxu0
  %1827 = vmatprep.mubr.bf16.mxu0 0
  %1828 = vmatmul.mubr.bf16.gmra.mrb[0].mxu0 %v1645
  %v1829 = vpop.f32.mrb[0].mxu0
  %v1830 = vadd.f32 0.0, %v1829
  %v1831 = vpop.f32.mrb[0].mxu0
  %v1832 = vpop.f32.mrb[0].mxu0
  %v1833 = vadd.f32 0.0, %v1832
  %v1834 = vpop.f32.mrb[0].mxu0
  %1835 = vmatprep.mubr.bf16.mxu0 0
  %1836 = vmatmul.mubr.bf16.gmra.mrb[0].mxu0 %v1648
  %v1837 = vpop.f32.mrb[0].mxu0
  %v1838 = vadd.f32 0.0, %v1837
  %v1839 = vpop.f32.mrb[0].mxu0
  %v1840 = vpop.f32.mrb[0].mxu0
  %v1841 = vadd.f32 0.0, %v1840
  %v1842 = vpop.f32.mrb[0].mxu0
  %1843 = vmatprep.mubr.bf16.mxu0 0
  %1844 = vmatmul.mubr.bf16.gmra.mrb[0].mxu0 %v1651
  %v1845 = vpop.f32.mrb[0].mxu0
  %v1846 = vadd.f32 0.0, %v1845
  %v1847 = vpop.f32.mrb[0].mxu0
  %v1848 = vpop.f32.mrb[0].mxu0
  %v1849 = vadd.f32 0.0, %v1848
  %v1850 = vpop.f32.mrb[0].mxu0
  %1851 = vmatprep.mubr.bf16.mxu0 0
  %1852 = vmatmul.mubr.bf16.gmra.mrb[0].mxu0 %v1654
  %v1853 = vpop.f32.mrb[0].mxu0
  %v1854 = vadd.f32 0.0, %v1853
  %v1855 = vpop.f32.mrb[0].mxu0
  %v1856 = vpop.f32.mrb[0].mxu0
  %v1857 = vadd.f32 0.0, %v1856
  %v1858 = vpop.f32.mrb[0].mxu0
  %1859 = vmatprep.mubr.bf16.mxu0 0
  %1860 = vmatmul.mubr.bf16.gmra.mrb[0].mxu0 %v1657
  %v1861 = vpop.f32.mrb[0].mxu0
  %v1862 = vadd.f32 0.0, %v1861
  %v1863 = vpop.f32.mrb[0].mxu0
  %v1864 = vpop.f32.mrb[0].mxu0
  %v1865 = vadd.f32 0.0, %v1864
  %v1866 = vpop.f32.mrb[0].mxu0
  %1867 = vmatprep.mubr.bf16.mxu0 0
  %1868 = vmatmul.mubr.bf16.gmra.mrb[0].mxu0 %v1660
  %v1869 = vpop.f32.mrb[0].mxu0
  %v1870 = vadd.f32 0.0, %v1869
  %v1871 = vpop.f32.mrb[0].mxu0
  %v1872 = vpop.f32.mrb[0].mxu0
  %v1873 = vadd.f32 0.0, %v1872
  %v1874 = vpop.f32.mrb[0].mxu0
  %1875 = vmatprep.mubr.bf16.mxu0 0
  %1876 = vmatmul.mubr.bf16.gmra.mrb[0].mxu0 %v1663
  %v1877 = vpop.f32.mrb[0].mxu0
  %v1878 = vadd.f32 0.0, %v1877
  %v1879 = vpop.f32.mrb[0].mxu0
  %v1880 = vpop.f32.mrb[0].mxu0
  %v1881 = vadd.f32 0.0, %v1880
  %v1882 = vpop.f32.mrb[0].mxu0
  %1883 = vmatprep.mubr.bf16.mxu0 0
  %1884 = vmatmul.mubr.bf16.gmra.mrb[0].mxu0 %v1666
  %v1885 = vpop.f32.mrb[0].mxu0
  %v1886 = vadd.f32 0.0, %v1885
  %v1887 = vpop.f32.mrb[0].mxu0
  %v1888 = vpop.f32.mrb[0].mxu0
  %v1889 = vadd.f32 0.0, %v1888
  %v1890 = vpop.f32.mrb[0].mxu0
  %1891 = vmatprep.mubr.bf16.mxu0 0
  %1892 = vmatmul.mubr.bf16.gmra.mrb[0].mxu0 %v1669
  %v1893 = vpop.f32.mrb[0].mxu0
  %v1894 = vadd.f32 0.0, %v1893
  %v1895 = vpop.f32.mrb[0].mxu0
  %v1896 = vpop.f32.mrb[0].mxu0
  %v1897 = vadd.f32 0.0, %v1896
  %v1898 = vpop.f32.mrb[0].mxu0
  %1899 = vmatprep.mubr.bf16.mxu0 0
  %1900 = vmatmul.mubr.bf16.gmra.mrb[0].mxu0 %v1672
  %v1901 = vpop.f32.mrb[0].mxu0
  %v1902 = vadd.f32 0.0, %v1901
  %v1903 = vpop.f32.mrb[0].mxu0
  %v1904 = vpop.f32.mrb[0].mxu0
  %v1905 = vadd.f32 0.0, %v1904
  %v1906 = vpop.f32.mrb[0].mxu0
  %1907 = vmatprep.mubr.bf16.mxu0 0
  %1908 = vmatmul.mubr.bf16.gmra.mrb[0].mxu0 %v1675
  %v1909 = vpop.f32.mrb[0].mxu0
  %v1910 = vadd.f32 0.0, %v1909
  %v1911 = vpop.f32.mrb[0].mxu0
  %v1912 = vpop.f32.mrb[0].mxu0
  %v1913 = vadd.f32 0.0, %v1912
  %v1914 = vpop.f32.mrb[0].mxu0
  %1915 = vmatprep.mubr.bf16.mxu0 0
  %1916 = vmatmul.mubr.bf16.gmra.mrb[0].mxu0 %v1678
  %v1917 = vpop.f32.mrb[0].mxu0
  %v1918 = vadd.f32 0.0, %v1917
  %v1919 = vpop.f32.mrb[0].mxu0
  %v1920 = vpop.f32.mrb[0].mxu0
  %v1921 = vadd.f32 0.0, %v1920
  %v1922 = vpop.f32.mrb[0].mxu0
  %1923 = vmatprep.mubr.bf16.mxu0 0
  %1924 = vmatmul.mubr.bf16.gmra.mrb[0].mxu0 %v1681
  %v1925 = vpop.f32.mrb[0].mxu0
  %v1926 = vadd.f32 0.0, %v1925
  %v1927 = vpop.f32.mrb[0].mxu0
  %v1928 = vpop.f32.mrb[0].mxu0
  %v1929 = vadd.f32 0.0, %v1928
  %v1930 = vpop.f32.mrb[0].mxu0
  %1931 = vmatprep.mubr.bf16.mxu0 0
  %1932 = vmatmul.mubr.bf16.gmra.mrb[0].mxu0 %v1684
  %v1933 = vpop.f32.mrb[0].mxu0
  %v1934 = vadd.f32 0.0, %v1933
  %v1935 = vpop.f32.mrb[0].mxu0
  %v1936 = vpop.f32.mrb[0].mxu0
  %v1937 = vadd.f32 0.0, %v1936
  %v1938 = vpop.f32.mrb[0].mxu0
  %1939 = vmatprep.mubr.bf16.mxu0 0
  %1940 = vmatmul.mubr.bf16.gmra.mrb[0].mxu0 %v1687
  %v1941 = vpop.f32.mrb[0].mxu0
  %v1942 = vadd.f32 0.0, %v1941
  %v1943 = vpop.f32.mrb[0].mxu0
  %v1944 = vpop.f32.mrb[0].mxu0
  %v1945 = vadd.f32 0.0, %v1944
  %v1946 = vpop.f32.mrb[0].mxu0
  %1947 = vmatprep.mubr.bf16.mxu0 0
  %1948 = vmatmul.mubr.bf16.gmra.mrb[0].mxu0 %v1690
  %v1949 = vpop.f32.mrb[0].mxu0
  %v1950 = vadd.f32 0.0, %v1949
  %v1951 = vpop.f32.mrb[0].mxu0
  %v1952 = vpop.f32.mrb[0].mxu0
  %v1953 = vadd.f32 0.0, %v1952
  %v1954 = vpop.f32.mrb[0].mxu0
  %1955 = vmatprep.mubr.bf16.mxu0 0
  %1956 = vmatmul.mubr.bf16.gmra.mrb[0].mxu0 %v1693
  %v1957 = vpop.f32.mrb[0].mxu0
  %v1958 = vadd.f32 0.0, %v1957
  %v1959 = vpop.f32.mrb[0].mxu0
  %v1960 = vpop.f32.mrb[0].mxu0
  %v1961 = vadd.f32 0.0, %v1960
  %v1962 = vpop.f32.mrb[0].mxu0
  %1963 = vmatprep.mubr.bf16.mxu0 0
  %1964 = vmatmul.mubr.bf16.gmra.mrb[0].mxu0 %v1696
  %v1965 = vpop.f32.mrb[0].mxu0
  %v1966 = vadd.f32 0.0, %v1965
  %v1967 = vpop.f32.mrb[0].mxu0
  %v1968 = vpop.f32.mrb[0].mxu0
  %v1969 = vadd.f32 0.0, %v1968
  %v1970 = vpop.f32.mrb[0].mxu0
  %1971 = vmatprep.mubr.bf16.mxu0 0
  %1972 = vmatmul.mubr.bf16.gmra.mrb[0].mxu0 %v1699
  %v1973 = vpop.f32.mrb[0].mxu0
  %v1974 = vadd.f32 0.0, %v1973
  %v1975 = vpop.f32.mrb[0].mxu0
  %v1976 = vpop.f32.mrb[0].mxu0
  %v1977 = vadd.f32 0.0, %v1976
  %v1978 = vpop.f32.mrb[0].mxu0
  %1979 = vmatprep.mubr.bf16.mxu0 0
  %1980 = vmatmul.mubr.bf16.gmra.mrb[0].mxu0 %v1702
  %v1981 = vpop.f32.mrb[0].mxu0
  %v1982 = vadd.f32 0.0, %v1981
  %v1983 = vpop.f32.mrb[0].mxu0
  %v1984 = vpop.f32.mrb[0].mxu0
  %v1985 = vadd.f32 0.0, %v1984
  %v1986 = vpop.f32.mrb[0].mxu0
  %1987 = vmatprep.mubr.bf16.mxu0 0
  %1988 = vmatmul.mubr.bf16.gmra.mrb[0].mxu0 %v1705
  %v1989 = vpop.f32.mrb[0].mxu0
  %v1990 = vadd.f32 0.0, %v1989
  %v1991 = vpop.f32.mrb[0].mxu0
  %v1992 = vpop.f32.mrb[0].mxu0
  %v1993 = vadd.f32 0.0, %v1992
  %v1994 = vpop.f32.mrb[0].mxu0
  %1995 = vdwg.mxu0
  %v1996 = vadd.f32 %v1116, %v1742
  %v1997 = vadd.f32 %v1119, %v1745
  %v1998 = vadd.f32 %v1124, %v1750
  %v1999 = vadd.f32 %v1127, %v1753
  %v2000 = vadd.f32 %v1132, %v1758
  %v2001 = vadd.f32 %v1135, %v1761
  %v2002 = vadd.f32 %v1140, %v1766
  %v2003 = vadd.f32 %v1143, %v1769
  %v2004 = vadd.f32 %v1148, %v1774
  %v2005 = vadd.f32 %v1151, %v1777
  %v2006 = vadd.f32 %v1156, %v1782
  %v2007 = vadd.f32 %v1159, %v1785
  %v2008 = vadd.f32 %v1164, %v1790
  %v2009 = vadd.f32 %v1167, %v1793
  %v2010 = vadd.f32 %v1172, %v1798
  %v2011 = vadd.f32 %v1175, %v1801
  %v2012 = vadd.f32 %v1180, %v1806
  %v2013 = vadd.f32 %v1183, %v1809
  %v2014 = vadd.f32 %v1188, %v1814
  %v2015 = vadd.f32 %v1191, %v1817
  %v2016 = vadd.f32 %v1196, %v1822
  %v2017 = vadd.f32 %v1199, %v1825
  %v2018 = vadd.f32 %v1204, %v1830
  %v2019 = vadd.f32 %v1207, %v1833
  %v2020 = vadd.f32 %v1212, %v1838
  %v2021 = vadd.f32 %v1215, %v1841
  %v2022 = vadd.f32 %v1220, %v1846
  %v2023 = vadd.f32 %v1223, %v1849
  %v2024 = vadd.f32 %v1228, %v1854
  %v2025 = vadd.f32 %v1231, %v1857
  %v2026 = vadd.f32 %v1236, %v1862
  %v2027 = vadd.f32 %v1239, %v1865
  %v2028 = vadd.f32 %v1244, %v1870
  %v2029 = vadd.f32 %v1247, %v1873
  %v2030 = vadd.f32 %v1252, %v1878
  %v2031 = vadd.f32 %v1255, %v1881
  %v2032 = vadd.f32 %v1260, %v1886
  %v2033 = vadd.f32 %v1263, %v1889
  %v2034 = vadd.f32 %v1268, %v1894
  %v2035 = vadd.f32 %v1271, %v1897
  %v2036 = vadd.f32 %v1276, %v1902
  %v2037 = vadd.f32 %v1279, %v1905
  %v2038 = vadd.f32 %v1284, %v1910
  %v2039 = vadd.f32 %v1287, %v1913
  %v2040 = vadd.f32 %v1292, %v1918
  %v2041 = vadd.f32 %v1295, %v1921
  %v2042 = vadd.f32 %v1300, %v1926
  %v2043 = vadd.f32 %v1303, %v1929
  %v2044 = vadd.f32 %v1308, %v1934
  %v2045 = vadd.f32 %v1311, %v1937
  %v2046 = vadd.f32 %v1316, %v1942
  %v2047 = vadd.f32 %v1319, %v1945
  %v2048 = vadd.f32 %v1324, %v1950
  %v2049 = vadd.f32 %v1327, %v1953
  %v2050 = vadd.f32 %v1332, %v1958
  %v2051 = vadd.f32 %v1335, %v1961
  %v2052 = vadd.f32 %v1340, %v1966
  %v2053 = vadd.f32 %v1343, %v1969
  %v2054 = vadd.f32 %v1348, %v1974
  %v2055 = vadd.f32 %v1351, %v1977
  %v2056 = vadd.f32 %v1356, %v1982
  %v2057 = vadd.f32 %v1359, %v1985
  %v2058 = vadd.f32 %v1364, %v1990
  %v2059 = vadd.f32 %v1367, %v1993
  %s2060 = scalar_lea.vmem %s0, 40
  %v2061 = vld [vmem:[%s2060] sm:$0xf]
  %v2062 = vld [vmem:[%s2060 + $0x4] sm:$0xf]
  %v2063 = vld [vmem:[%s2060 + $0x8] sm:$0xf]
  %v2064 = vld [vmem:[%s2060 + $0xc] sm:$0xf]
  %v2065 = vld [vmem:[%s2060 + $0x10] sm:$0xf]
  %v2066 = vld [vmem:[%s2060 + $0x14] sm:$0xf]
  %v2067 = vld [vmem:[%s2060 + $0x18] sm:$0xf]
  %v2068 = vld [vmem:[%s2060 + $0x1c] sm:$0xf]
  %v2069 = vld [vmem:[%s2060 + $0x24] sm:$0xf]
  %v2070 = vld [vmem:[%s2060 + $0x28] sm:$0xf]
  %v2071 = vld [vmem:[%s2060 + $0x2c] sm:$0xf]
  %v2072 = vld [vmem:[%s2060 + $0x30] sm:$0xf]
  %v2073 = vld [vmem:[%s2060 + $0x34] sm:$0xf]
  %v2074 = vld [vmem:[%s2060 + $0x38] sm:$0xf]
  %v2075 = vld [vmem:[%s2060 + $0x3c] sm:$0xf]
  %v2076 = vld [vmem:[%s2060 + $0x40] sm:$0xf]
  %v2077 = vld [vmem:[%s2060 + $0x48] sm:$0xf]
  %v2078 = vld [vmem:[%s2060 + $0x4c] sm:$0xf]
  %v2079 = vld [vmem:[%s2060 + $0x50] sm:$0xf]
  %v2080 = vld [vmem:[%s2060 + $0x54] sm:$0xf]
  %v2081 = vld [vmem:[%s2060 + $0x58] sm:$0xf]
  %v2082 = vld [vmem:[%s2060 + $0x5c] sm:$0xf]
  %v2083 = vld [vmem:[%s2060 + $0x60] sm:$0xf]
  %v2084 = vld [vmem:[%s2060 + $0x64] sm:$0xf]
  %v2085 = vld [vmem:[%s2060 + $0x6c] sm:$0xf]
  %v2086 = vld [vmem:[%s2060 + $0x70] sm:$0xf]
  %v2087 = vld [vmem:[%s2060 + $0x74] sm:$0xf]
  %v2088 = vld [vmem:[%s2060 + $0x78] sm:$0xf]
  %v2089 = vld [vmem:[%s2060 + $0x7c] sm:$0xf]
  %v2090 = vld [vmem:[%s2060 + $0x80] sm:$0xf]
  %v2091 = vld [vmem:[%s2060 + $0x84] sm:$0xf]
  %v2092 = vld [vmem:[%s2060 + $0x88] sm:$0xf]
  %v2093 = vld [vmem:[%s2060 + $0x90] sm:$0xf]
  %v2094 = vld [vmem:[%s2060 + $0x94] sm:$0xf]
  %v2095 = vld [vmem:[%s2060 + $0x98] sm:$0xf]
  %v2096 = vld [vmem:[%s2060 + $0x9c] sm:$0xf]
  %v2097 = vld [vmem:[%s2060 + $0xa0] sm:$0xf]
  %v2098 = vld [vmem:[%s2060 + $0xa4] sm:$0xf]
  %v2099 = vld [vmem:[%s2060 + $0xa8] sm:$0xf]
  %v2100 = vld [vmem:[%s2060 + $0xac] sm:$0xf]
  %v2101 = vld [vmem:[%s2060 + $0xb4] sm:$0xf]
  %v2102 = vld [vmem:[%s2060 + $0xb8] sm:$0xf]
  %v2103 = vld [vmem:[%s2060 + $0xbc] sm:$0xf]
  %v2104 = vld [vmem:[%s2060 + $0xc0] sm:$0xf]
  %v2105 = vld [vmem:[%s2060 + $0xc4] sm:$0xf]
  %v2106 = vld [vmem:[%s2060 + $0xc8] sm:$0xf]
  %v2107 = vld [vmem:[%s2060 + $0xcc] sm:$0xf]
  %v2108 = vld [vmem:[%s2060 + $0xd0] sm:$0xf]
  %v2109 = vld [vmem:[%s2060 + $0xd8] sm:$0xf]
  %v2110 = vld [vmem:[%s2060 + $0xdc] sm:$0xf]
  %v2111 = vld [vmem:[%s2060 + $0xe0] sm:$0xf]
  %v2112 = vld [vmem:[%s2060 + $0xe4] sm:$0xf]
  %v2113 = vld [vmem:[%s2060 + $0xe8] sm:$0xf]
  %v2114 = vld [vmem:[%s2060 + $0xec] sm:$0xf]
  %v2115 = vld [vmem:[%s2060 + $0xf0] sm:$0xf]
  %v2116 = vld [vmem:[%s2060 + $0xf4] sm:$0xf]
  %v2117 = vld [vmem:[%s2060 + $0xfc] sm:$0xf]
  %v2118 = vld [vmem:[%s2060 + $0x100] sm:$0xf]
  %v2119 = vld [vmem:[%s2060 + $0x104] sm:$0xf]
  %v2120 = vld [vmem:[%s2060 + $0x108] sm:$0xf]
  %v2121 = vld [vmem:[%s2060 + $0x10c] sm:$0xf]
  %v2122 = vld [vmem:[%s2060 + $0x110] sm:$0xf]
  %v2123 = vld [vmem:[%s2060 + $0x114] sm:$0xf]
  %v2124 = vld [vmem:[%s2060 + $0x118] sm:$0xf]
  %v2125 = vld [vmem:[%s1 + $0x30] sm:$0xf]
  %v2126 = vld [vmem:[%s1 + $0x34] sm:$0xf]
  %v2127 = vld [vmem:[%s1 + $0x38] sm:$0xf]
  %v2128 = vld [vmem:[%s1 + $0x3c] sm:$0xf]
  %v2193 = vunpack.c.l.b16 %v2061
  %v2194 = vunpack.c.l.b16 %v2062
  %v2195 = vunpack.c.l.b16 %v2063
  %v2196 = vunpack.c.l.b16 %v2064
  %v2197 = vunpack.c.l.b16 %v2065
  %v2198 = vunpack.c.l.b16 %v2066
  %v2199 = vunpack.c.l.b16 %v2067
  %v2200 = vunpack.c.l.b16 %v2068
  %v2201 = vunpack.c.l.b16 %v2069
  %v2202 = vunpack.c.l.b16 %v2070
  %v2203 = vunpack.c.l.b16 %v2071
  %v2204 = vunpack.c.l.b16 %v2072
  %v2205 = vunpack.c.l.b16 %v2073
  %v2206 = vunpack.c.l.b16 %v2074
  %v2207 = vunpack.c.l.b16 %v2075
  %v2208 = vunpack.c.l.b16 %v2076
  %v2209 = vunpack.c.l.b16 %v2077
  %v2210 = vunpack.c.l.b16 %v2078
  %v2211 = vunpack.c.l.b16 %v2079
  %v2212 = vunpack.c.l.b16 %v2080
  %v2213 = vunpack.c.l.b16 %v2081
  %v2214 = vunpack.c.l.b16 %v2082
  %v2215 = vunpack.c.l.b16 %v2083
  %v2216 = vunpack.c.l.b16 %v2084
  %v2217 = vunpack.c.l.b16 %v2085
  %v2218 = vunpack.c.l.b16 %v2086
  %v2219 = vunpack.c.l.b16 %v2087
  %v2220 = vunpack.c.l.b16 %v2088
  %v2221 = vunpack.c.l.b16 %v2089
  %v2222 = vunpack.c.l.b16 %v2090
  %v2223 = vunpack.c.l.b16 %v2091
  %v2224 = vunpack.c.l.b16 %v2092
  %v2225 = vunpack.c.l.b16 %v2093
  %v2226 = vunpack.c.l.b16 %v2094
  %v2227 = vunpack.c.l.b16 %v2095
  %v2228 = vunpack.c.l.b16 %v2096
  %v2229 = vunpack.c.l.b16 %v2097
  %v2230 = vunpack.c.l.b16 %v2098
  %v2231 = vunpack.c.l.b16 %v2099
  %v2232 = vunpack.c.l.b16 %v2100
  %v2233 = vunpack.c.l.b16 %v2101
  %v2234 = vunpack.c.l.b16 %v2102
  %v2235 = vunpack.c.l.b16 %v2103
  %v2236 = vunpack.c.l.b16 %v2104
  %v2237 = vunpack.c.l.b16 %v2105
  %v2238 = vunpack.c.l.b16 %v2106
  %v2239 = vunpack.c.l.b16 %v2107
  %v2240 = vunpack.c.l.b16 %v2108
  %v2241 = vunpack.c.l.b16 %v2109
  %v2242 = vunpack.c.l.b16 %v2110
  %v2243 = vunpack.c.l.b16 %v2111
  %v2244 = vunpack.c.l.b16 %v2112
  %v2245 = vunpack.c.l.b16 %v2113
  %v2246 = vunpack.c.l.b16 %v2114
  %v2247 = vunpack.c.l.b16 %v2115
  %v2248 = vunpack.c.l.b16 %v2116
  %v2249 = vunpack.c.l.b16 %v2117
  %v2250 = vunpack.c.l.b16 %v2118
  %v2251 = vunpack.c.l.b16 %v2119
  %v2252 = vunpack.c.l.b16 %v2120
  %v2253 = vunpack.c.l.b16 %v2121
  %v2254 = vunpack.c.l.b16 %v2122
  %v2255 = vunpack.c.l.b16 %v2123
  %v2256 = vunpack.c.l.b16 %v2124
  %v2257 = vpack.c.b16 %v2194, %v2193
  %v2258 = vpack.c.b16 %v2196, %v2195
  %v2259 = vpack.c.b16 %v2198, %v2197
  %v2260 = vpack.c.b16 %v2200, %v2199
  %v2261 = vpack.c.b16 %v2202, %v2201
  %v2262 = vpack.c.b16 %v2204, %v2203
  %v2263 = vpack.c.b16 %v2206, %v2205
  %v2264 = vpack.c.b16 %v2208, %v2207
  %v2265 = vpack.c.b16 %v2210, %v2209
  %v2266 = vpack.c.b16 %v2212, %v2211
  %v2267 = vpack.c.b16 %v2214, %v2213
  %v2268 = vpack.c.b16 %v2216, %v2215
  %v2269 = vpack.c.b16 %v2218, %v2217
  %v2270 = vpack.c.b16 %v2220, %v2219
  %v2271 = vpack.c.b16 %v2222, %v2221
  %v2272 = vpack.c.b16 %v2224, %v2223
  %v2273 = vpack.c.b16 %v2226, %v2225
  %v2274 = vpack.c.b16 %v2228, %v2227
  %v2275 = vpack.c.b16 %v2230, %v2229
  %v2276 = vpack.c.b16 %v2232, %v2231
  %v2277 = vpack.c.b16 %v2234, %v2233
  %v2278 = vpack.c.b16 %v2236, %v2235
  %v2279 = vpack.c.b16 %v2238, %v2237
  %v2280 = vpack.c.b16 %v2240, %v2239
  %v2281 = vpack.c.b16 %v2242, %v2241
  %v2282 = vpack.c.b16 %v2244, %v2243
  %v2283 = vpack.c.b16 %v2246, %v2245
  %v2284 = vpack.c.b16 %v2248, %v2247
  %v2285 = vpack.c.b16 %v2250, %v2249
  %v2286 = vpack.c.b16 %v2252, %v2251
  %v2287 = vpack.c.b16 %v2254, %v2253
  %v2288 = vpack.c.b16 %v2256, %v2255
  %v2293 = vunpack.c.l.b16 %v2125
  %v2294 = vunpack.c.l.b16 %v2126
  %v2295 = vunpack.c.l.b16 %v2127
  %v2296 = vunpack.c.l.b16 %v2128
  %v2297 = vpack.c.b16 %v2294, %v2293
  %v2298 = vpack.c.b16 %v2296, %v2295
  %v2302 = vsel %vm427, %v2257, 0
  %v2305 = vsel %vm427, %v2258, 0
  %v2308 = vsel %vm427, %v2259, 0
  %v2311 = vsel %vm427, %v2260, 0
  %v2314 = vsel %vm427, %v2261, 0
  %v2317 = vsel %vm427, %v2262, 0
  %v2320 = vsel %vm427, %v2263, 0
  %v2323 = vsel %vm427, %v2264, 0
  %v2326 = vsel %vm427, %v2265, 0
  %v2329 = vsel %vm427, %v2266, 0
  %v2332 = vsel %vm427, %v2267, 0
  %v2335 = vsel %vm427, %v2268, 0
  %v2338 = vsel %vm427, %v2269, 0
  %v2341 = vsel %vm427, %v2270, 0
  %v2344 = vsel %vm427, %v2271, 0
  %v2347 = vsel %vm427, %v2272, 0
  %v2350 = vsel %vm427, %v2273, 0
  %v2353 = vsel %vm427, %v2274, 0
  %v2356 = vsel %vm427, %v2275, 0
  %v2359 = vsel %vm427, %v2276, 0
  %v2362 = vsel %vm427, %v2277, 0
  %v2365 = vsel %vm427, %v2278, 0
  %v2368 = vsel %vm427, %v2279, 0
  %v2371 = vsel %vm427, %v2280, 0
  %v2374 = vsel %vm427, %v2281, 0
  %v2377 = vsel %vm427, %v2282, 0
  %v2380 = vsel %vm427, %v2283, 0
  %v2383 = vsel %vm427, %v2284, 0
  %v2386 = vsel %vm427, %v2285, 0
  %v2389 = vsel %vm427, %v2286, 0
  %v2392 = vsel %vm427, %v2287, 0
  %v2395 = vsel %vm427, %v2288, 0
  %2397 = vmatprep.subr.bf16.mxu0 0
  %2398 = vmatpush1.bf16.msra.mxu0 %v2297
  %2399 = vmatprep.subr.bf16.mxu0 0
  %2400 = vmatpush1.bf16.msra.mxu0 %v2298
  %2401 = vmatprep.subr.bf16.mxu0 0
  %2402 = vmatpush1.bf16.msra.mxu0 0
  %2403 = vmatprep.subr.bf16.mxu0 0
  %2404 = vmatpush1.bf16.msra.mxu0 0
  %2405 = vmatprep.subr.bf16.mxu0 0
  %2406 = vmatpush1.bf16.msra.mxu0 0
  %2407 = vmatprep.subr.bf16.mxu0 0
  %2408 = vmatpush1.bf16.msra.mxu0 0
  %2409 = vmatprep.subr.bf16.mxu0 0
  %2410 = vmatpush1.bf16.msra.mxu0 0
  %2411 = vmatprep.subr.bf16.mxu0 0
  %2412 = vmatpush1.bf16.msra.mxu0 0
  %2413 = vmatprep.subr.bf16.mxu0 0
  %2414 = vmatpush1.bf16.msra.mxu0 0
  %2415 = vmatprep.subr.bf16.mxu0 0
  %2416 = vmatpush1.bf16.msra.mxu0 0
  %2417 = vmatprep.subr.bf16.mxu0 0
  %2418 = vmatpush1.bf16.msra.mxu0 0
  %2419 = vmatprep.subr.bf16.mxu0 0
  %2420 = vmatpush1.bf16.msra.mxu0 0
  %2421 = vmatprep.subr.bf16.mxu0 0
  %2422 = vmatpush1.bf16.msra.mxu0 0
  %2423 = vmatprep.subr.bf16.mxu0 0
  %2424 = vmatpush1.bf16.msra.mxu0 0
  %2425 = vmatprep.subr.bf16.mxu0 0
  %2426 = vmatpush1.bf16.msra.mxu0 0
  %2427 = vmatprep.subr.bf16.mxu0 0
  %2428 = vmatpush1.bf16.msra.mxu0 0
  %2429 = vmatprep.mubr.bf16.mxu0 0
  %2430 = vmatmul.mubr.bf16.gmra.mrb[0].mxu0 %v2302
  %v2431 = vpop.f32.mrb[0].mxu0
  %v2432 = vadd.f32 0.0, %v2431
  %v2433 = vpop.f32.mrb[0].mxu0
  %v2434 = vpop.f32.mrb[0].mxu0
  %v2435 = vadd.f32 0.0, %v2434
  %v2436 = vpop.f32.mrb[0].mxu0
  %2437 = vmatprep.mubr.bf16.mxu0 0
  %2438 = vmatmul.mubr.bf16.gmra.mrb[0].mxu0 %v2305
  %v2439 = vpop.f32.mrb[0].mxu0
  %v2440 = vadd.f32 0.0, %v2439
  %v2441 = vpop.f32.mrb[0].mxu0
  %v2442 = vpop.f32.mrb[0].mxu0
  %v2443 = vadd.f32 0.0, %v2442
  %v2444 = vpop.f32.mrb[0].mxu0
  %2445 = vmatprep.mubr.bf16.mxu0 0
  %2446 = vmatmul.mubr.bf16.gmra.mrb[0].mxu0 %v2308
  %v2447 = vpop.f32.mrb[0].mxu0
  %v2448 = vadd.f32 0.0, %v2447
  %v2449 = vpop.f32.mrb[0].mxu0
  %v2450 = vpop.f32.mrb[0].mxu0
  %v2451 = vadd.f32 0.0, %v2450
  %v2452 = vpop.f32.mrb[0].mxu0
  %2453 = vmatprep.mubr.bf16.mxu0 0
  %2454 = vmatmul.mubr.bf16.gmra.mrb[0].mxu0 %v2311
  %v2455 = vpop.f32.mrb[0].mxu0
  %v2456 = vadd.f32 0.0, %v2455
  %v2457 = vpop.f32.mrb[0].mxu0
  %v2458 = vpop.f32.mrb[0].mxu0
  %v2459 = vadd.f32 0.0, %v2458
  %v2460 = vpop.f32.mrb[0].mxu0
  %2461 = vmatprep.mubr.bf16.mxu0 0
  %2462 = vmatmul.mubr.bf16.gmra.mrb[0].mxu0 %v2314
  %v2463 = vpop.f32.mrb[0].mxu0
  %v2464 = vadd.f32 0.0, %v2463
  %v2465 = vpop.f32.mrb[0].mxu0
  %v2466 = vpop.f32.mrb[0].mxu0
  %v2467 = vadd.f32 0.0, %v2466
  %v2468 = vpop.f32.mrb[0].mxu0
  %2469 = vmatprep.mubr.bf16.mxu0 0
  %2470 = vmatmul.mubr.bf16.gmra.mrb[0].mxu0 %v2317
  %v2471 = vpop.f32.mrb[0].mxu0
  %v2472 = vadd.f32 0.0, %v2471
  %v2473 = vpop.f32.mrb[0].mxu0
  %v2474 = vpop.f32.mrb[0].mxu0
  %v2475 = vadd.f32 0.0, %v2474
  %v2476 = vpop.f32.mrb[0].mxu0
  %2477 = vmatprep.mubr.bf16.mxu0 0
  %2478 = vmatmul.mubr.bf16.gmra.mrb[0].mxu0 %v2320
  %v2479 = vpop.f32.mrb[0].mxu0
  %v2480 = vadd.f32 0.0, %v2479
  %v2481 = vpop.f32.mrb[0].mxu0
  %v2482 = vpop.f32.mrb[0].mxu0
  %v2483 = vadd.f32 0.0, %v2482
  %v2484 = vpop.f32.mrb[0].mxu0
  %2485 = vmatprep.mubr.bf16.mxu0 0
  %2486 = vmatmul.mubr.bf16.gmra.mrb[0].mxu0 %v2323
  %v2487 = vpop.f32.mrb[0].mxu0
  %v2488 = vadd.f32 0.0, %v2487
  %v2489 = vpop.f32.mrb[0].mxu0
  %v2490 = vpop.f32.mrb[0].mxu0
  %v2491 = vadd.f32 0.0, %v2490
  %v2492 = vpop.f32.mrb[0].mxu0
  %2493 = vmatprep.mubr.bf16.mxu0 0
  %2494 = vmatmul.mubr.bf16.gmra.mrb[0].mxu0 %v2326
  %v2495 = vpop.f32.mrb[0].mxu0
  %v2496 = vadd.f32 0.0, %v2495
  %v2497 = vpop.f32.mrb[0].mxu0
  %v2498 = vpop.f32.mrb[0].mxu0
  %v2499 = vadd.f32 0.0, %v2498
  %v2500 = vpop.f32.mrb[0].mxu0
  %2501 = vmatprep.mubr.bf16.mxu0 0
  %2502 = vmatmul.mubr.bf16.gmra.mrb[0].mxu0 %v2329
  %v2503 = vpop.f32.mrb[0].mxu0
  %v2504 = vadd.f32 0.0, %v2503
  %v2505 = vpop.f32.mrb[0].mxu0
  %v2506 = vpop.f32.mrb[0].mxu0
  %v2507 = vadd.f32 0.0, %v2506
  %v2508 = vpop.f32.mrb[0].mxu0
  %2509 = vmatprep.mubr.bf16.mxu0 0
  %2510 = vmatmul.mubr.bf16.gmra.mrb[0].mxu0 %v2332
  %v2511 = vpop.f32.mrb[0].mxu0
  %v2512 = vadd.f32 0.0, %v2511
  %v2513 = vpop.f32.mrb[0].mxu0
  %v2514 = vpop.f32.mrb[0].mxu0
  %v2515 = vadd.f32 0.0, %v2514
  %v2516 = vpop.f32.mrb[0].mxu0
  %2517 = vmatprep.mubr.bf16.mxu0 0
  %2518 = vmatmul.mubr.bf16.gmra.mrb[0].mxu0 %v2335
  %v2519 = vpop.f32.mrb[0].mxu0
  %v2520 = vadd.f32 0.0, %v2519
  %v2521 = vpop.f32.mrb[0].mxu0
  %v2522 = vpop.f32.mrb[0].mxu0
  %v2523 = vadd.f32 0.0, %v2522
  %v2524 = vpop.f32.mrb[0].mxu0
  %2525 = vmatprep.mubr.bf16.mxu0 0
  %2526 = vmatmul.mubr.bf16.gmra.mrb[0].mxu0 %v2338
  %v2527 = vpop.f32.mrb[0].mxu0
  %v2528 = vadd.f32 0.0, %v2527
  %v2529 = vpop.f32.mrb[0].mxu0
  %v2530 = vpop.f32.mrb[0].mxu0
  %v2531 = vadd.f32 0.0, %v2530
  %v2532 = vpop.f32.mrb[0].mxu0
  %2533 = vmatprep.mubr.bf16.mxu0 0
  %2534 = vmatmul.mubr.bf16.gmra.mrb[0].mxu0 %v2341
  %v2535 = vpop.f32.mrb[0].mxu0
  %v2536 = vadd.f32 0.0, %v2535
  %v2537 = vpop.f32.mrb[0].mxu0
  %v2538 = vpop.f32.mrb[0].mxu0
  %v2539 = vadd.f32 0.0, %v2538
  %v2540 = vpop.f32.mrb[0].mxu0
  %2541 = vmatprep.mubr.bf16.mxu0 0
  %2542 = vmatmul.mubr.bf16.gmra.mrb[0].mxu0 %v2344
  %v2543 = vpop.f32.mrb[0].mxu0
  %v2544 = vadd.f32 0.0, %v2543
  %v2545 = vpop.f32.mrb[0].mxu0
  %v2546 = vpop.f32.mrb[0].mxu0
  %v2547 = vadd.f32 0.0, %v2546
  %v2548 = vpop.f32.mrb[0].mxu0
  %2549 = vmatprep.mubr.bf16.mxu0 0
  %2550 = vmatmul.mubr.bf16.gmra.mrb[0].mxu0 %v2347
  %v2551 = vpop.f32.mrb[0].mxu0
  %v2552 = vadd.f32 0.0, %v2551
  %v2553 = vpop.f32.mrb[0].mxu0
  %v2554 = vpop.f32.mrb[0].mxu0
  %v2555 = vadd.f32 0.0, %v2554
  %v2556 = vpop.f32.mrb[0].mxu0
  %2557 = vmatprep.mubr.bf16.mxu0 0
  %2558 = vmatmul.mubr.bf16.gmra.mrb[0].mxu0 %v2350
  %v2559 = vpop.f32.mrb[0].mxu0
  %v2560 = vadd.f32 0.0, %v2559
  %v2561 = vpop.f32.mrb[0].mxu0
  %v2562 = vpop.f32.mrb[0].mxu0
  %v2563 = vadd.f32 0.0, %v2562
  %v2564 = vpop.f32.mrb[0].mxu0
  %2565 = vmatprep.mubr.bf16.mxu0 0
  %2566 = vmatmul.mubr.bf16.gmra.mrb[0].mxu0 %v2353
  %v2567 = vpop.f32.mrb[0].mxu0
  %v2568 = vadd.f32 0.0, %v2567
  %v2569 = vpop.f32.mrb[0].mxu0
  %v2570 = vpop.f32.mrb[0].mxu0
  %v2571 = vadd.f32 0.0, %v2570
  %v2572 = vpop.f32.mrb[0].mxu0
  %2573 = vmatprep.mubr.bf16.mxu0 0
  %2574 = vmatmul.mubr.bf16.gmra.mrb[0].mxu0 %v2356
  %v2575 = vpop.f32.mrb[0].mxu0
  %v2576 = vadd.f32 0.0, %v2575
  %v2577 = vpop.f32.mrb[0].mxu0
  %v2578 = vpop.f32.mrb[0].mxu0
  %v2579 = vadd.f32 0.0, %v2578
  %v2580 = vpop.f32.mrb[0].mxu0
  %2581 = vmatprep.mubr.bf16.mxu0 0
  %2582 = vmatmul.mubr.bf16.gmra.mrb[0].mxu0 %v2359
  %v2583 = vpop.f32.mrb[0].mxu0
  %v2584 = vadd.f32 0.0, %v2583
  %v2585 = vpop.f32.mrb[0].mxu0
  %v2586 = vpop.f32.mrb[0].mxu0
  %v2587 = vadd.f32 0.0, %v2586
  %v2588 = vpop.f32.mrb[0].mxu0
  %2589 = vmatprep.mubr.bf16.mxu0 0
  %2590 = vmatmul.mubr.bf16.gmra.mrb[0].mxu0 %v2362
  %v2591 = vpop.f32.mrb[0].mxu0
  %v2592 = vadd.f32 0.0, %v2591
  %v2593 = vpop.f32.mrb[0].mxu0
  %v2594 = vpop.f32.mrb[0].mxu0
  %v2595 = vadd.f32 0.0, %v2594
  %v2596 = vpop.f32.mrb[0].mxu0
  %2597 = vmatprep.mubr.bf16.mxu0 0
  %2598 = vmatmul.mubr.bf16.gmra.mrb[0].mxu0 %v2365
  %v2599 = vpop.f32.mrb[0].mxu0
  %v2600 = vadd.f32 0.0, %v2599
  %v2601 = vpop.f32.mrb[0].mxu0
  %v2602 = vpop.f32.mrb[0].mxu0
  %v2603 = vadd.f32 0.0, %v2602
  %v2604 = vpop.f32.mrb[0].mxu0
  %2605 = vmatprep.mubr.bf16.mxu0 0
  %2606 = vmatmul.mubr.bf16.gmra.mrb[0].mxu0 %v2368
  %v2607 = vpop.f32.mrb[0].mxu0
  %v2608 = vadd.f32 0.0, %v2607
  %v2609 = vpop.f32.mrb[0].mxu0
  %v2610 = vpop.f32.mrb[0].mxu0
  %v2611 = vadd.f32 0.0, %v2610
  %v2612 = vpop.f32.mrb[0].mxu0
  %2613 = vmatprep.mubr.bf16.mxu0 0
  %2614 = vmatmul.mubr.bf16.gmra.mrb[0].mxu0 %v2371
  %v2615 = vpop.f32.mrb[0].mxu0
  %v2616 = vadd.f32 0.0, %v2615
  %v2617 = vpop.f32.mrb[0].mxu0
  %v2618 = vpop.f32.mrb[0].mxu0
  %v2619 = vadd.f32 0.0, %v2618
  %v2620 = vpop.f32.mrb[0].mxu0
  %2621 = vmatprep.mubr.bf16.mxu0 0
  %2622 = vmatmul.mubr.bf16.gmra.mrb[0].mxu0 %v2374
  %v2623 = vpop.f32.mrb[0].mxu0
  %v2624 = vadd.f32 0.0, %v2623
  %v2625 = vpop.f32.mrb[0].mxu0
  %v2626 = vpop.f32.mrb[0].mxu0
  %v2627 = vadd.f32 0.0, %v2626
  %v2628 = vpop.f32.mrb[0].mxu0
  %2629 = vmatprep.mubr.bf16.mxu0 0
  %2630 = vmatmul.mubr.bf16.gmra.mrb[0].mxu0 %v2377
  %v2631 = vpop.f32.mrb[0].mxu0
  %v2632 = vadd.f32 0.0, %v2631
  %v2633 = vpop.f32.mrb[0].mxu0
  %v2634 = vpop.f32.mrb[0].mxu0
  %v2635 = vadd.f32 0.0, %v2634
  %v2636 = vpop.f32.mrb[0].mxu0
  %2637 = vmatprep.mubr.bf16.mxu0 0
  %2638 = vmatmul.mubr.bf16.gmra.mrb[0].mxu0 %v2380
  %v2639 = vpop.f32.mrb[0].mxu0
  %v2640 = vadd.f32 0.0, %v2639
  %v2641 = vpop.f32.mrb[0].mxu0
  %v2642 = vpop.f32.mrb[0].mxu0
  %v2643 = vadd.f32 0.0, %v2642
  %v2644 = vpop.f32.mrb[0].mxu0
  %2645 = vmatprep.mubr.bf16.mxu0 0
  %2646 = vmatmul.mubr.bf16.gmra.mrb[0].mxu0 %v2383
  %v2647 = vpop.f32.mrb[0].mxu0
  %v2648 = vadd.f32 0.0, %v2647
  %v2649 = vpop.f32.mrb[0].mxu0
  %v2650 = vpop.f32.mrb[0].mxu0
  %v2651 = vadd.f32 0.0, %v2650
  %v2652 = vpop.f32.mrb[0].mxu0
  %2653 = vmatprep.mubr.bf16.mxu0 0
  %2654 = vmatmul.mubr.bf16.gmra.mrb[0].mxu0 %v2386
  %v2655 = vpop.f32.mrb[0].mxu0
  %v2656 = vadd.f32 0.0, %v2655
  %v2657 = vpop.f32.mrb[0].mxu0
  %v2658 = vpop.f32.mrb[0].mxu0
  %v2659 = vadd.f32 0.0, %v2658
  %v2660 = vpop.f32.mrb[0].mxu0
  %2661 = vmatprep.mubr.bf16.mxu0 0
  %2662 = vmatmul.mubr.bf16.gmra.mrb[0].mxu0 %v2389
  %v2663 = vpop.f32.mrb[0].mxu0
  %v2664 = vadd.f32 0.0, %v2663
  %v2665 = vpop.f32.mrb[0].mxu0
  %v2666 = vpop.f32.mrb[0].mxu0
  %v2667 = vadd.f32 0.0, %v2666
  %v2668 = vpop.f32.mrb[0].mxu0
  %2669 = vmatprep.mubr.bf16.mxu0 0
  %2670 = vmatmul.mubr.bf16.gmra.mrb[0].mxu0 %v2392
  %v2671 = vpop.f32.mrb[0].mxu0
  %v2672 = vadd.f32 0.0, %v2671
  %v2673 = vpop.f32.mrb[0].mxu0
  %v2674 = vpop.f32.mrb[0].mxu0
  %v2675 = vadd.f32 0.0, %v2674
  %v2676 = vpop.f32.mrb[0].mxu0
  %2677 = vmatprep.mubr.bf16.mxu0 0
  %2678 = vmatmul.mubr.bf16.gmra.mrb[0].mxu0 %v2395
  %v2679 = vpop.f32.mrb[0].mxu0
  %v2680 = vadd.f32 0.0, %v2679
  %v2681 = vpop.f32.mrb[0].mxu0
  %v2682 = vpop.f32.mrb[0].mxu0
  %v2683 = vadd.f32 0.0, %v2682
  %v2684 = vpop.f32.mrb[0].mxu0
  %2685 = vdwg.mxu0
  %v2686 = vadd.f32 %v1996, %v2432
  %v2687 = vadd.f32 %v1997, %v2435
  %v2688 = vadd.f32 %v1998, %v2440
  %v2689 = vadd.f32 %v1999, %v2443
  %v2690 = vadd.f32 %v2000, %v2448
  %v2691 = vadd.f32 %v2001, %v2451
  %v2692 = vadd.f32 %v2002, %v2456
  %v2693 = vadd.f32 %v2003, %v2459
  %v2694 = vadd.f32 %v2004, %v2464
  %v2695 = vadd.f32 %v2005, %v2467
  %v2696 = vadd.f32 %v2006, %v2472
  %v2697 = vadd.f32 %v2007, %v2475
  %v2698 = vadd.f32 %v2008, %v2480
  %v2699 = vadd.f32 %v2009, %v2483
  %v2700 = vadd.f32 %v2010, %v2488
  %v2701 = vadd.f32 %v2011, %v2491
  %v2702 = vadd.f32 %v2012, %v2496
  %v2703 = vadd.f32 %v2013, %v2499
  %v2704 = vadd.f32 %v2014, %v2504
  %v2705 = vadd.f32 %v2015, %v2507
  %v2706 = vadd.f32 %v2016, %v2512
  %v2707 = vadd.f32 %v2017, %v2515
  %v2708 = vadd.f32 %v2018, %v2520
  %v2709 = vadd.f32 %v2019, %v2523
  %v2710 = vadd.f32 %v2020, %v2528
  %v2711 = vadd.f32 %v2021, %v2531
  %v2712 = vadd.f32 %v2022, %v2536
  %v2713 = vadd.f32 %v2023, %v2539
  %v2714 = vadd.f32 %v2024, %v2544
  %v2715 = vadd.f32 %v2025, %v2547
  %v2716 = vadd.f32 %v2026, %v2552
  %v2717 = vadd.f32 %v2027, %v2555
  %v2718 = vadd.f32 %v2028, %v2560
  %v2719 = vadd.f32 %v2029, %v2563
  %v2720 = vadd.f32 %v2030, %v2568
  %v2721 = vadd.f32 %v2031, %v2571
  %v2722 = vadd.f32 %v2032, %v2576
  %v2723 = vadd.f32 %v2033, %v2579
  %v2724 = vadd.f32 %v2034, %v2584
  %v2725 = vadd.f32 %v2035, %v2587
  %v2726 = vadd.f32 %v2036, %v2592
  %v2727 = vadd.f32 %v2037, %v2595
  %v2728 = vadd.f32 %v2038, %v2600
  %v2729 = vadd.f32 %v2039, %v2603
  %v2730 = vadd.f32 %v2040, %v2608
  %v2731 = vadd.f32 %v2041, %v2611
  %v2732 = vadd.f32 %v2042, %v2616
  %v2733 = vadd.f32 %v2043, %v2619
  %v2734 = vadd.f32 %v2044, %v2624
  %v2735 = vadd.f32 %v2045, %v2627
  %v2736 = vadd.f32 %v2046, %v2632
  %v2737 = vadd.f32 %v2047, %v2635
  %v2738 = vadd.f32 %v2048, %v2640
  %v2739 = vadd.f32 %v2049, %v2643
  %v2740 = vadd.f32 %v2050, %v2648
  %v2741 = vadd.f32 %v2051, %v2651
  %v2742 = vadd.f32 %v2052, %v2656
  %v2743 = vadd.f32 %v2053, %v2659
  %v2744 = vadd.f32 %v2054, %v2664
  %v2745 = vadd.f32 %v2055, %v2667
  %v2746 = vadd.f32 %v2056, %v2672
  %v2747 = vadd.f32 %v2057, %v2675
  %v2748 = vadd.f32 %v2058, %v2680
  %v2749 = vadd.f32 %v2059, %v2683
  %v2750 = vld [vmem:[%s2] sm:$0x1]
  %v2752 = vlaneseq
  %v2753 = vshrl.u32 %v2752, 7
  %v2754 = vsub.s32 0, %v2753
  %v2755 = vrot.slane %v2750, %v2754
  %v2757 = vadd.f32 %v2686, %v2755
  %v2758 = vadd.f32 %v2687, %v2755
  %v2759 = vadd.f32 %v2688, %v2755
  %v2760 = vadd.f32 %v2689, %v2755
  %v2761 = vadd.f32 %v2690, %v2755
  %v2762 = vadd.f32 %v2691, %v2755
  %v2763 = vadd.f32 %v2692, %v2755
  %v2764 = vadd.f32 %v2693, %v2755
  %v2765 = vadd.f32 %v2694, %v2755
  %v2766 = vadd.f32 %v2695, %v2755
  %v2767 = vadd.f32 %v2696, %v2755
  %v2768 = vadd.f32 %v2697, %v2755
  %v2769 = vadd.f32 %v2698, %v2755
  %v2770 = vadd.f32 %v2699, %v2755
  %v2771 = vadd.f32 %v2700, %v2755
  %v2772 = vadd.f32 %v2701, %v2755
  %v2773 = vadd.f32 %v2702, %v2755
  %v2774 = vadd.f32 %v2703, %v2755
  %v2775 = vadd.f32 %v2704, %v2755
  %v2776 = vadd.f32 %v2705, %v2755
  %v2777 = vadd.f32 %v2706, %v2755
  %v2778 = vadd.f32 %v2707, %v2755
  %v2779 = vadd.f32 %v2708, %v2755
  %v2780 = vadd.f32 %v2709, %v2755
  %v2781 = vadd.f32 %v2710, %v2755
  %v2782 = vadd.f32 %v2711, %v2755
  %v2783 = vadd.f32 %v2712, %v2755
  %v2784 = vadd.f32 %v2713, %v2755
  %v2785 = vadd.f32 %v2714, %v2755
  %v2786 = vadd.f32 %v2715, %v2755
  %v2787 = vadd.f32 %v2716, %v2755
  %v2788 = vadd.f32 %v2717, %v2755
  %v2789 = vadd.f32 %v2718, %v2755
  %v2790 = vadd.f32 %v2719, %v2755
  %v2791 = vadd.f32 %v2720, %v2755
  %v2792 = vadd.f32 %v2721, %v2755
  %v2793 = vadd.f32 %v2722, %v2755
  %v2794 = vadd.f32 %v2723, %v2755
  %v2795 = vadd.f32 %v2724, %v2755
  %v2796 = vadd.f32 %v2725, %v2755
  %v2797 = vadd.f32 %v2726, %v2755
  %v2798 = vadd.f32 %v2727, %v2755
  %v2799 = vadd.f32 %v2728, %v2755
  %v2800 = vadd.f32 %v2729, %v2755
  %v2801 = vadd.f32 %v2730, %v2755
  %v2802 = vadd.f32 %v2731, %v2755
  %v2803 = vadd.f32 %v2732, %v2755
  %v2804 = vadd.f32 %v2733, %v2755
  %v2805 = vadd.f32 %v2734, %v2755
  %v2806 = vadd.f32 %v2735, %v2755
  %v2807 = vadd.f32 %v2736, %v2755
  %v2808 = vadd.f32 %v2737, %v2755
  %v2809 = vadd.f32 %v2738, %v2755
  %v2810 = vadd.f32 %v2739, %v2755
  %v2811 = vadd.f32 %v2740, %v2755
  %v2812 = vadd.f32 %v2741, %v2755
  %v2813 = vadd.f32 %v2742, %v2755
  %v2814 = vadd.f32 %v2743, %v2755
  %v2815 = vadd.f32 %v2744, %v2755
  %v2816 = vadd.f32 %v2745, %v2755
  %v2817 = vadd.f32 %v2746, %v2755
  %v2818 = vadd.f32 %v2747, %v2755
  %v2819 = vadd.f32 %v2748, %v2755
  %v2820 = vadd.f32 %v2749, %v2755
  %v2821 = vmax.f32 %v2757, 0.0
  %v2822 = vmax.f32 %v2758, 0.0
  %v2823 = vmax.f32 %v2759, 0.0
  %v2824 = vmax.f32 %v2760, 0.0
  %v2825 = vmax.f32 %v2761, 0.0
  %v2826 = vmax.f32 %v2762, 0.0
  %v2827 = vmax.f32 %v2763, 0.0
  %v2828 = vmax.f32 %v2764, 0.0
  %v2829 = vmax.f32 %v2765, 0.0
  %v2830 = vmax.f32 %v2766, 0.0
  %v2831 = vmax.f32 %v2767, 0.0
  %v2832 = vmax.f32 %v2768, 0.0
  %v2833 = vmax.f32 %v2769, 0.0
  %v2834 = vmax.f32 %v2770, 0.0
  %v2835 = vmax.f32 %v2771, 0.0
  %v2836 = vmax.f32 %v2772, 0.0
  %v2837 = vmax.f32 %v2773, 0.0
  %v2838 = vmax.f32 %v2774, 0.0
  %v2839 = vmax.f32 %v2775, 0.0
  %v2840 = vmax.f32 %v2776, 0.0
  %v2841 = vmax.f32 %v2777, 0.0
  %v2842 = vmax.f32 %v2778, 0.0
  %v2843 = vmax.f32 %v2779, 0.0
  %v2844 = vmax.f32 %v2780, 0.0
  %v2845 = vmax.f32 %v2781, 0.0
  %v2846 = vmax.f32 %v2782, 0.0
  %v2847 = vmax.f32 %v2783, 0.0
  %v2848 = vmax.f32 %v2784, 0.0
  %v2849 = vmax.f32 %v2785, 0.0
  %v2850 = vmax.f32 %v2786, 0.0
  %v2851 = vmax.f32 %v2787, 0.0
  %v2852 = vmax.f32 %v2788, 0.0
  %v2853 = vmax.f32 %v2789, 0.0
  %v2854 = vmax.f32 %v2790, 0.0
  %v2855 = vmax.f32 %v2791, 0.0
  %v2856 = vmax.f32 %v2792, 0.0
  %v2857 = vmax.f32 %v2793, 0.0
  %v2858 = vmax.f32 %v2794, 0.0
  %v2859 = vmax.f32 %v2795, 0.0
  %v2860 = vmax.f32 %v2796, 0.0
  %v2861 = vmax.f32 %v2797, 0.0
  %v2862 = vmax.f32 %v2798, 0.0
  %v2863 = vmax.f32 %v2799, 0.0
  %v2864 = vmax.f32 %v2800, 0.0
  %v2865 = vmax.f32 %v2801, 0.0
  %v2866 = vmax.f32 %v2802, 0.0
  %v2867 = vmax.f32 %v2803, 0.0
  %v2868 = vmax.f32 %v2804, 0.0
  %v2869 = vmax.f32 %v2805, 0.0
  %v2870 = vmax.f32 %v2806, 0.0
  %v2871 = vmax.f32 %v2807, 0.0
  %v2872 = vmax.f32 %v2808, 0.0
  %v2873 = vmax.f32 %v2809, 0.0
  %v2874 = vmax.f32 %v2810, 0.0
  %v2875 = vmax.f32 %v2811, 0.0
  %v2876 = vmax.f32 %v2812, 0.0
  %v2877 = vmax.f32 %v2813, 0.0
  %v2878 = vmax.f32 %v2814, 0.0
  %v2879 = vmax.f32 %v2815, 0.0
  %v2880 = vmax.f32 %v2816, 0.0
  %v2881 = vmax.f32 %v2817, 0.0
  %v2882 = vmax.f32 %v2818, 0.0
  %v2883 = vmax.f32 %v2819, 0.0
  %v2884 = vmax.f32 %v2820, 0.0
  %v2885 = vpack.c.bf16 %v2822, %v2821
  %v2886 = vpack.c.bf16 %v2824, %v2823
  %v2887 = vpack.c.bf16 %v2826, %v2825
  %v2888 = vpack.c.bf16 %v2828, %v2827
  %v2889 = vpack.c.bf16 %v2830, %v2829
  %v2890 = vpack.c.bf16 %v2832, %v2831
  %v2891 = vpack.c.bf16 %v2834, %v2833
  %v2892 = vpack.c.bf16 %v2836, %v2835
  %v2893 = vpack.c.bf16 %v2838, %v2837
  %v2894 = vpack.c.bf16 %v2840, %v2839
  %v2895 = vpack.c.bf16 %v2842, %v2841
  %v2896 = vpack.c.bf16 %v2844, %v2843
  %v2897 = vpack.c.bf16 %v2846, %v2845
  %v2898 = vpack.c.bf16 %v2848, %v2847
  %v2899 = vpack.c.bf16 %v2850, %v2849
  %v2900 = vpack.c.bf16 %v2852, %v2851
  %v2901 = vpack.c.bf16 %v2854, %v2853
  %v2902 = vpack.c.bf16 %v2856, %v2855
  %v2903 = vpack.c.bf16 %v2858, %v2857
  %v2904 = vpack.c.bf16 %v2860, %v2859
  %v2905 = vpack.c.bf16 %v2862, %v2861
  %v2906 = vpack.c.bf16 %v2864, %v2863
  %v2907 = vpack.c.bf16 %v2866, %v2865
  %v2908 = vpack.c.bf16 %v2868, %v2867
  %v2909 = vpack.c.bf16 %v2870, %v2869
  %v2910 = vpack.c.bf16 %v2872, %v2871
  %v2911 = vpack.c.bf16 %v2874, %v2873
  %v2912 = vpack.c.bf16 %v2876, %v2875
  %v2913 = vpack.c.bf16 %v2878, %v2877
  %v2914 = vpack.c.bf16 %v2880, %v2879
  %v2915 = vpack.c.bf16 %v2882, %v2881
  %v2916 = vpack.c.bf16 %v2884, %v2883
  %v2933 = vunpack.c.l.b16 %v2885
  %v2934 = vunpack.c.h.b16 %v2885
  %v2935 = vunpack.c.l.b16 %v2886
  %v2936 = vunpack.c.h.b16 %v2886
  %v2937 = vunpack.c.l.b16 %v2887
  %v2938 = vunpack.c.h.b16 %v2887
  %v2939 = vunpack.c.l.b16 %v2888
  %v2940 = vunpack.c.h.b16 %v2888
  %v2941 = vunpack.c.l.b16 %v2893
  %v2942 = vunpack.c.h.b16 %v2893
  %v2943 = vunpack.c.l.b16 %v2894
  %v2944 = vunpack.c.h.b16 %v2894
  %v2945 = vunpack.c.l.b16 %v2895
  %v2946 = vunpack.c.h.b16 %v2895
  %v2947 = vunpack.c.l.b16 %v2896
  %v2948 = vunpack.c.h.b16 %v2896
  %v2949 = vunpack.c.l.b16 %v2901
  %v2950 = vunpack.c.h.b16 %v2901
  %v2951 = vunpack.c.l.b16 %v2902
  %v2952 = vunpack.c.h.b16 %v2902
  %v2953 = vunpack.c.l.b16 %v2903
  %v2954 = vunpack.c.h.b16 %v2903
  %v2955 = vunpack.c.l.b16 %v2904
  %v2956 = vunpack.c.h.b16 %v2904
  %v2957 = vunpack.c.l.b16 %v2909
  %v2958 = vunpack.c.h.b16 %v2909
  %v2959 = vunpack.c.l.b16 %v2910
  %v2960 = vunpack.c.h.b16 %v2910
  %v2961 = vunpack.c.l.b16 %v2911
  %v2962 = vunpack.c.h.b16 %v2911
  %v2963 = vunpack.c.l.b16 %v2912
  %v2964 = vunpack.c.h.b16 %v2912
  %v2965 = vpack.c.b16 %v2933, %v2933
  %v2966 = vpack.c.b16 %v2934, %v2934
  %v2967 = vpack.c.b16 %v2935, %v2935
  %v2968 = vpack.c.b16 %v2936, %v2936
  %v2969 = vpack.c.b16 %v2937, %v2937
  %v2970 = vpack.c.b16 %v2938, %v2938
  %v2971 = vpack.c.b16 %v2939, %v2939
  %v2972 = vpack.c.b16 %v2940, %v2940
  %v2973 = vpack.c.b16 %v2941, %v2941
  %v2974 = vpack.c.b16 %v2942, %v2942
  %v2975 = vpack.c.b16 %v2943, %v2943
  %v2976 = vpack.c.b16 %v2944, %v2944
  %v2977 = vpack.c.b16 %v2945, %v2945
  %v2978 = vpack.c.b16 %v2946, %v2946
  %v2979 = vpack.c.b16 %v2947, %v2947
  %v2980 = vpack.c.b16 %v2948, %v2948
  %v2981 = vpack.c.b16 %v2949, %v2949
  %v2982 = vpack.c.b16 %v2950, %v2950
  %v2983 = vpack.c.b16 %v2951, %v2951
  %v2984 = vpack.c.b16 %v2952, %v2952
  %v2985 = vpack.c.b16 %v2953, %v2953
  %v2986 = vpack.c.b16 %v2954, %v2954
  %v2987 = vpack.c.b16 %v2955, %v2955
  %v2988 = vpack.c.b16 %v2956, %v2956
  %v2989 = vpack.c.b16 %v2957, %v2957
  %v2990 = vpack.c.b16 %v2958, %v2958
  %v2991 = vpack.c.b16 %v2959, %v2959
  %v2992 = vpack.c.b16 %v2960, %v2960
  %v2993 = vpack.c.b16 %v2961, %v2961
  %v2994 = vpack.c.b16 %v2962, %v2962
  %v2995 = vpack.c.b16 %v2963, %v2963
  %v2996 = vpack.c.b16 %v2964, %v2964
  %2997 = vrot.lane.b32.xlu0 %v2965, 96
  %v2998 = vpop.permute.xlu0 %2997
  %2999 = vrot.lane.b32.xlu0 %v2967, 96
  %v3000 = vpop.permute.xlu0 %2999
  %3001 = vrot.lane.b32.xlu0 %v2969, 96
  %v3002 = vpop.permute.xlu0 %3001
  %3003 = vrot.lane.b32.xlu0 %v2971, 96
  %v3004 = vpop.permute.xlu0 %3003
  %3005 = vrot.lane.b32.xlu0 %v2973, 96
  %v3006 = vpop.permute.xlu0 %3005
  %3007 = vrot.lane.b32.xlu0 %v2975, 96
  %v3008 = vpop.permute.xlu0 %3007
  %3009 = vrot.lane.b32.xlu0 %v2977, 96
  %v3010 = vpop.permute.xlu0 %3009
  %3011 = vrot.lane.b32.xlu0 %v2979, 96
  %v3012 = vpop.permute.xlu0 %3011
  %3013 = vrot.lane.b32.xlu0 %v2981, 96
  %v3014 = vpop.permute.xlu0 %3013
  %3015 = vrot.lane.b32.xlu0 %v2983, 96
  %v3016 = vpop.permute.xlu0 %3015
  %3017 = vrot.lane.b32.xlu0 %v2985, 96
  %v3018 = vpop.permute.xlu0 %3017
  %3019 = vrot.lane.b32.xlu0 %v2987, 96
  %v3020 = vpop.permute.xlu0 %3019
  %3021 = vrot.lane.b32.xlu0 %v2989, 96
  %v3022 = vpop.permute.xlu0 %3021
  %3023 = vrot.lane.b32.xlu0 %v2991, 96
  %v3024 = vpop.permute.xlu0 %3023
  %3025 = vrot.lane.b32.xlu0 %v2993, 96
  %v3026 = vpop.permute.xlu0 %3025
  %3027 = vrot.lane.b32.xlu0 %v2995, 96
  %v3028 = vpop.permute.xlu0 %3027
  %3045 = vst.msk [vmem:[#allocation2] sm:$0xf] %vm77, %v2998
  %3046 = vst.msk [vmem:[#allocation2 + $0x4] sm:$0xf] %vm77, %v3000
  %3047 = vst.msk [vmem:[#allocation2 + $0x8] sm:$0xf] %vm77, %v3002
  %3048 = vst.msk [vmem:[#allocation2 + $0xc] sm:$0xf] %vm77, %v3004
  %3049 = vst.msk [vmem:[#allocation2 + $0x14] sm:$0xf] %vm77, %v3006
  %3050 = vst.msk [vmem:[#allocation2 + $0x18] sm:$0xf] %vm77, %v3008
  %3051 = vst.msk [vmem:[#allocation2 + $0x1c] sm:$0xf] %vm77, %v3010
  %3052 = vst.msk [vmem:[#allocation2 + $0x20] sm:$0xf] %vm77, %v3012
  %3053 = vst.msk [vmem:[#allocation2 + $0x28] sm:$0xf] %vm77, %v3014
  %3054 = vst.msk [vmem:[#allocation2 + $0x2c] sm:$0xf] %vm77, %v3016
  %3055 = vst.msk [vmem:[#allocation2 + $0x30] sm:$0xf] %vm77, %v3018
  %3056 = vst.msk [vmem:[#allocation2 + $0x34] sm:$0xf] %vm77, %v3020
  %3057 = vst.msk [vmem:[#allocation2 + $0x3c] sm:$0xf] %vm77, %v3022
  %3058 = vst.msk [vmem:[#allocation2 + $0x40] sm:$0xf] %vm77, %v3024
  %3059 = vst.msk [vmem:[#allocation2 + $0x44] sm:$0xf] %vm77, %v3026
  %3060 = vst.msk [vmem:[#allocation2 + $0x48] sm:$0xf] %vm77, %v3028
  %3061 = vrot.lane.b32.xlu0 %v2966, 64
  %v3062 = vpop.permute.xlu0 %3061
  %3063 = vrot.lane.b32.xlu0 %v2968, 64
  %v3064 = vpop.permute.xlu0 %3063
  %3065 = vrot.lane.b32.xlu0 %v2970, 64
  %v3066 = vpop.permute.xlu0 %3065
  %3067 = vrot.lane.b32.xlu0 %v2972, 64
  %v3068 = vpop.permute.xlu0 %3067
  %3069 = vrot.lane.b32.xlu0 %v2974, 64
  %v3070 = vpop.permute.xlu0 %3069
  %3071 = vrot.lane.b32.xlu0 %v2976, 64
  %v3072 = vpop.permute.xlu0 %3071
  %3073 = vrot.lane.b32.xlu0 %v2978, 64
  %v3074 = vpop.permute.xlu0 %3073
  %3075 = vrot.lane.b32.xlu0 %v2980, 64
  %v3076 = vpop.permute.xlu0 %3075
  %3077 = vrot.lane.b32.xlu0 %v2982, 64
  %v3078 = vpop.permute.xlu0 %3077
  %3079 = vrot.lane.b32.xlu0 %v2984, 64
  %v3080 = vpop.permute.xlu0 %3079
  %3081 = vrot.lane.b32.xlu0 %v2986, 64
  %v3082 = vpop.permute.xlu0 %3081
  %3083 = vrot.lane.b32.xlu0 %v2988, 64
  %v3084 = vpop.permute.xlu0 %3083
  %3085 = vrot.lane.b32.xlu0 %v2990, 64
  %v3086 = vpop.permute.xlu0 %3085
  %3087 = vrot.lane.b32.xlu0 %v2992, 64
  %v3088 = vpop.permute.xlu0 %3087
  %3089 = vrot.lane.b32.xlu0 %v2994, 64
  %v3090 = vpop.permute.xlu0 %3089
  %3091 = vrot.lane.b32.xlu0 %v2996, 64
  %v3092 = vpop.permute.xlu0 %3091
  %s3109 = scalar_lea.vmem [#allocation2], 4
  %3110 = vst.msk [vmem:[%s3109] sm:$0xf] %vm64, %v3062
  %3111 = vst.msk [vmem:[%s3109 + $0x4] sm:$0xf] %vm64, %v3064
  %3112 = vst.msk [vmem:[%s3109 + $0x8] sm:$0xf] %vm64, %v3066
  %3113 = vst.msk [vmem:[%s3109 + $0xc] sm:$0xf] %vm64, %v3068
  %3114 = vst.msk [vmem:[%s3109 + $0x14] sm:$0xf] %vm64, %v3070
  %3115 = vst.msk [vmem:[%s3109 + $0x18] sm:$0xf] %vm64, %v3072
  %3116 = vst.msk [vmem:[%s3109 + $0x1c] sm:$0xf] %vm64, %v3074
  %3117 = vst.msk [vmem:[%s3109 + $0x20] sm:$0xf] %vm64, %v3076
  %3118 = vst.msk [vmem:[%s3109 + $0x28] sm:$0xf] %vm64, %v3078
  %3119 = vst.msk [vmem:[%s3109 + $0x2c] sm:$0xf] %vm64, %v3080
  %3120 = vst.msk [vmem:[%s3109 + $0x30] sm:$0xf] %vm64, %v3082
  %3121 = vst.msk [vmem:[%s3109 + $0x34] sm:$0xf] %vm64, %v3084
  %3122 = vst.msk [vmem:[%s3109 + $0x3c] sm:$0xf] %vm64, %v3086
  %3123 = vst.msk [vmem:[%s3109 + $0x40] sm:$0xf] %vm64, %v3088
  %3124 = vst.msk [vmem:[%s3109 + $0x44] sm:$0xf] %vm64, %v3090
  %3125 = vst.msk [vmem:[%s3109 + $0x48] sm:$0xf] %vm64, %v3092
  %v3142 = vunpack.c.l.b16 %v2889
  %v3143 = vunpack.c.h.b16 %v2889
  %v3144 = vunpack.c.l.b16 %v2890
  %v3145 = vunpack.c.h.b16 %v2890
  %v3146 = vunpack.c.l.b16 %v2891
  %v3147 = vunpack.c.h.b16 %v2891
  %v3148 = vunpack.c.l.b16 %v2892
  %v3149 = vunpack.c.h.b16 %v2892
  %v3150 = vunpack.c.l.b16 %v2897
  %v3151 = vunpack.c.h.b16 %v2897
  %v3152 = vunpack.c.l.b16 %v2898
  %v3153 = vunpack.c.h.b16 %v2898
  %v3154 = vunpack.c.l.b16 %v2899
  %v3155 = vunpack.c.h.b16 %v2899
  %v3156 = vunpack.c.l.b16 %v2900
  %v3157 = vunpack.c.h.b16 %v2900
  %v3158 = vunpack.c.l.b16 %v2905
  %v3159 = vunpack.c.h.b16 %v2905
  %v3160 = vunpack.c.l.b16 %v2906
  %v3161 = vunpack.c.h.b16 %v2906
  %v3162 = vunpack.c.l.b16 %v2907
  %v3163 = vunpack.c.h.b16 %v2907
  %v3164 = vunpack.c.l.b16 %v2908
  %v3165 = vunpack.c.h.b16 %v2908
  %v3166 = vunpack.c.l.b16 %v2913
  %v3167 = vunpack.c.h.b16 %v2913
  %v3168 = vunpack.c.l.b16 %v2914
  %v3169 = vunpack.c.h.b16 %v2914
  %v3170 = vunpack.c.l.b16 %v2915
  %v3171 = vunpack.c.h.b16 %v2915
  %v3172 = vunpack.c.l.b16 %v2916
  %v3173 = vunpack.c.h.b16 %v2916
  %v3174 = vpack.c.b16 %v3142, %v3142
  %v3175 = vpack.c.b16 %v3143, %v3143
  %v3176 = vpack.c.b16 %v3144, %v3144
  %v3177 = vpack.c.b16 %v3145, %v3145
  %v3178 = vpack.c.b16 %v3146, %v3146
  %v3179 = vpack.c.b16 %v3147, %v3147
  %v3180 = vpack.c.b16 %v3148, %v3148
  %v3181 = vpack.c.b16 %v3149, %v3149
  %v3182 = vpack.c.b16 %v3150, %v3150
  %v3183 = vpack.c.b16 %v3151, %v3151
  %v3184 = vpack.c.b16 %v3152, %v3152
  %v3185 = vpack.c.b16 %v3153, %v3153
  %v3186 = vpack.c.b16 %v3154, %v3154
  %v3187 = vpack.c.b16 %v3155, %v3155
  %v3188 = vpack.c.b16 %v3156, %v3156
  %v3189 = vpack.c.b16 %v3157, %v3157
  %v3190 = vpack.c.b16 %v3158, %v3158
  %v3191 = vpack.c.b16 %v3159, %v3159
  %v3192 = vpack.c.b16 %v3160, %v3160
  %v3193 = vpack.c.b16 %v3161, %v3161
  %v3194 = vpack.c.b16 %v3162, %v3162
  %v3195 = vpack.c.b16 %v3163, %v3163
  %v3196 = vpack.c.b16 %v3164, %v3164
  %v3197 = vpack.c.b16 %v3165, %v3165
  %v3198 = vpack.c.b16 %v3166, %v3166
  %v3199 = vpack.c.b16 %v3167, %v3167
  %v3200 = vpack.c.b16 %v3168, %v3168
  %v3201 = vpack.c.b16 %v3169, %v3169
  %v3202 = vpack.c.b16 %v3170, %v3170
  %v3203 = vpack.c.b16 %v3171, %v3171
  %v3204 = vpack.c.b16 %v3172, %v3172
  %v3205 = vpack.c.b16 %v3173, %v3173
  %3222 = vrot.lane.b32.xlu0 %v3174, 32
  %v3223 = vpop.permute.xlu0 %3222
  %3224 = vrot.lane.b32.xlu0 %v3176, 32
  %v3225 = vpop.permute.xlu0 %3224
  %3226 = vrot.lane.b32.xlu0 %v3178, 32
  %v3227 = vpop.permute.xlu0 %3226
  %3228 = vrot.lane.b32.xlu0 %v3180, 32
  %v3229 = vpop.permute.xlu0 %3228
  %3230 = vrot.lane.b32.xlu0 %v3182, 32
  %v3231 = vpop.permute.xlu0 %3230
  %3232 = vrot.lane.b32.xlu0 %v3184, 32
  %v3233 = vpop.permute.xlu0 %3232
  %3234 = vrot.lane.b32.xlu0 %v3186, 32
  %v3235 = vpop.permute.xlu0 %3234
  %3236 = vrot.lane.b32.xlu0 %v3188, 32
  %v3237 = vpop.permute.xlu0 %3236
  %3238 = vrot.lane.b32.xlu0 %v3190, 32
  %v3239 = vpop.permute.xlu0 %3238
  %3240 = vrot.lane.b32.xlu0 %v3192, 32
  %v3241 = vpop.permute.xlu0 %3240
  %3242 = vrot.lane.b32.xlu0 %v3194, 32
  %v3243 = vpop.permute.xlu0 %3242
  %3244 = vrot.lane.b32.xlu0 %v3196, 32
  %v3245 = vpop.permute.xlu0 %3244
  %3246 = vrot.lane.b32.xlu0 %v3198, 32
  %v3247 = vpop.permute.xlu0 %3246
  %3248 = vrot.lane.b32.xlu0 %v3200, 32
  %v3249 = vpop.permute.xlu0 %3248
  %3250 = vrot.lane.b32.xlu0 %v3202, 32
  %v3251 = vpop.permute.xlu0 %3250
  %3252 = vrot.lane.b32.xlu0 %v3204, 32
  %v3253 = vpop.permute.xlu0 %3252
  %s3270 = scalar_lea.vmem [#allocation2], 20
  %3271 = vst.msk [vmem:[%s3270] sm:$0xf] %vm71, %v3223
  %3272 = vst.msk [vmem:[%s3270 + $0x4] sm:$0xf] %vm71, %v3225
  %3273 = vst.msk [vmem:[%s3270 + $0x8] sm:$0xf] %vm71, %v3227
  %3274 = vst.msk [vmem:[%s3270 + $0xc] sm:$0xf] %vm71, %v3229
  %3275 = vst.msk [vmem:[%s3270 + $0x14] sm:$0xf] %vm71, %v3231
  %3276 = vst.msk [vmem:[%s3270 + $0x18] sm:$0xf] %vm71, %v3233
  %3277 = vst.msk [vmem:[%s3270 + $0x1c] sm:$0xf] %vm71, %v3235
  %3278 = vst.msk [vmem:[%s3270 + $0x20] sm:$0xf] %vm71, %v3237
  %3279 = vst.msk [vmem:[%s3270 + $0x28] sm:$0xf] %vm71, %v3239
  %3280 = vst.msk [vmem:[%s3270 + $0x2c] sm:$0xf] %vm71, %v3241
  %3281 = vst.msk [vmem:[%s3270 + $0x30] sm:$0xf] %vm71, %v3243
  %3282 = vst.msk [vmem:[%s3270 + $0x34] sm:$0xf] %vm71, %v3245
  %3283 = vst.msk [vmem:[%s3270 + $0x3c] sm:$0xf] %vm71, %v3247
  %3284 = vst.msk [vmem:[%s3270 + $0x40] sm:$0xf] %vm71, %v3249
  %3285 = vst.msk [vmem:[%s3270 + $0x44] sm:$0xf] %vm71, %v3251
  %3286 = vst.msk [vmem:[%s3270 + $0x48] sm:$0xf] %vm71, %v3253
  %s3287 = scalar_lea.vmem [#allocation2], 24
  %3288 = vst.msk [vmem:[%s3287] sm:$0xf] %vm58, %v3175
  %3289 = vst.msk [vmem:[%s3287 + $0x4] sm:$0xf] %vm58, %v3177
  %3290 = vst.msk [vmem:[%s3287 + $0x8] sm:$0xf] %vm58, %v3179
  %3291 = vst.msk [vmem:[%s3287 + $0xc] sm:$0xf] %vm58, %v3181
  %3292 = vst.msk [vmem:[%s3287 + $0x14] sm:$0xf] %vm58, %v3183
  %3293 = vst.msk [vmem:[%s3287 + $0x18] sm:$0xf] %vm58, %v3185
  %3294 = vst.msk [vmem:[%s3287 + $0x1c] sm:$0xf] %vm58, %v3187
  %3295 = vst.msk [vmem:[%s3287 + $0x20] sm:$0xf] %vm58, %v3189
  %3296 = vst.msk [vmem:[%s3287 + $0x28] sm:$0xf] %vm58, %v3191
  %3297 = vst.msk [vmem:[%s3287 + $0x2c] sm:$0xf] %vm58, %v3193
  %3298 = vst.msk [vmem:[%s3287 + $0x30] sm:$0xf] %vm58, %v3195
  %3299 = vst.msk [vmem:[%s3287 + $0x34] sm:$0xf] %vm58, %v3197
  %3300 = vst.msk [vmem:[%s3287 + $0x3c] sm:$0xf] %vm58, %v3199
  %3301 = vst.msk [vmem:[%s3287 + $0x40] sm:$0xf] %vm58, %v3201
  %3302 = vst.msk [vmem:[%s3287 + $0x44] sm:$0xf] %vm58, %v3203
  %3303 = vst.msk [vmem:[%s3287 + $0x48] sm:$0xf] %vm58, %v3205
  %v3304 = vld [vmem:[#allocation2] sm:$0xf]
  %v3305 = vld [vmem:[#allocation2 + $0x4] sm:$0xf]
  %v3306 = vld [vmem:[#allocation2 + $0x8] sm:$0xf]
  %v3307 = vld [vmem:[#allocation2 + $0xc] sm:$0xf]
  %v3308 = vld [vmem:[#allocation2 + $0x14] sm:$0xf]
  %v3309 = vld [vmem:[#allocation2 + $0x18] sm:$0xf]
  %v3310 = vld [vmem:[#allocation2 + $0x1c] sm:$0xf]
  %v3311 = vld [vmem:[#allocation2 + $0x20] sm:$0xf]
  %v3312 = vld [vmem:[#allocation2 + $0x28] sm:$0xf]
  %v3313 = vld [vmem:[#allocation2 + $0x2c] sm:$0xf]
  %v3314 = vld [vmem:[#allocation2 + $0x30] sm:$0xf]
  %v3315 = vld [vmem:[#allocation2 + $0x34] sm:$0xf]
  %v3316 = vld [vmem:[#allocation2 + $0x3c] sm:$0xf]
  %v3317 = vld [vmem:[#allocation2 + $0x40] sm:$0xf]
  %v3318 = vld [vmem:[#allocation2 + $0x44] sm:$0xf]
  %v3319 = vld [vmem:[#allocation2 + $0x48] sm:$0xf]
  %v3320 = vld [vmem:[%s3] sm:$0xf]
  %v3321 = vld [vmem:[%s3 + $0x4] sm:$0xf]
  %v3322 = vld [vmem:[%s3 + $0x8] sm:$0xf]
  %v3323 = vld [vmem:[%s3 + $0xc] sm:$0xf]
  %v3324 = vld [vmem:[%s3 + $0x10] sm:$0xf]
  %v3325 = vld [vmem:[%s3 + $0x14] sm:$0xf]
  %v3326 = vld [vmem:[%s3 + $0x18] sm:$0xf]
  %v3327 = vld [vmem:[%s3 + $0x1c] sm:$0xf]
  %v3328 = vld [vmem:[%s3 + $0x20] sm:$0xf]
  %v3329 = vld [vmem:[%s3 + $0x24] sm:$0xf]
  %v3330 = vld [vmem:[%s3 + $0x28] sm:$0xf]
  %v3331 = vld [vmem:[%s3 + $0x2c] sm:$0xf]
  %v3332 = vld [vmem:[%s3 + $0x30] sm:$0xf]
  %v3333 = vld [vmem:[%s3 + $0x34] sm:$0xf]
  %v3334 = vld [vmem:[%s3 + $0x38] sm:$0xf]
  %v3335 = vld [vmem:[%s3 + $0x3c] sm:$0xf]
  %v3336 = vld [vmem:[%s3109] sm:$0xf]
  %v3337 = vld [vmem:[%s3109 + $0x4] sm:$0xf]
  %v3338 = vld [vmem:[%s3109 + $0x8] sm:$0xf]
  %v3339 = vld [vmem:[%s3109 + $0xc] sm:$0xf]
  %v3340 = vld [vmem:[%s3109 + $0x14] sm:$0xf]
  %v3341 = vld [vmem:[%s3109 + $0x18] sm:$0xf]
  %v3342 = vld [vmem:[%s3109 + $0x1c] sm:$0xf]
  %v3343 = vld [vmem:[%s3109 + $0x20] sm:$0xf]
  %v3344 = vld [vmem:[%s3109 + $0x28] sm:$0xf]
  %v3345 = vld [vmem:[%s3109 + $0x2c] sm:$0xf]
  %v3346 = vld [vmem:[%s3109 + $0x30] sm:$0xf]
  %v3347 = vld [vmem:[%s3109 + $0x34] sm:$0xf]
  %v3348 = vld [vmem:[%s3109 + $0x3c] sm:$0xf]
  %v3349 = vld [vmem:[%s3109 + $0x40] sm:$0xf]
  %v3350 = vld [vmem:[%s3109 + $0x44] sm:$0xf]
  %v3351 = vld [vmem:[%s3109 + $0x48] sm:$0xf]
  %v3352 = vld [vmem:[%s3 + $0x40] sm:$0xf]
  %v3353 = vld [vmem:[%s3 + $0x44] sm:$0xf]
  %v3354 = vld [vmem:[%s3 + $0x48] sm:$0xf]
  %v3355 = vld [vmem:[%s3 + $0x4c] sm:$0xf]
  %v3356 = vld [vmem:[%s3 + $0x50] sm:$0xf]
  %v3357 = vld [vmem:[%s3 + $0x54] sm:$0xf]
  %v3358 = vld [vmem:[%s3 + $0x58] sm:$0xf]
  %v3359 = vld [vmem:[%s3 + $0x5c] sm:$0xf]
  %v3360 = vld [vmem:[%s3 + $0x60] sm:$0xf]
  %v3361 = vld [vmem:[%s3 + $0x64] sm:$0xf]
  %v3362 = vld [vmem:[%s3 + $0x68] sm:$0xf]
  %v3363 = vld [vmem:[%s3 + $0x6c] sm:$0xf]
  %v3364 = vld [vmem:[%s3 + $0x70] sm:$0xf]
  %v3365 = vld [vmem:[%s3 + $0x74] sm:$0xf]
  %v3366 = vld [vmem:[%s3 + $0x78] sm:$0xf]
  %v3367 = vld [vmem:[%s3 + $0x7c] sm:$0xf]
  %v3384 = vunpack.c.l.b16 %v3336
  %v3385 = vunpack.c.l.b16 %v3337
  %v3386 = vunpack.c.l.b16 %v3338
  %v3387 = vunpack.c.l.b16 %v3339
  %v3388 = vunpack.c.l.b16 %v3340
  %v3389 = vunpack.c.l.b16 %v3341
  %v3390 = vunpack.c.l.b16 %v3342
  %v3391 = vunpack.c.l.b16 %v3343
  %v3392 = vunpack.c.l.b16 %v3344
  %v3393 = vunpack.c.l.b16 %v3345
  %v3394 = vunpack.c.l.b16 %v3346
  %v3395 = vunpack.c.l.b16 %v3347
  %v3396 = vunpack.c.l.b16 %v3348
  %v3397 = vunpack.c.l.b16 %v3349
  %v3398 = vunpack.c.l.b16 %v3350
  %v3399 = vunpack.c.l.b16 %v3351
  %v3400 = vpack.c.b16 %v3385, %v3384
  %v3401 = vpack.c.b16 %v3387, %v3386
  %v3402 = vpack.c.b16 %v3389, %v3388
  %v3403 = vpack.c.b16 %v3391, %v3390
  %v3404 = vpack.c.b16 %v3393, %v3392
  %v3405 = vpack.c.b16 %v3395, %v3394
  %v3406 = vpack.c.b16 %v3397, %v3396
  %v3407 = vpack.c.b16 %v3399, %v3398
  %v3432 = vunpack.c.l.b16 %v3352
  %v3433 = vunpack.c.l.b16 %v3353
  %v3434 = vunpack.c.l.b16 %v3354
  %v3435 = vunpack.c.l.b16 %v3355
  %v3436 = vunpack.c.l.b16 %v3356
  %v3437 = vunpack.c.l.b16 %v3357
  %v3438 = vunpack.c.l.b16 %v3358
  %v3439 = vunpack.c.l.b16 %v3359
  %v3440 = vunpack.c.l.b16 %v3360
  %v3441 = vunpack.c.l.b16 %v3361
  %v3442 = vunpack.c.l.b16 %v3362
  %v3443 = vunpack.c.l.b16 %v3363
  %v3444 = vunpack.c.l.b16 %v3364
  %v3445 = vunpack.c.l.b16 %v3365
  %v3446 = vunpack.c.l.b16 %v3366
  %v3447 = vunpack.c.l.b16 %v3367
  %v3448 = vpack.c.b16 %v3433, %v3432
  %v3449 = vpack.c.b16 %v3435, %v3434
  %v3450 = vpack.c.b16 %v3437, %v3436
  %v3451 = vpack.c.b16 %v3439, %v3438
  %v3452 = vpack.c.b16 %v3441, %v3440
  %v3453 = vpack.c.b16 %v3443, %v3442
  %v3454 = vpack.c.b16 %v3445, %v3444
  %v3455 = vpack.c.b16 %v3447, %v3446
  %3464 = vmatprep.subr.bf16.mxu0 0
  %3465 = vmatpush1.bf16.msra.mxu0 %v3448
  %3466 = vmatprep.subr.bf16.mxu0 0
  %3467 = vmatpush1.bf16.msra.mxu0 %v3449
  %3468 = vmatprep.subr.bf16.mxu0 0
  %3469 = vmatpush1.bf16.msra.mxu0 %v3450
  %3470 = vmatprep.subr.bf16.mxu0 0
  %3471 = vmatpush1.bf16.msra.mxu0 %v3451
  %3472 = vmatprep.subr.bf16.mxu0 0
  %3473 = vmatpush1.bf16.msra.mxu0 %v3452
  %3474 = vmatprep.subr.bf16.mxu0 0
  %3475 = vmatpush1.bf16.msra.mxu0 %v3453
  %3476 = vmatprep.subr.bf16.mxu0 0
  %3477 = vmatpush1.bf16.msra.mxu0 %v3454
  %3478 = vmatprep.subr.bf16.mxu0 0
  %3479 = vmatpush1.bf16.msra.mxu0 %v3455
  %3480 = vmatprep.subr.bf16.mxu0 0
  %3481 = vmatpush1.bf16.msra.mxu0 0
  %3482 = vmatprep.subr.bf16.mxu0 0
  %3483 = vmatpush1.bf16.msra.mxu0 0
  %3484 = vmatprep.subr.bf16.mxu0 0
  %3485 = vmatpush1.bf16.msra.mxu0 0
  %3486 = vmatprep.subr.bf16.mxu0 0
  %3487 = vmatpush1.bf16.msra.mxu0 0
  %3488 = vmatprep.subr.bf16.mxu0 0
  %3489 = vmatpush1.bf16.msra.mxu0 0
  %3490 = vmatprep.subr.bf16.mxu0 0
  %3491 = vmatpush1.bf16.msra.mxu0 0
  %3492 = vmatprep.subr.bf16.mxu0 0
  %3493 = vmatpush1.bf16.msra.mxu0 0
  %3494 = vmatprep.subr.bf16.mxu0 0
  %3495 = vmatpush1.bf16.msra.mxu0 0
  %3496 = vmatprep.mubr.bf16.mxu0 0
  %3497 = vmatmul.mubr.bf16.gmra.mrb[0].mxu0 %v3400
  %v3498 = vpop.f32.mrb[0].mxu0
  %v3499 = vadd.f32 0.0, %v3498
  %v3500 = vpop.f32.mrb[0].mxu0
  %v3501 = vpop.f32.mrb[0].mxu0
  %v3502 = vadd.f32 0.0, %v3501
  %v3503 = vpop.f32.mrb[0].mxu0
  %3504 = vmatprep.mubr.bf16.mxu0 0
  %3505 = vmatmul.mubr.bf16.gmra.mrb[0].mxu0 %v3401
  %v3506 = vpop.f32.mrb[0].mxu0
  %v3507 = vadd.f32 0.0, %v3506
  %v3508 = vpop.f32.mrb[0].mxu0
  %v3509 = vpop.f32.mrb[0].mxu0
  %v3510 = vadd.f32 0.0, %v3509
  %v3511 = vpop.f32.mrb[0].mxu0
  %3512 = vmatprep.mubr.bf16.mxu0 0
  %3513 = vmatmul.mubr.bf16.gmra.mrb[0].mxu0 %v3402
  %v3514 = vpop.f32.mrb[0].mxu0
  %v3515 = vadd.f32 0.0, %v3514
  %v3516 = vpop.f32.mrb[0].mxu0
  %v3517 = vpop.f32.mrb[0].mxu0
  %v3518 = vadd.f32 0.0, %v3517
  %v3519 = vpop.f32.mrb[0].mxu0
  %3520 = vmatprep.mubr.bf16.mxu0 0
  %3521 = vmatmul.mubr.bf16.gmra.mrb[0].mxu0 %v3403
  %v3522 = vpop.f32.mrb[0].mxu0
  %v3523 = vadd.f32 0.0, %v3522
  %v3524 = vpop.f32.mrb[0].mxu0
  %v3525 = vpop.f32.mrb[0].mxu0
  %v3526 = vadd.f32 0.0, %v3525
  %v3527 = vpop.f32.mrb[0].mxu0
  %3528 = vmatprep.mubr.bf16.mxu0 0
  %3529 = vmatmul.mubr.bf16.gmra.mrb[0].mxu0 %v3404
  %v3530 = vpop.f32.mrb[0].mxu0
  %v3531 = vadd.f32 0.0, %v3530
  %v3532 = vpop.f32.mrb[0].mxu0
  %v3533 = vpop.f32.mrb[0].mxu0
  %v3534 = vadd.f32 0.0, %v3533
  %v3535 = vpop.f32.mrb[0].mxu0
  %3536 = vmatprep.mubr.bf16.mxu0 0
  %3537 = vmatmul.mubr.bf16.gmra.mrb[0].mxu0 %v3405
  %v3538 = vpop.f32.mrb[0].mxu0
  %v3539 = vadd.f32 0.0, %v3538
  %v3540 = vpop.f32.mrb[0].mxu0
  %v3541 = vpop.f32.mrb[0].mxu0
  %v3542 = vadd.f32 0.0, %v3541
  %v3543 = vpop.f32.mrb[0].mxu0
  %3544 = vmatprep.mubr.bf16.mxu0 0
  %3545 = vmatmul.mubr.bf16.gmra.mrb[0].mxu0 %v3406
  %v3546 = vpop.f32.mrb[0].mxu0
  %v3547 = vadd.f32 0.0, %v3546
  %v3548 = vpop.f32.mrb[0].mxu0
  %v3549 = vpop.f32.mrb[0].mxu0
  %v3550 = vadd.f32 0.0, %v3549
  %v3551 = vpop.f32.mrb[0].mxu0
  %3552 = vmatprep.mubr.bf16.mxu0 0
  %3553 = vmatmul.mubr.bf16.gmra.mrb[0].mxu0 %v3407
  %v3554 = vpop.f32.mrb[0].mxu0
  %v3555 = vadd.f32 0.0, %v3554
  %v3556 = vpop.f32.mrb[0].mxu0
  %v3557 = vpop.f32.mrb[0].mxu0
  %v3558 = vadd.f32 0.0, %v3557
  %v3559 = vpop.f32.mrb[0].mxu0
  %3560 = vdwg.mxu0
  %v3577 = vunpack.c.l.b16 %v3304
  %v3578 = vunpack.c.l.b16 %v3305
  %v3579 = vunpack.c.l.b16 %v3306
  %v3580 = vunpack.c.l.b16 %v3307
  %v3581 = vunpack.c.l.b16 %v3308
  %v3582 = vunpack.c.l.b16 %v3309
  %v3583 = vunpack.c.l.b16 %v3310
  %v3584 = vunpack.c.l.b16 %v3311
  %v3585 = vunpack.c.l.b16 %v3312
  %v3586 = vunpack.c.l.b16 %v3313
  %v3587 = vunpack.c.l.b16 %v3314
  %v3588 = vunpack.c.l.b16 %v3315
  %v3589 = vunpack.c.l.b16 %v3316
  %v3590 = vunpack.c.l.b16 %v3317
  %v3591 = vunpack.c.l.b16 %v3318
  %v3592 = vunpack.c.l.b16 %v3319
  %v3593 = vpack.c.b16 %v3578, %v3577
  %v3594 = vpack.c.b16 %v3580, %v3579
  %v3595 = vpack.c.b16 %v3582, %v3581
  %v3596 = vpack.c.b16 %v3584, %v3583
  %v3597 = vpack.c.b16 %v3586, %v3585
  %v3598 = vpack.c.b16 %v3588, %v3587
  %v3599 = vpack.c.b16 %v3590, %v3589
  %v3600 = vpack.c.b16 %v3592, %v3591
  %v3625 = vunpack.c.l.b16 %v3320
  %v3626 = vunpack.c.l.b16 %v3321
  %v3627 = vunpack.c.l.b16 %v3322
  %v3628 = vunpack.c.l.b16 %v3323
  %v3629 = vunpack.c.l.b16 %v3324
  %v3630 = vunpack.c.l.b16 %v3325
  %v3631 = vunpack.c.l.b16 %v3326
  %v3632 = vunpack.c.l.b16 %v3327
  %v3633 = vunpack.c.l.b16 %v3328
  %v3634 = vunpack.c.l.b16 %v3329
  %v3635 = vunpack.c.l.b16 %v3330
  %v3636 = vunpack.c.l.b16 %v3331
  %v3637 = vunpack.c.l.b16 %v3332
  %v3638 = vunpack.c.l.b16 %v3333
  %v3639 = vunpack.c.l.b16 %v3334
  %v3640 = vunpack.c.l.b16 %v3335
  %v3641 = vpack.c.b16 %v3626, %v3625
  %v3642 = vpack.c.b16 %v3628, %v3627
  %v3643 = vpack.c.b16 %v3630, %v3629
  %v3644 = vpack.c.b16 %v3632, %v3631
  %v3645 = vpack.c.b16 %v3634, %v3633
  %v3646 = vpack.c.b16 %v3636, %v3635
  %v3647 = vpack.c.b16 %v3638, %v3637
  %v3648 = vpack.c.b16 %v3640, %v3639
  %3657 = vmatprep.subr.bf16.mxu0 0
  %3658 = vmatpush1.bf16.msra.mxu0 %v3641
  %3659 = vmatprep.subr.bf16.mxu0 0
  %3660 = vmatpush1.bf16.msra.mxu0 %v3642
  %3661 = vmatprep.subr.bf16.mxu0 0
  %3662 = vmatpush1.bf16.msra.mxu0 %v3643
  %3663 = vmatprep.subr.bf16.mxu0 0
  %3664 = vmatpush1.bf16.msra.mxu0 %v3644
  %3665 = vmatprep.subr.bf16.mxu0 0
  %3666 = vmatpush1.bf16.msra.mxu0 %v3645
  %3667 = vmatprep.subr.bf16.mxu0 0
  %3668 = vmatpush1.bf16.msra.mxu0 %v3646
  %3669 = vmatprep.subr.bf16.mxu0 0
  %3670 = vmatpush1.bf16.msra.mxu0 %v3647
  %3671 = vmatprep.subr.bf16.mxu0 0
  %3672 = vmatpush1.bf16.msra.mxu0 %v3648
  %3673 = vmatprep.subr.bf16.mxu0 0
  %3674 = vmatpush1.bf16.msra.mxu0 0
  %3675 = vmatprep.subr.bf16.mxu0 0
  %3676 = vmatpush1.bf16.msra.mxu0 0
  %3677 = vmatprep.subr.bf16.mxu0 0
  %3678 = vmatpush1.bf16.msra.mxu0 0
  %3679 = vmatprep.subr.bf16.mxu0 0
  %3680 = vmatpush1.bf16.msra.mxu0 0
  %3681 = vmatprep.subr.bf16.mxu0 0
  %3682 = vmatpush1.bf16.msra.mxu0 0
  %3683 = vmatprep.subr.bf16.mxu0 0
  %3684 = vmatpush1.bf16.msra.mxu0 0
  %3685 = vmatprep.subr.bf16.mxu0 0
  %3686 = vmatpush1.bf16.msra.mxu0 0
  %3687 = vmatprep.subr.bf16.mxu0 0
  %3688 = vmatpush1.bf16.msra.mxu0 0
  %3689 = vmatprep.mubr.bf16.mxu0 0
  %3690 = vmatmul.mubr.bf16.gmra.mrb[0].mxu0 %v3593
  %v3691 = vpop.f32.mrb[0].mxu0
  %v3692 = vadd.f32 %v3499, %v3691
  %v3693 = vpop.f32.mrb[0].mxu0
  %v3694 = vpop.f32.mrb[0].mxu0
  %v3695 = vadd.f32 %v3502, %v3694
  %v3696 = vpop.f32.mrb[0].mxu0
  %3697 = vmatprep.mubr.bf16.mxu0 0
  %3698 = vmatmul.mubr.bf16.gmra.mrb[0].mxu0 %v3594
  %v3699 = vpop.f32.mrb[0].mxu0
  %v3700 = vadd.f32 %v3507, %v3699
  %v3701 = vpop.f32.mrb[0].mxu0
  %v3702 = vpop.f32.mrb[0].mxu0
  %v3703 = vadd.f32 %v3510, %v3702
  %v3704 = vpop.f32.mrb[0].mxu0
  %3705 = vmatprep.mubr.bf16.mxu0 0
  %3706 = vmatmul.mubr.bf16.gmra.mrb[0].mxu0 %v3595
  %v3707 = vpop.f32.mrb[0].mxu0
  %v3708 = vadd.f32 %v3515, %v3707
  %v3709 = vpop.f32.mrb[0].mxu0
  %v3710 = vpop.f32.mrb[0].mxu0
  %v3711 = vadd.f32 %v3518, %v3710
  %v3712 = vpop.f32.mrb[0].mxu0
  %3713 = vmatprep.mubr.bf16.mxu0 0
  %3714 = vmatmul.mubr.bf16.gmra.mrb[0].mxu0 %v3596
  %v3715 = vpop.f32.mrb[0].mxu0
  %v3716 = vadd.f32 %v3523, %v3715
  %v3717 = vpop.f32.mrb[0].mxu0
  %v3718 = vpop.f32.mrb[0].mxu0
  %v3719 = vadd.f32 %v3526, %v3718
  %v3720 = vpop.f32.mrb[0].mxu0
  %3721 = vmatprep.mubr.bf16.mxu0 0
  %3722 = vmatmul.mubr.bf16.gmra.mrb[0].mxu0 %v3597
  %v3723 = vpop.f32.mrb[0].mxu0
  %v3724 = vadd.f32 %v3531, %v3723
  %v3725 = vpop.f32.mrb[0].mxu0
  %v3726 = vpop.f32.mrb[0].mxu0
  %v3727 = vadd.f32 %v3534, %v3726
  %v3728 = vpop.f32.mrb[0].mxu0
  %3729 = vmatprep.mubr.bf16.mxu0 0
  %3730 = vmatmul.mubr.bf16.gmra.mrb[0].mxu0 %v3598
  %v3731 = vpop.f32.mrb[0].mxu0
  %v3732 = vadd.f32 %v3539, %v3731
  %v3733 = vpop.f32.mrb[0].mxu0
  %v3734 = vpop.f32.mrb[0].mxu0
  %v3735 = vadd.f32 %v3542, %v3734
  %v3736 = vpop.f32.mrb[0].mxu0
  %3737 = vmatprep.mubr.bf16.mxu0 0
  %3738 = vmatmul.mubr.bf16.gmra.mrb[0].mxu0 %v3599
  %v3739 = vpop.f32.mrb[0].mxu0
  %v3740 = vadd.f32 %v3547, %v3739
  %v3741 = vpop.f32.mrb[0].mxu0
  %v3742 = vpop.f32.mrb[0].mxu0
  %v3743 = vadd.f32 %v3550, %v3742
  %v3744 = vpop.f32.mrb[0].mxu0
  %3745 = vmatprep.mubr.bf16.mxu0 0
  %3746 = vmatmul.mubr.bf16.gmra.mrb[0].mxu0 %v3600
  %v3747 = vpop.f32.mrb[0].mxu0
  %v3748 = vadd.f32 %v3555, %v3747
  %v3749 = vpop.f32.mrb[0].mxu0
  %v3750 = vpop.f32.mrb[0].mxu0
  %v3751 = vadd.f32 %v3558, %v3750
  %v3752 = vpop.f32.mrb[0].mxu0
  %3753 = vdwg.mxu0
  %v3754 = vld [vmem:[%s3270] sm:$0xf]
  %v3755 = vld [vmem:[%s3270 + $0x4] sm:$0xf]
  %v3756 = vld [vmem:[%s3270 + $0x8] sm:$0xf]
  %v3757 = vld [vmem:[%s3270 + $0xc] sm:$0xf]
  %v3758 = vld [vmem:[%s3270 + $0x14] sm:$0xf]
  %v3759 = vld [vmem:[%s3270 + $0x18] sm:$0xf]
  %v3760 = vld [vmem:[%s3270 + $0x1c] sm:$0xf]
  %v3761 = vld [vmem:[%s3270 + $0x20] sm:$0xf]
  %v3762 = vld [vmem:[%s3270 + $0x28] sm:$0xf]
  %v3763 = vld [vmem:[%s3270 + $0x2c] sm:$0xf]
  %v3764 = vld [vmem:[%s3270 + $0x30] sm:$0xf]
  %v3765 = vld [vmem:[%s3270 + $0x34] sm:$0xf]
  %v3766 = vld [vmem:[%s3270 + $0x3c] sm:$0xf]
  %v3767 = vld [vmem:[%s3270 + $0x40] sm:$0xf]
  %v3768 = vld [vmem:[%s3270 + $0x44] sm:$0xf]
  %v3769 = vld [vmem:[%s3270 + $0x48] sm:$0xf]
  %v3770 = vld [vmem:[%s3 + $0x80] sm:$0xf]
  %v3771 = vld [vmem:[%s3 + $0x84] sm:$0xf]
  %v3772 = vld [vmem:[%s3 + $0x88] sm:$0xf]
  %v3773 = vld [vmem:[%s3 + $0x8c] sm:$0xf]
  %v3774 = vld [vmem:[%s3 + $0x90] sm:$0xf]
  %v3775 = vld [vmem:[%s3 + $0x94] sm:$0xf]
  %v3776 = vld [vmem:[%s3 + $0x98] sm:$0xf]
  %v3777 = vld [vmem:[%s3 + $0x9c] sm:$0xf]
  %v3778 = vld [vmem:[%s3 + $0xa0] sm:$0xf]
  %v3779 = vld [vmem:[%s3 + $0xa4] sm:$0xf]
  %v3780 = vld [vmem:[%s3 + $0xa8] sm:$0xf]
  %v3781 = vld [vmem:[%s3 + $0xac] sm:$0xf]
  %v3782 = vld [vmem:[%s3 + $0xb0] sm:$0xf]
  %v3783 = vld [vmem:[%s3 + $0xb4] sm:$0xf]
  %v3784 = vld [vmem:[%s3 + $0xb8] sm:$0xf]
  %v3785 = vld [vmem:[%s3 + $0xbc] sm:$0xf]
  %v3802 = vunpack.c.l.b16 %v3754
  %v3803 = vunpack.c.l.b16 %v3755
  %v3804 = vunpack.c.l.b16 %v3756
  %v3805 = vunpack.c.l.b16 %v3757
  %v3806 = vunpack.c.l.b16 %v3758
  %v3807 = vunpack.c.l.b16 %v3759
  %v3808 = vunpack.c.l.b16 %v3760
  %v3809 = vunpack.c.l.b16 %v3761
  %v3810 = vunpack.c.l.b16 %v3762
  %v3811 = vunpack.c.l.b16 %v3763
  %v3812 = vunpack.c.l.b16 %v3764
  %v3813 = vunpack.c.l.b16 %v3765
  %v3814 = vunpack.c.l.b16 %v3766
  %v3815 = vunpack.c.l.b16 %v3767
  %v3816 = vunpack.c.l.b16 %v3768
  %v3817 = vunpack.c.l.b16 %v3769
  %v3818 = vpack.c.b16 %v3803, %v3802
  %v3819 = vpack.c.b16 %v3805, %v3804
  %v3820 = vpack.c.b16 %v3807, %v3806
  %v3821 = vpack.c.b16 %v3809, %v3808
  %v3822 = vpack.c.b16 %v3811, %v3810
  %v3823 = vpack.c.b16 %v3813, %v3812
  %v3824 = vpack.c.b16 %v3815, %v3814
  %v3825 = vpack.c.b16 %v3817, %v3816
  %v3850 = vunpack.c.l.b16 %v3770
  %v3851 = vunpack.c.l.b16 %v3771
  %v3852 = vunpack.c.l.b16 %v3772
  %v3853 = vunpack.c.l.b16 %v3773
  %v3854 = vunpack.c.l.b16 %v3774
  %v3855 = vunpack.c.l.b16 %v3775
  %v3856 = vunpack.c.l.b16 %v3776
  %v3857 = vunpack.c.l.b16 %v3777
  %v3858 = vunpack.c.l.b16 %v3778
  %v3859 = vunpack.c.l.b16 %v3779
  %v3860 = vunpack.c.l.b16 %v3780
  %v3861 = vunpack.c.l.b16 %v3781
  %v3862 = vunpack.c.l.b16 %v3782
  %v3863 = vunpack.c.l.b16 %v3783
  %v3864 = vunpack.c.l.b16 %v3784
  %v3865 = vunpack.c.l.b16 %v3785
  %v3866 = vpack.c.b16 %v3851, %v3850
  %v3867 = vpack.c.b16 %v3853, %v3852
  %v3868 = vpack.c.b16 %v3855, %v3854
  %v3869 = vpack.c.b16 %v3857, %v3856
  %v3870 = vpack.c.b16 %v3859, %v3858
  %v3871 = vpack.c.b16 %v3861, %v3860
  %v3872 = vpack.c.b16 %v3863, %v3862
  %v3873 = vpack.c.b16 %v3865, %v3864
  %3882 = vmatprep.subr.bf16.mxu0 0
  %3883 = vmatpush1.bf16.msra.mxu0 %v3866
  %3884 = vmatprep.subr.bf16.mxu0 0
  %3885 = vmatpush1.bf16.msra.mxu0 %v3867
  %3886 = vmatprep.subr.bf16.mxu0 0
  %3887 = vmatpush1.bf16.msra.mxu0 %v3868
  %3888 = vmatprep.subr.bf16.mxu0 0
  %3889 = vmatpush1.bf16.msra.mxu0 %v3869
  %3890 = vmatprep.subr.bf16.mxu0 0
  %3891 = vmatpush1.bf16.msra.mxu0 %v3870
  %3892 = vmatprep.subr.bf16.mxu0 0
  %3893 = vmatpush1.bf16.msra.mxu0 %v3871
  %3894 = vmatprep.subr.bf16.mxu0 0
  %3895 = vmatpush1.bf16.msra.mxu0 %v3872
  %3896 = vmatprep.subr.bf16.mxu0 0
  %3897 = vmatpush1.bf16.msra.mxu0 %v3873
  %3898 = vmatprep.subr.bf16.mxu0 0
  %3899 = vmatpush1.bf16.msra.mxu0 0
  %3900 = vmatprep.subr.bf16.mxu0 0
  %3901 = vmatpush1.bf16.msra.mxu0 0
  %3902 = vmatprep.subr.bf16.mxu0 0
  %3903 = vmatpush1.bf16.msra.mxu0 0
  %3904 = vmatprep.subr.bf16.mxu0 0
  %3905 = vmatpush1.bf16.msra.mxu0 0
  %3906 = vmatprep.subr.bf16.mxu0 0
  %3907 = vmatpush1.bf16.msra.mxu0 0
  %3908 = vmatprep.subr.bf16.mxu0 0
  %3909 = vmatpush1.bf16.msra.mxu0 0
  %3910 = vmatprep.subr.bf16.mxu0 0
  %3911 = vmatpush1.bf16.msra.mxu0 0
  %3912 = vmatprep.subr.bf16.mxu0 0
  %3913 = vmatpush1.bf16.msra.mxu0 0
  %3914 = vmatprep.mubr.bf16.mxu0 0
  %3915 = vmatmul.mubr.bf16.gmra.mrb[0].mxu0 %v3818
  %v3916 = vpop.f32.mrb[0].mxu0
  %v3917 = vadd.f32 0.0, %v3916
  %v3918 = vpop.f32.mrb[0].mxu0
  %v3919 = vpop.f32.mrb[0].mxu0
  %v3920 = vadd.f32 0.0, %v3919
  %v3921 = vpop.f32.mrb[0].mxu0
  %3922 = vmatprep.mubr.bf16.mxu0 0
  %3923 = vmatmul.mubr.bf16.gmra.mrb[0].mxu0 %v3819
  %v3924 = vpop.f32.mrb[0].mxu0
  %v3925 = vadd.f32 0.0, %v3924
  %v3926 = vpop.f32.mrb[0].mxu0
  %v3927 = vpop.f32.mrb[0].mxu0
  %v3928 = vadd.f32 0.0, %v3927
  %v3929 = vpop.f32.mrb[0].mxu0
  %3930 = vmatprep.mubr.bf16.mxu0 0
  %3931 = vmatmul.mubr.bf16.gmra.mrb[0].mxu0 %v3820
  %v3932 = vpop.f32.mrb[0].mxu0
  %v3933 = vadd.f32 0.0, %v3932
  %v3934 = vpop.f32.mrb[0].mxu0
  %v3935 = vpop.f32.mrb[0].mxu0
  %v3936 = vadd.f32 0.0, %v3935
  %v3937 = vpop.f32.mrb[0].mxu0
  %3938 = vmatprep.mubr.bf16.mxu0 0
  %3939 = vmatmul.mubr.bf16.gmra.mrb[0].mxu0 %v3821
  %v3940 = vpop.f32.mrb[0].mxu0
  %v3941 = vadd.f32 0.0, %v3940
  %v3942 = vpop.f32.mrb[0].mxu0
  %v3943 = vpop.f32.mrb[0].mxu0
  %v3944 = vadd.f32 0.0, %v3943
  %v3945 = vpop.f32.mrb[0].mxu0
  %3946 = vmatprep.mubr.bf16.mxu0 0
  %3947 = vmatmul.mubr.bf16.gmra.mrb[0].mxu0 %v3822
  %v3948 = vpop.f32.mrb[0].mxu0
  %v3949 = vadd.f32 0.0, %v3948
  %v3950 = vpop.f32.mrb[0].mxu0
  %v3951 = vpop.f32.mrb[0].mxu0
  %v3952 = vadd.f32 0.0, %v3951
  %v3953 = vpop.f32.mrb[0].mxu0
  %3954 = vmatprep.mubr.bf16.mxu0 0
  %3955 = vmatmul.mubr.bf16.gmra.mrb[0].mxu0 %v3823
  %v3956 = vpop.f32.mrb[0].mxu0
  %v3957 = vadd.f32 0.0, %v3956
  %v3958 = vpop.f32.mrb[0].mxu0
  %v3959 = vpop.f32.mrb[0].mxu0
  %v3960 = vadd.f32 0.0, %v3959
  %v3961 = vpop.f32.mrb[0].mxu0
  %3962 = vmatprep.mubr.bf16.mxu0 0
  %3963 = vmatmul.mubr.bf16.gmra.mrb[0].mxu0 %v3824
  %v3964 = vpop.f32.mrb[0].mxu0
  %v3965 = vadd.f32 0.0, %v3964
  %v3966 = vpop.f32.mrb[0].mxu0
  %v3967 = vpop.f32.mrb[0].mxu0
  %v3968 = vadd.f32 0.0, %v3967
  %v3969 = vpop.f32.mrb[0].mxu0
  %3970 = vmatprep.mubr.bf16.mxu0 0
  %3971 = vmatmul.mubr.bf16.gmra.mrb[0].mxu0 %v3825
  %v3972 = vpop.f32.mrb[0].mxu0
  %v3973 = vadd.f32 0.0, %v3972
  %v3974 = vpop.f32.mrb[0].mxu0
  %v3975 = vpop.f32.mrb[0].mxu0
  %v3976 = vadd.f32 0.0, %v3975
  %v3977 = vpop.f32.mrb[0].mxu0
  %3978 = vdwg.mxu0
  %v3979 = vadd.f32 %v3692, %v3917
  %v3980 = vadd.f32 %v3695, %v3920
  %v3981 = vadd.f32 %v3700, %v3925
  %v3982 = vadd.f32 %v3703, %v3928
  %v3983 = vadd.f32 %v3708, %v3933
  %v3984 = vadd.f32 %v3711, %v3936
  %v3985 = vadd.f32 %v3716, %v3941
  %v3986 = vadd.f32 %v3719, %v3944
  %v3987 = vadd.f32 %v3724, %v3949
  %v3988 = vadd.f32 %v3727, %v3952
  %v3989 = vadd.f32 %v3732, %v3957
  %v3990 = vadd.f32 %v3735, %v3960
  %v3991 = vadd.f32 %v3740, %v3965
  %v3992 = vadd.f32 %v3743, %v3968
  %v3993 = vadd.f32 %v3748, %v3973
  %v3994 = vadd.f32 %v3751, %v3976
  %v3995 = vld [vmem:[%s3287] sm:$0xf]
  %v3996 = vld [vmem:[%s3287 + $0x4] sm:$0xf]
  %v3997 = vld [vmem:[%s3287 + $0x8] sm:$0xf]
  %v3998 = vld [vmem:[%s3287 + $0xc] sm:$0xf]
  %v3999 = vld [vmem:[%s3287 + $0x14] sm:$0xf]
  %v4000 = vld [vmem:[%s3287 + $0x18] sm:$0xf]
  %v4001 = vld [vmem:[%s3287 + $0x1c] sm:$0xf]
  %v4002 = vld [vmem:[%s3287 + $0x20] sm:$0xf]
  %v4003 = vld [vmem:[%s3287 + $0x28] sm:$0xf]
  %v4004 = vld [vmem:[%s3287 + $0x2c] sm:$0xf]
  %v4005 = vld [vmem:[%s3287 + $0x30] sm:$0xf]
  %v4006 = vld [vmem:[%s3287 + $0x34] sm:$0xf]
  %v4007 = vld [vmem:[%s3287 + $0x3c] sm:$0xf]
  %v4008 = vld [vmem:[%s3287 + $0x40] sm:$0xf]
  %v4009 = vld [vmem:[%s3287 + $0x44] sm:$0xf]
  %v4010 = vld [vmem:[%s3287 + $0x48] sm:$0xf]
  %v4011 = vld [vmem:[%s3 + $0xc0] sm:$0xf]
  %v4012 = vld [vmem:[%s3 + $0xc4] sm:$0xf]
  %v4013 = vld [vmem:[%s3 + $0xc8] sm:$0xf]
  %v4014 = vld [vmem:[%s3 + $0xcc] sm:$0xf]
  %v4015 = vld [vmem:[%s3 + $0xd0] sm:$0xf]
  %v4016 = vld [vmem:[%s3 + $0xd4] sm:$0xf]
  %v4017 = vld [vmem:[%s3 + $0xd8] sm:$0xf]
  %v4018 = vld [vmem:[%s3 + $0xdc] sm:$0xf]
  %v4019 = vld [vmem:[%s3 + $0xe0] sm:$0xf]
  %v4020 = vld [vmem:[%s3 + $0xe4] sm:$0xf]
  %v4021 = vld [vmem:[%s3 + $0xe8] sm:$0xf]
  %v4022 = vld [vmem:[%s3 + $0xec] sm:$0xf]
  %v4023 = vld [vmem:[%s3 + $0xf0] sm:$0xf]
  %v4024 = vld [vmem:[%s3 + $0xf4] sm:$0xf]
  %v4025 = vld [vmem:[%s3 + $0xf8] sm:$0xf]
  %v4026 = vld [vmem:[%s3 + $0xfc] sm:$0xf]
  %v4043 = vunpack.c.l.b16 %v3995
  %v4044 = vunpack.c.l.b16 %v3996
  %v4045 = vunpack.c.l.b16 %v3997
  %v4046 = vunpack.c.l.b16 %v3998
  %v4047 = vunpack.c.l.b16 %v3999
  %v4048 = vunpack.c.l.b16 %v4000
  %v4049 = vunpack.c.l.b16 %v4001
  %v4050 = vunpack.c.l.b16 %v4002
  %v4051 = vunpack.c.l.b16 %v4003
  %v4052 = vunpack.c.l.b16 %v4004
  %v4053 = vunpack.c.l.b16 %v4005
  %v4054 = vunpack.c.l.b16 %v4006
  %v4055 = vunpack.c.l.b16 %v4007
  %v4056 = vunpack.c.l.b16 %v4008
  %v4057 = vunpack.c.l.b16 %v4009
  %v4058 = vunpack.c.l.b16 %v4010
  %v4059 = vpack.c.b16 %v4044, %v4043
  %v4060 = vpack.c.b16 %v4046, %v4045
  %v4061 = vpack.c.b16 %v4048, %v4047
  %v4062 = vpack.c.b16 %v4050, %v4049
  %v4063 = vpack.c.b16 %v4052, %v4051
  %v4064 = vpack.c.b16 %v4054, %v4053
  %v4065 = vpack.c.b16 %v4056, %v4055
  %v4066 = vpack.c.b16 %v4058, %v4057
  %v4091 = vunpack.c.l.b16 %v4011
  %v4092 = vunpack.c.l.b16 %v4012
  %v4093 = vunpack.c.l.b16 %v4013
  %v4094 = vunpack.c.l.b16 %v4014
  %v4095 = vunpack.c.l.b16 %v4015
  %v4096 = vunpack.c.l.b16 %v4016
  %v4097 = vunpack.c.l.b16 %v4017
  %v4098 = vunpack.c.l.b16 %v4018
  %v4099 = vunpack.c.l.b16 %v4019
  %v4100 = vunpack.c.l.b16 %v4020
  %v4101 = vunpack.c.l.b16 %v4021
  %v4102 = vunpack.c.l.b16 %v4022
  %v4103 = vunpack.c.l.b16 %v4023
  %v4104 = vunpack.c.l.b16 %v4024
  %v4105 = vunpack.c.l.b16 %v4025
  %v4106 = vunpack.c.l.b16 %v4026
  %v4107 = vpack.c.b16 %v4092, %v4091
  %v4108 = vpack.c.b16 %v4094, %v4093
  %v4109 = vpack.c.b16 %v4096, %v4095
  %v4110 = vpack.c.b16 %v4098, %v4097
  %v4111 = vpack.c.b16 %v4100, %v4099
  %v4112 = vpack.c.b16 %v4102, %v4101
  %v4113 = vpack.c.b16 %v4104, %v4103
  %v4114 = vpack.c.b16 %v4106, %v4105
  %4123 = vmatprep.subr.bf16.mxu0 0
  %4124 = vmatpush1.bf16.msra.mxu0 %v4107
  %4125 = vmatprep.subr.bf16.mxu0 0
  %4126 = vmatpush1.bf16.msra.mxu0 %v4108
  %4127 = vmatprep.subr.bf16.mxu0 0
  %4128 = vmatpush1.bf16.msra.mxu0 %v4109
  %4129 = vmatprep.subr.bf16.mxu0 0
  %4130 = vmatpush1.bf16.msra.mxu0 %v4110
  %4131 = vmatprep.subr.bf16.mxu0 0
  %4132 = vmatpush1.bf16.msra.mxu0 %v4111
  %4133 = vmatprep.subr.bf16.mxu0 0
  %4134 = vmatpush1.bf16.msra.mxu0 %v4112
  %4135 = vmatprep.subr.bf16.mxu0 0
  %4136 = vmatpush1.bf16.msra.mxu0 %v4113
  %4137 = vmatprep.subr.bf16.mxu0 0
  %4138 = vmatpush1.bf16.msra.mxu0 %v4114
  %4139 = vmatprep.subr.bf16.mxu0 0
  %4140 = vmatpush1.bf16.msra.mxu0 0
  %4141 = vmatprep.subr.bf16.mxu0 0
  %4142 = vmatpush1.bf16.msra.mxu0 0
  %4143 = vmatprep.subr.bf16.mxu0 0
  %4144 = vmatpush1.bf16.msra.mxu0 0
  %4145 = vmatprep.subr.bf16.mxu0 0
  %4146 = vmatpush1.bf16.msra.mxu0 0
  %4147 = vmatprep.subr.bf16.mxu0 0
  %4148 = vmatpush1.bf16.msra.mxu0 0
  %4149 = vmatprep.subr.bf16.mxu0 0
  %4150 = vmatpush1.bf16.msra.mxu0 0
  %4151 = vmatprep.subr.bf16.mxu0 0
  %4152 = vmatpush1.bf16.msra.mxu0 0
  %4153 = vmatprep.subr.bf16.mxu0 0
  %4154 = vmatpush1.bf16.msra.mxu0 0
  %4155 = vmatprep.mubr.bf16.mxu0 0
  %4156 = vmatmul.mubr.bf16.gmra.mrb[0].mxu0 %v4059
  %v4157 = vpop.f32.mrb[0].mxu0
  %v4158 = vadd.f32 0.0, %v4157
  %v4159 = vpop.f32.mrb[0].mxu0
  %v4160 = vpop.f32.mrb[0].mxu0
  %v4161 = vadd.f32 0.0, %v4160
  %v4162 = vpop.f32.mrb[0].mxu0
  %4163 = vmatprep.mubr.bf16.mxu0 0
  %4164 = vmatmul.mubr.bf16.gmra.mrb[0].mxu0 %v4060
  %v4165 = vpop.f32.mrb[0].mxu0
  %v4166 = vadd.f32 0.0, %v4165
  %v4167 = vpop.f32.mrb[0].mxu0
  %v4168 = vpop.f32.mrb[0].mxu0
  %v4169 = vadd.f32 0.0, %v4168
  %v4170 = vpop.f32.mrb[0].mxu0
  %4171 = vmatprep.mubr.bf16.mxu0 0
  %4172 = vmatmul.mubr.bf16.gmra.mrb[0].mxu0 %v4061
  %v4173 = vpop.f32.mrb[0].mxu0
  %v4174 = vadd.f32 0.0, %v4173
  %v4175 = vpop.f32.mrb[0].mxu0
  %v4176 = vpop.f32.mrb[0].mxu0
  %v4177 = vadd.f32 0.0, %v4176
  %v4178 = vpop.f32.mrb[0].mxu0
  %4179 = vmatprep.mubr.bf16.mxu0 0
  %4180 = vmatmul.mubr.bf16.gmra.mrb[0].mxu0 %v4062
  %v4181 = vpop.f32.mrb[0].mxu0
  %v4182 = vadd.f32 0.0, %v4181
  %v4183 = vpop.f32.mrb[0].mxu0
  %v4184 = vpop.f32.mrb[0].mxu0
  %v4185 = vadd.f32 0.0, %v4184
  %v4186 = vpop.f32.mrb[0].mxu0
  %4187 = vmatprep.mubr.bf16.mxu0 0
  %4188 = vmatmul.mubr.bf16.gmra.mrb[0].mxu0 %v4063
  %v4189 = vpop.f32.mrb[0].mxu0
  %v4190 = vadd.f32 0.0, %v4189
  %v4191 = vpop.f32.mrb[0].mxu0
  %v4192 = vpop.f32.mrb[0].mxu0
  %v4193 = vadd.f32 0.0, %v4192
  %v4194 = vpop.f32.mrb[0].mxu0
  %4195 = vmatprep.mubr.bf16.mxu0 0
  %4196 = vmatmul.mubr.bf16.gmra.mrb[0].mxu0 %v4064
  %v4197 = vpop.f32.mrb[0].mxu0
  %v4198 = vadd.f32 0.0, %v4197
  %v4199 = vpop.f32.mrb[0].mxu0
  %v4200 = vpop.f32.mrb[0].mxu0
  %v4201 = vadd.f32 0.0, %v4200
  %v4202 = vpop.f32.mrb[0].mxu0
  %4203 = vmatprep.mubr.bf16.mxu0 0
  %4204 = vmatmul.mubr.bf16.gmra.mrb[0].mxu0 %v4065
  %v4205 = vpop.f32.mrb[0].mxu0
  %v4206 = vadd.f32 0.0, %v4205
  %v4207 = vpop.f32.mrb[0].mxu0
  %v4208 = vpop.f32.mrb[0].mxu0
  %v4209 = vadd.f32 0.0, %v4208
  %v4210 = vpop.f32.mrb[0].mxu0
  %4211 = vmatprep.mubr.bf16.mxu0 0
  %4212 = vmatmul.mubr.bf16.gmra.mrb[0].mxu0 %v4066
  %v4213 = vpop.f32.mrb[0].mxu0
  %v4214 = vadd.f32 0.0, %v4213
  %v4215 = vpop.f32.mrb[0].mxu0
  %v4216 = vpop.f32.mrb[0].mxu0
  %v4217 = vadd.f32 0.0, %v4216
  %v4218 = vpop.f32.mrb[0].mxu0
  %4219 = vdwg.mxu0
  %v4220 = vadd.f32 %v3979, %v4158
  %v4221 = vadd.f32 %v3980, %v4161
  %v4222 = vadd.f32 %v3981, %v4166
  %v4223 = vadd.f32 %v3982, %v4169
  %v4224 = vadd.f32 %v3983, %v4174
  %v4225 = vadd.f32 %v3984, %v4177
  %v4226 = vadd.f32 %v3985, %v4182
  %v4227 = vadd.f32 %v3986, %v4185
  %v4228 = vadd.f32 %v3987, %v4190
  %v4229 = vadd.f32 %v3988, %v4193
  %v4230 = vadd.f32 %v3989, %v4198
  %v4231 = vadd.f32 %v3990, %v4201
  %v4232 = vadd.f32 %v3991, %v4206
  %v4233 = vadd.f32 %v3992, %v4209
  %v4234 = vadd.f32 %v3993, %v4214
  %v4235 = vadd.f32 %v3994, %v4217
  %v4236 = vld [vmem:[%s4] sm:$0x1]
  %v4238 = vlaneseq
  %v4239 = vshrl.u32 %v4238, 7
  %v4240 = vsub.s32 0, %v4239
  %v4241 = vrot.slane %v4236, %v4240
  %v4243 = vadd.f32 %v4220, %v4241
  %v4244 = vadd.f32 %v4221, %v4241
  %v4245 = vadd.f32 %v4222, %v4241
  %v4246 = vadd.f32 %v4223, %v4241
  %v4247 = vadd.f32 %v4224, %v4241
  %v4248 = vadd.f32 %v4225, %v4241
  %v4249 = vadd.f32 %v4226, %v4241
  %v4250 = vadd.f32 %v4227, %v4241
  %v4251 = vadd.f32 %v4228, %v4241
  %v4252 = vadd.f32 %v4229, %v4241
  %v4253 = vadd.f32 %v4230, %v4241
  %v4254 = vadd.f32 %v4231, %v4241
  %v4255 = vadd.f32 %v4232, %v4241
  %v4256 = vadd.f32 %v4233, %v4241
  %v4257 = vadd.f32 %v4234, %v4241
  %v4258 = vadd.f32 %v4235, %v4241
  %v4259 = vmax.f32 %v4243, 0.0
  %v4260 = vmax.f32 %v4244, 0.0
  %v4261 = vmax.f32 %v4245, 0.0
  %v4262 = vmax.f32 %v4246, 0.0
  %v4263 = vmax.f32 %v4247, 0.0
  %v4264 = vmax.f32 %v4248, 0.0
  %v4265 = vmax.f32 %v4249, 0.0
  %v4266 = vmax.f32 %v4250, 0.0
  %v4267 = vmax.f32 %v4251, 0.0
  %v4268 = vmax.f32 %v4252, 0.0
  %v4269 = vmax.f32 %v4253, 0.0
  %v4270 = vmax.f32 %v4254, 0.0
  %v4271 = vmax.f32 %v4255, 0.0
  %v4272 = vmax.f32 %v4256, 0.0
  %v4273 = vmax.f32 %v4257, 0.0
  %v4274 = vmax.f32 %v4258, 0.0
  %v4275 = vpack.c.bf16 %v4260, %v4259
  %v4276 = vpack.c.bf16 %v4262, %v4261
  %v4277 = vpack.c.bf16 %v4264, %v4263
  %v4278 = vpack.c.bf16 %v4266, %v4265
  %v4279 = vpack.c.bf16 %v4268, %v4267
  %v4280 = vpack.c.bf16 %v4270, %v4269
  %v4281 = vpack.c.bf16 %v4272, %v4271
  %v4282 = vpack.c.bf16 %v4274, %v4273
  %v4287 = vunpack.c.l.b16 %v4275
  %v4288 = vunpack.c.h.b16 %v4275
  %v4289 = vunpack.c.l.b16 %v4276
  %v4290 = vunpack.c.h.b16 %v4276
  %v4291 = vunpack.c.l.b16 %v4279
  %v4292 = vunpack.c.h.b16 %v4279
  %v4293 = vunpack.c.l.b16 %v4280
  %v4294 = vunpack.c.h.b16 %v4280
  %v4295 = vpack.c.b16 %v4287, %v4287
  %v4296 = vpack.c.b16 %v4288, %v4288
  %v4297 = vpack.c.b16 %v4289, %v4289
  %v4298 = vpack.c.b16 %v4290, %v4290
  %v4299 = vpack.c.b16 %v4291, %v4291
  %v4300 = vpack.c.b16 %v4292, %v4292
  %v4301 = vpack.c.b16 %v4293, %v4293
  %v4302 = vpack.c.b16 %v4294, %v4294
  %4303 = vrot.lane.b32.xlu0 %v4295, 96
  %v4304 = vpop.permute.xlu0 %4303
  %4305 = vrot.lane.b32.xlu0 %v4297, 96
  %v4306 = vpop.permute.xlu0 %4305
  %4307 = vrot.lane.b32.xlu0 %v4299, 96
  %v4308 = vpop.permute.xlu0 %4307
  %4309 = vrot.lane.b32.xlu0 %v4301, 96
  %v4310 = vpop.permute.xlu0 %4309
  %4315 = vst.msk [vmem:[#allocation3] sm:$0xf] %vm77, %v4304
  %4316 = vst.msk [vmem:[#allocation3 + $0x4] sm:$0xf] %vm77, %v4306
  %4317 = vst.msk [vmem:[#allocation3 + $0xc] sm:$0xf] %vm77, %v4308
  %4318 = vst.msk [vmem:[#allocation3 + $0x10] sm:$0xf] %vm77, %v4310
  %4319 = vrot.lane.b32.xlu0 %v4296, 64
  %v4320 = vpop.permute.xlu0 %4319
  %4321 = vrot.lane.b32.xlu0 %v4298, 64
  %v4322 = vpop.permute.xlu0 %4321
  %4323 = vrot.lane.b32.xlu0 %v4300, 64
  %v4324 = vpop.permute.xlu0 %4323
  %4325 = vrot.lane.b32.xlu0 %v4302, 64
  %v4326 = vpop.permute.xlu0 %4325
  %s4331 = scalar_lea.vmem [#allocation3], 4
  %4332 = vst.msk [vmem:[%s4331] sm:$0xf] %vm64, %v4320
  %4333 = vst.msk [vmem:[%s4331 + $0x4] sm:$0xf] %vm64, %v4322
  %4334 = vst.msk [vmem:[%s4331 + $0xc] sm:$0xf] %vm64, %v4324
  %4335 = vst.msk [vmem:[%s4331 + $0x10] sm:$0xf] %vm64, %v4326
  %v4340 = vunpack.c.l.b16 %v4277
  %v4341 = vunpack.c.h.b16 %v4277
  %v4342 = vunpack.c.l.b16 %v4278
  %v4343 = vunpack.c.h.b16 %v4278
  %v4344 = vunpack.c.l.b16 %v4281
  %v4345 = vunpack.c.h.b16 %v4281
  %v4346 = vunpack.c.l.b16 %v4282
  %v4347 = vunpack.c.h.b16 %v4282
  %v4348 = vpack.c.b16 %v4340, %v4340
  %v4349 = vpack.c.b16 %v4341, %v4341
  %v4350 = vpack.c.b16 %v4342, %v4342
  %v4351 = vpack.c.b16 %v4343, %v4343
  %v4352 = vpack.c.b16 %v4344, %v4344
  %v4353 = vpack.c.b16 %v4345, %v4345
  %v4354 = vpack.c.b16 %v4346, %v4346
  %v4355 = vpack.c.b16 %v4347, %v4347
  %4360 = vrot.lane.b32.xlu0 %v4348, 32
  %v4361 = vpop.permute.xlu0 %4360
  %4362 = vrot.lane.b32.xlu0 %v4350, 32
  %v4363 = vpop.permute.xlu0 %4362
  %4364 = vrot.lane.b32.xlu0 %v4352, 32
  %v4365 = vpop.permute.xlu0 %4364
  %4366 = vrot.lane.b32.xlu0 %v4354, 32
  %v4367 = vpop.permute.xlu0 %4366
  %s4372 = scalar_lea.vmem [#allocation3], 12
  %4373 = vst.msk [vmem:[%s4372] sm:$0xf] %vm71, %v4361
  %4374 = vst.msk [vmem:[%s4372 + $0x4] sm:$0xf] %vm71, %v4363
  %4375 = vst.msk [vmem:[%s4372 + $0xc] sm:$0xf] %vm71, %v4365
  %4376 = vst.msk [vmem:[%s4372 + $0x10] sm:$0xf] %vm71, %v4367
  %s4377 = scalar_lea.vmem [#allocation3], 16
  %4378 = vst.msk [vmem:[%s4377] sm:$0xf] %vm58, %v4349
  %4379 = vst.msk [vmem:[%s4377 + $0x4] sm:$0xf] %vm58, %v4351
  %4380 = vst.msk [vmem:[%s4377 + $0xc] sm:$0xf] %vm58, %v4353
  %4381 = vst.msk [vmem:[%s4377 + $0x10] sm:$0xf] %vm58, %v4355
  %v4382 = vld [vmem:[#allocation3] sm:$0xf]
  %v4383 = vld [vmem:[#allocation3 + $0x4] sm:$0xf]
  %v4384 = vld [vmem:[#allocation3 + $0xc] sm:$0xf]
  %v4385 = vld [vmem:[#allocation3 + $0x10] sm:$0xf]
  %v4386 = vld [vmem:[%s5] sm:$0xf]
  %v4387 = vld [vmem:[%s5 + $0x4] sm:$0xf]
  %v4388 = vld [vmem:[%s5 + $0x8] sm:$0xf]
  %v4389 = vld [vmem:[%s5 + $0xc] sm:$0xf]
  %v4390 = vld [vmem:[%s5 + $0x10] sm:$0xf]
  %v4391 = vld [vmem:[%s5 + $0x14] sm:$0xf]
  %v4392 = vld [vmem:[%s5 + $0x18] sm:$0xf]
  %v4393 = vld [vmem:[%s5 + $0x1c] sm:$0xf]
  %v4394 = vld [vmem:[%s5 + $0x20] sm:$0xf]
  %v4395 = vld [vmem:[%s5 + $0x24] sm:$0xf]
  %v4396 = vld [vmem:[%s5 + $0x28] sm:$0xf]
  %v4397 = vld [vmem:[%s5 + $0x2c] sm:$0xf]
  %v4398 = vld [vmem:[%s5 + $0x30] sm:$0xf]
  %v4399 = vld [vmem:[%s5 + $0x34] sm:$0xf]
  %v4400 = vld [vmem:[%s5 + $0x38] sm:$0xf]
  %v4401 = vld [vmem:[%s5 + $0x3c] sm:$0xf]
  %v4402 = vld [vmem:[%s4331] sm:$0xf]
  %v4403 = vld [vmem:[%s4331 + $0x4] sm:$0xf]
  %v4404 = vld [vmem:[%s4331 + $0xc] sm:$0xf]
  %v4405 = vld [vmem:[%s4331 + $0x10] sm:$0xf]
  %v4406 = vld [vmem:[%s5 + $0x40] sm:$0xf]
  %v4407 = vld [vmem:[%s5 + $0x44] sm:$0xf]
  %v4408 = vld [vmem:[%s5 + $0x48] sm:$0xf]
  %v4409 = vld [vmem:[%s5 + $0x4c] sm:$0xf]
  %v4410 = vld [vmem:[%s5 + $0x50] sm:$0xf]
  %v4411 = vld [vmem:[%s5 + $0x54] sm:$0xf]
  %v4412 = vld [vmem:[%s5 + $0x58] sm:$0xf]
  %v4413 = vld [vmem:[%s5 + $0x5c] sm:$0xf]
  %v4414 = vld [vmem:[%s5 + $0x60] sm:$0xf]
  %v4415 = vld [vmem:[%s5 + $0x64] sm:$0xf]
  %v4416 = vld [vmem:[%s5 + $0x68] sm:$0xf]
  %v4417 = vld [vmem:[%s5 + $0x6c] sm:$0xf]
  %v4418 = vld [vmem:[%s5 + $0x70] sm:$0xf]
  %v4419 = vld [vmem:[%s5 + $0x74] sm:$0xf]
  %v4420 = vld [vmem:[%s5 + $0x78] sm:$0xf]
  %v4421 = vld [vmem:[%s5 + $0x7c] sm:$0xf]
  %v4426 = vunpack.c.l.b16 %v4402
  %v4427 = vunpack.c.l.b16 %v4403
  %v4428 = vunpack.c.l.b16 %v4404
  %v4429 = vunpack.c.l.b16 %v4405
  %v4430 = vpack.c.b16 %v4427, %v4426
  %v4431 = vpack.c.b16 %v4429, %v4428
  %v4450 = vunpack.c.l.b16 %v4406
  %v4451 = vunpack.c.l.b16 %v4407
  %v4452 = vunpack.c.l.b16 %v4408
  %v4453 = vunpack.c.l.b16 %v4409
  %v4454 = vunpack.c.l.b16 %v4410
  %v4455 = vunpack.c.l.b16 %v4411
  %v4456 = vunpack.c.l.b16 %v4412
  %v4457 = vunpack.c.l.b16 %v4413
  %v4458 = vunpack.c.l.b16 %v4414
  %v4459 = vunpack.c.l.b16 %v4415
  %v4460 = vunpack.c.l.b16 %v4416
  %v4461 = vunpack.c.l.b16 %v4417
  %v4462 = vunpack.c.l.b16 %v4418
  %v4463 = vunpack.c.l.b16 %v4419
  %v4464 = vunpack.c.l.b16 %v4420
  %v4465 = vunpack.c.l.b16 %v4421
  %v4466 = vpack.c.b16 %v4451, %v4450
  %v4467 = vpack.c.b16 %v4453, %v4452
  %v4468 = vpack.c.b16 %v4455, %v4454
  %v4469 = vpack.c.b16 %v4457, %v4456
  %v4470 = vpack.c.b16 %v4459, %v4458
  %v4471 = vpack.c.b16 %v4461, %v4460
  %v4472 = vpack.c.b16 %v4463, %v4462
  %v4473 = vpack.c.b16 %v4465, %v4464
  %4482 = vmatprep.subr.bf16.mxu0 0
  %4483 = vmatpush1.bf16.msra.mxu0 %v4466
  %4484 = vmatprep.subr.bf16.mxu0 0
  %4485 = vmatpush1.bf16.msra.mxu0 %v4467
  %4486 = vmatprep.subr.bf16.mxu0 0
  %4487 = vmatpush1.bf16.msra.mxu0 %v4468
  %4488 = vmatprep.subr.bf16.mxu0 0
  %4489 = vmatpush1.bf16.msra.mxu0 %v4469
  %4490 = vmatprep.subr.bf16.mxu0 0
  %4491 = vmatpush1.bf16.msra.mxu0 %v4470
  %4492 = vmatprep.subr.bf16.mxu0 0
  %4493 = vmatpush1.bf16.msra.mxu0 %v4471
  %4494 = vmatprep.subr.bf16.mxu0 0
  %4495 = vmatpush1.bf16.msra.mxu0 %v4472
  %4496 = vmatprep.subr.bf16.mxu0 0
  %4497 = vmatpush1.bf16.msra.mxu0 %v4473
  %4498 = vmatprep.subr.bf16.mxu0 0
  %4499 = vmatpush1.bf16.msra.mxu0 0
  %4500 = vmatprep.subr.bf16.mxu0 0
  %4501 = vmatpush1.bf16.msra.mxu0 0
  %4502 = vmatprep.subr.bf16.mxu0 0
  %4503 = vmatpush1.bf16.msra.mxu0 0
  %4504 = vmatprep.subr.bf16.mxu0 0
  %4505 = vmatpush1.bf16.msra.mxu0 0
  %4506 = vmatprep.subr.bf16.mxu0 0
  %4507 = vmatpush1.bf16.msra.mxu0 0
  %4508 = vmatprep.subr.bf16.mxu0 0
  %4509 = vmatpush1.bf16.msra.mxu0 0
  %4510 = vmatprep.subr.bf16.mxu0 0
  %4511 = vmatpush1.bf16.msra.mxu0 0
  %4512 = vmatprep.subr.bf16.mxu0 0
  %4513 = vmatpush1.bf16.msra.mxu0 0
  %4514 = vmatprep.mubr.bf16.mxu0 0
  %4515 = vmatmul.mubr.bf16.gmra.mrb[0].mxu0 %v4430
  %v4516 = vpop.f32.mrb[0].mxu0
  %v4517 = vadd.f32 0.0, %v4516
  %v4518 = vpop.f32.mrb[0].mxu0
  %v4519 = vpop.f32.mrb[0].mxu0
  %v4520 = vadd.f32 0.0, %v4519
  %v4521 = vpop.f32.mrb[0].mxu0
  %4522 = vmatprep.mubr.bf16.mxu0 0
  %4523 = vmatmul.mubr.bf16.gmra.mrb[0].mxu0 %v4431
  %v4524 = vpop.f32.mrb[0].mxu0
  %v4525 = vadd.f32 0.0, %v4524
  %v4526 = vpop.f32.mrb[0].mxu0
  %v4527 = vpop.f32.mrb[0].mxu0
  %v4528 = vadd.f32 0.0, %v4527
  %v4529 = vpop.f32.mrb[0].mxu0
  %4530 = vdwg.mxu0
  %v4535 = vunpack.c.l.b16 %v4382
  %v4536 = vunpack.c.l.b16 %v4383
  %v4537 = vunpack.c.l.b16 %v4384
  %v4538 = vunpack.c.l.b16 %v4385
  %v4539 = vpack.c.b16 %v4536, %v4535
  %v4540 = vpack.c.b16 %v4538, %v4537
  %v4559 = vunpack.c.l.b16 %v4386
  %v4560 = vunpack.c.l.b16 %v4387
  %v4561 = vunpack.c.l.b16 %v4388
  %v4562 = vunpack.c.l.b16 %v4389
  %v4563 = vunpack.c.l.b16 %v4390
  %v4564 = vunpack.c.l.b16 %v4391
  %v4565 = vunpack.c.l.b16 %v4392
  %v4566 = vunpack.c.l.b16 %v4393
  %v4567 = vunpack.c.l.b16 %v4394
  %v4568 = vunpack.c.l.b16 %v4395
  %v4569 = vunpack.c.l.b16 %v4396
  %v4570 = vunpack.c.l.b16 %v4397
  %v4571 = vunpack.c.l.b16 %v4398
  %v4572 = vunpack.c.l.b16 %v4399
  %v4573 = vunpack.c.l.b16 %v4400
  %v4574 = vunpack.c.l.b16 %v4401
  %v4575 = vpack.c.b16 %v4560, %v4559
  %v4576 = vpack.c.b16 %v4562, %v4561
  %v4577 = vpack.c.b16 %v4564, %v4563
  %v4578 = vpack.c.b16 %v4566, %v4565
  %v4579 = vpack.c.b16 %v4568, %v4567
  %v4580 = vpack.c.b16 %v4570, %v4569
  %v4581 = vpack.c.b16 %v4572, %v4571
  %v4582 = vpack.c.b16 %v4574, %v4573
  %4591 = vmatprep.subr.bf16.mxu0 0
  %4592 = vmatpush1.bf16.msra.mxu0 %v4575
  %4593 = vmatprep.subr.bf16.mxu0 0
  %4594 = vmatpush1.bf16.msra.mxu0 %v4576
  %4595 = vmatprep.subr.bf16.mxu0 0
  %4596 = vmatpush1.bf16.msra.mxu0 %v4577
  %4597 = vmatprep.subr.bf16.mxu0 0
  %4598 = vmatpush1.bf16.msra.mxu0 %v4578
  %4599 = vmatprep.subr.bf16.mxu0 0
  %4600 = vmatpush1.bf16.msra.mxu0 %v4579
  %4601 = vmatprep.subr.bf16.mxu0 0
  %4602 = vmatpush1.bf16.msra.mxu0 %v4580
  %4603 = vmatprep.subr.bf16.mxu0 0
  %4604 = vmatpush1.bf16.msra.mxu0 %v4581
  %4605 = vmatprep.subr.bf16.mxu0 0
  %4606 = vmatpush1.bf16.msra.mxu0 %v4582
  %4607 = vmatprep.subr.bf16.mxu0 0
  %4608 = vmatpush1.bf16.msra.mxu0 0
  %4609 = vmatprep.subr.bf16.mxu0 0
  %4610 = vmatpush1.bf16.msra.mxu0 0
  %4611 = vmatprep.subr.bf16.mxu0 0
  %4612 = vmatpush1.bf16.msra.mxu0 0
  %4613 = vmatprep.subr.bf16.mxu0 0
  %4614 = vmatpush1.bf16.msra.mxu0 0
  %4615 = vmatprep.subr.bf16.mxu0 0
  %4616 = vmatpush1.bf16.msra.mxu0 0
  %4617 = vmatprep.subr.bf16.mxu0 0
  %4618 = vmatpush1.bf16.msra.mxu0 0
  %4619 = vmatprep.subr.bf16.mxu0 0
  %4620 = vmatpush1.bf16.msra.mxu0 0
  %4621 = vmatprep.subr.bf16.mxu0 0
  %4622 = vmatpush1.bf16.msra.mxu0 0
  %4623 = vmatprep.mubr.bf16.mxu0 0
  %4624 = vmatmul.mubr.bf16.gmra.mrb[0].mxu0 %v4539
  %v4625 = vpop.f32.mrb[0].mxu0
  %v4626 = vadd.f32 %v4517, %v4625
  %v4627 = vpop.f32.mrb[0].mxu0
  %v4628 = vpop.f32.mrb[0].mxu0
  %v4629 = vadd.f32 %v4520, %v4628
  %v4630 = vpop.f32.mrb[0].mxu0
  %4631 = vmatprep.mubr.bf16.mxu0 0
  %4632 = vmatmul.mubr.bf16.gmra.mrb[0].mxu0 %v4540
  %v4633 = vpop.f32.mrb[0].mxu0
  %v4634 = vadd.f32 %v4525, %v4633
  %v4635 = vpop.f32.mrb[0].mxu0
  %v4636 = vpop.f32.mrb[0].mxu0
  %v4637 = vadd.f32 %v4528, %v4636
  %v4638 = vpop.f32.mrb[0].mxu0
  %4639 = vdwg.mxu0
  %v4640 = vld [vmem:[%s4372] sm:$0xf]
  %v4641 = vld [vmem:[%s4372 + $0x4] sm:$0xf]
  %v4642 = vld [vmem:[%s4372 + $0xc] sm:$0xf]
  %v4643 = vld [vmem:[%s4372 + $0x10] sm:$0xf]
  %v4644 = vld [vmem:[%s5 + $0x80] sm:$0xf]
  %v4645 = vld [vmem:[%s5 + $0x84] sm:$0xf]
  %v4646 = vld [vmem:[%s5 + $0x88] sm:$0xf]
  %v4647 = vld [vmem:[%s5 + $0x8c] sm:$0xf]
  %v4648 = vld [vmem:[%s5 + $0x90] sm:$0xf]
  %v4649 = vld [vmem:[%s5 + $0x94] sm:$0xf]
  %v4650 = vld [vmem:[%s5 + $0x98] sm:$0xf]
  %v4651 = vld [vmem:[%s5 + $0x9c] sm:$0xf]
  %v4652 = vld [vmem:[%s5 + $0xa0] sm:$0xf]
  %v4653 = vld [vmem:[%s5 + $0xa4] sm:$0xf]
  %v4654 = vld [vmem:[%s5 + $0xa8] sm:$0xf]
  %v4655 = vld [vmem:[%s5 + $0xac] sm:$0xf]
  %v4656 = vld [vmem:[%s5 + $0xb0] sm:$0xf]
  %v4657 = vld [vmem:[%s5 + $0xb4] sm:$0xf]
  %v4658 = vld [vmem:[%s5 + $0xb8] sm:$0xf]
  %v4659 = vld [vmem:[%s5 + $0xbc] sm:$0xf]
  %v4664 = vunpack.c.l.b16 %v4640
  %v4665 = vunpack.c.l.b16 %v4641
  %v4666 = vunpack.c.l.b16 %v4642
  %v4667 = vunpack.c.l.b16 %v4643
  %v4668 = vpack.c.b16 %v4665, %v4664
  %v4669 = vpack.c.b16 %v4667, %v4666
  %v4688 = vunpack.c.l.b16 %v4644
  %v4689 = vunpack.c.l.b16 %v4645
  %v4690 = vunpack.c.l.b16 %v4646
  %v4691 = vunpack.c.l.b16 %v4647
  %v4692 = vunpack.c.l.b16 %v4648
  %v4693 = vunpack.c.l.b16 %v4649
  %v4694 = vunpack.c.l.b16 %v4650
  %v4695 = vunpack.c.l.b16 %v4651
  %v4696 = vunpack.c.l.b16 %v4652
  %v4697 = vunpack.c.l.b16 %v4653
  %v4698 = vunpack.c.l.b16 %v4654
  %v4699 = vunpack.c.l.b16 %v4655
  %v4700 = vunpack.c.l.b16 %v4656
  %v4701 = vunpack.c.l.b16 %v4657
  %v4702 = vunpack.c.l.b16 %v4658
  %v4703 = vunpack.c.l.b16 %v4659
  %v4704 = vpack.c.b16 %v4689, %v4688
  %v4705 = vpack.c.b16 %v4691, %v4690
  %v4706 = vpack.c.b16 %v4693, %v4692
  %v4707 = vpack.c.b16 %v4695, %v4694
  %v4708 = vpack.c.b16 %v4697, %v4696
  %v4709 = vpack.c.b16 %v4699, %v4698
  %v4710 = vpack.c.b16 %v4701, %v4700
  %v4711 = vpack.c.b16 %v4703, %v4702
  %4720 = vmatprep.subr.bf16.mxu0 0
  %4721 = vmatpush1.bf16.msra.mxu0 %v4704
  %4722 = vmatprep.subr.bf16.mxu0 0
  %4723 = vmatpush1.bf16.msra.mxu0 %v4705
  %4724 = vmatprep.subr.bf16.mxu0 0
  %4725 = vmatpush1.bf16.msra.mxu0 %v4706
  %4726 = vmatprep.subr.bf16.mxu0 0
  %4727 = vmatpush1.bf16.msra.mxu0 %v4707
  %4728 = vmatprep.subr.bf16.mxu0 0
  %4729 = vmatpush1.bf16.msra.mxu0 %v4708
  %4730 = vmatprep.subr.bf16.mxu0 0
  %4731 = vmatpush1.bf16.msra.mxu0 %v4709
  %4732 = vmatprep.subr.bf16.mxu0 0
  %4733 = vmatpush1.bf16.msra.mxu0 %v4710
  %4734 = vmatprep.subr.bf16.mxu0 0
  %4735 = vmatpush1.bf16.msra.mxu0 %v4711
  %4736 = vmatprep.subr.bf16.mxu0 0
  %4737 = vmatpush1.bf16.msra.mxu0 0
  %4738 = vmatprep.subr.bf16.mxu0 0
  %4739 = vmatpush1.bf16.msra.mxu0 0
  %4740 = vmatprep.subr.bf16.mxu0 0
  %4741 = vmatpush1.bf16.msra.mxu0 0
  %4742 = vmatprep.subr.bf16.mxu0 0
  %4743 = vmatpush1.bf16.msra.mxu0 0
  %4744 = vmatprep.subr.bf16.mxu0 0
  %4745 = vmatpush1.bf16.msra.mxu0 0
  %4746 = vmatprep.subr.bf16.mxu0 0
  %4747 = vmatpush1.bf16.msra.mxu0 0
  %4748 = vmatprep.subr.bf16.mxu0 0
  %4749 = vmatpush1.bf16.msra.mxu0 0
  %4750 = vmatprep.subr.bf16.mxu0 0
  %4751 = vmatpush1.bf16.msra.mxu0 0
  %4752 = vmatprep.mubr.bf16.mxu0 0
  %4753 = vmatmul.mubr.bf16.gmra.mrb[0].mxu0 %v4668
  %v4754 = vpop.f32.mrb[0].mxu0
  %v4755 = vadd.f32 0.0, %v4754
  %v4756 = vpop.f32.mrb[0].mxu0
  %v4757 = vpop.f32.mrb[0].mxu0
  %v4758 = vadd.f32 0.0, %v4757
  %v4759 = vpop.f32.mrb[0].mxu0
  %4760 = vmatprep.mubr.bf16.mxu0 0
  %4761 = vmatmul.mubr.bf16.gmra.mrb[0].mxu0 %v4669
  %v4762 = vpop.f32.mrb[0].mxu0
  %v4763 = vadd.f32 0.0, %v4762
  %v4764 = vpop.f32.mrb[0].mxu0
  %v4765 = vpop.f32.mrb[0].mxu0
  %v4766 = vadd.f32 0.0, %v4765
  %v4767 = vpop.f32.mrb[0].mxu0
  %4768 = vdwg.mxu0
  %v4769 = vadd.f32 %v4626, %v4755
  %v4770 = vadd.f32 %v4629, %v4758
  %v4771 = vadd.f32 %v4634, %v4763
  %v4772 = vadd.f32 %v4637, %v4766
  %v4773 = vld [vmem:[%s4377] sm:$0xf]
  %v4774 = vld [vmem:[%s4377 + $0x4] sm:$0xf]
  %v4775 = vld [vmem:[%s4377 + $0xc] sm:$0xf]
  %v4776 = vld [vmem:[%s4377 + $0x10] sm:$0xf]
  %v4777 = vld [vmem:[%s5 + $0xc0] sm:$0xf]
  %v4778 = vld [vmem:[%s5 + $0xc4] sm:$0xf]
  %v4779 = vld [vmem:[%s5 + $0xc8] sm:$0xf]
  %v4780 = vld [vmem:[%s5 + $0xcc] sm:$0xf]
  %v4781 = vld [vmem:[%s5 + $0xd0] sm:$0xf]
  %v4782 = vld [vmem:[%s5 + $0xd4] sm:$0xf]
  %v4783 = vld [vmem:[%s5 + $0xd8] sm:$0xf]
  %v4784 = vld [vmem:[%s5 + $0xdc] sm:$0xf]
  %v4785 = vld [vmem:[%s5 + $0xe0] sm:$0xf]
  %v4786 = vld [vmem:[%s5 + $0xe4] sm:$0xf]
  %v4787 = vld [vmem:[%s5 + $0xe8] sm:$0xf]
  %v4788 = vld [vmem:[%s5 + $0xec] sm:$0xf]
  %v4789 = vld [vmem:[%s5 + $0xf0] sm:$0xf]
  %v4790 = vld [vmem:[%s5 + $0xf4] sm:$0xf]
  %v4791 = vld [vmem:[%s5 + $0xf8] sm:$0xf]
  %v4792 = vld [vmem:[%s5 + $0xfc] sm:$0xf]
  %v4797 = vunpack.c.l.b16 %v4773
  %v4798 = vunpack.c.l.b16 %v4774
  %v4799 = vunpack.c.l.b16 %v4775
  %v4800 = vunpack.c.l.b16 %v4776
  %v4801 = vpack.c.b16 %v4798, %v4797
  %v4802 = vpack.c.b16 %v4800, %v4799
  %v4821 = vunpack.c.l.b16 %v4777
  %v4822 = vunpack.c.l.b16 %v4778
  %v4823 = vunpack.c.l.b16 %v4779
  %v4824 = vunpack.c.l.b16 %v4780
  %v4825 = vunpack.c.l.b16 %v4781
  %v4826 = vunpack.c.l.b16 %v4782
  %v4827 = vunpack.c.l.b16 %v4783
  %v4828 = vunpack.c.l.b16 %v4784
  %v4829 = vunpack.c.l.b16 %v4785
  %v4830 = vunpack.c.l.b16 %v4786
  %v4831 = vunpack.c.l.b16 %v4787
  %v4832 = vunpack.c.l.b16 %v4788
  %v4833 = vunpack.c.l.b16 %v4789
  %v4834 = vunpack.c.l.b16 %v4790
  %v4835 = vunpack.c.l.b16 %v4791
  %v4836 = vunpack.c.l.b16 %v4792
  %v4837 = vpack.c.b16 %v4822, %v4821
  %v4838 = vpack.c.b16 %v4824, %v4823
  %v4839 = vpack.c.b16 %v4826, %v4825
  %v4840 = vpack.c.b16 %v4828, %v4827
  %v4841 = vpack.c.b16 %v4830, %v4829
  %v4842 = vpack.c.b16 %v4832, %v4831
  %v4843 = vpack.c.b16 %v4834, %v4833
  %v4844 = vpack.c.b16 %v4836, %v4835
  %4853 = vmatprep.subr.bf16.mxu0 0
  %4854 = vmatpush1.bf16.msra.mxu0 %v4837
  %4855 = vmatprep.subr.bf16.mxu0 0
  %4856 = vmatpush1.bf16.msra.mxu0 %v4838
  %4857 = vmatprep.subr.bf16.mxu0 0
  %4858 = vmatpush1.bf16.msra.mxu0 %v4839
  %4859 = vmatprep.subr.bf16.mxu0 0
  %4860 = vmatpush1.bf16.msra.mxu0 %v4840
  %4861 = vmatprep.subr.bf16.mxu0 0
  %4862 = vmatpush1.bf16.msra.mxu0 %v4841
  %4863 = vmatprep.subr.bf16.mxu0 0
  %4864 = vmatpush1.bf16.msra.mxu0 %v4842
  %4865 = vmatprep.subr.bf16.mxu0 0
  %4866 = vmatpush1.bf16.msra.mxu0 %v4843
  %4867 = vmatprep.subr.bf16.mxu0 0
  %4868 = vmatpush1.bf16.msra.mxu0 %v4844
  %4869 = vmatprep.subr.bf16.mxu0 0
  %4870 = vmatpush1.bf16.msra.mxu0 0
  %4871 = vmatprep.subr.bf16.mxu0 0
  %4872 = vmatpush1.bf16.msra.mxu0 0
  %4873 = vmatprep.subr.bf16.mxu0 0
  %4874 = vmatpush1.bf16.msra.mxu0 0
  %4875 = vmatprep.subr.bf16.mxu0 0
  %4876 = vmatpush1.bf16.msra.mxu0 0
  %4877 = vmatprep.subr.bf16.mxu0 0
  %4878 = vmatpush1.bf16.msra.mxu0 0
  %4879 = vmatprep.subr.bf16.mxu0 0
  %4880 = vmatpush1.bf16.msra.mxu0 0
  %4881 = vmatprep.subr.bf16.mxu0 0
  %4882 = vmatpush1.bf16.msra.mxu0 0
  %4883 = vmatprep.subr.bf16.mxu0 0
  %4884 = vmatpush1.bf16.msra.mxu0 0
  %4885 = vmatprep.mubr.bf16.mxu0 0
  %4886 = vmatmul.mubr.bf16.gmra.mrb[0].mxu0 %v4801
  %v4887 = vpop.f32.mrb[0].mxu0
  %v4888 = vadd.f32 0.0, %v4887
  %v4889 = vpop.f32.mrb[0].mxu0
  %v4890 = vpop.f32.mrb[0].mxu0
  %v4891 = vadd.f32 0.0, %v4890
  %v4892 = vpop.f32.mrb[0].mxu0
  %4893 = vmatprep.mubr.bf16.mxu0 0
  %4894 = vmatmul.mubr.bf16.gmra.mrb[0].mxu0 %v4802
  %v4895 = vpop.f32.mrb[0].mxu0
  %v4896 = vadd.f32 0.0, %v4895
  %v4897 = vpop.f32.mrb[0].mxu0
  %v4898 = vpop.f32.mrb[0].mxu0
  %v4899 = vadd.f32 0.0, %v4898
  %v4900 = vpop.f32.mrb[0].mxu0
  %4901 = vdwg.mxu0
  %v4902 = vadd.f32 %v4769, %v4888
  %v4903 = vadd.f32 %v4770, %v4891
  %v4904 = vadd.f32 %v4771, %v4896
  %v4905 = vadd.f32 %v4772, %v4899
  %v4906 = vld [vmem:[%s6] sm:$0x1]
  %v4908 = vlaneseq
  %v4909 = vshrl.u32 %v4908, 7
  %v4910 = vsub.s32 0, %v4909
  %v4911 = vrot.slane %v4906, %v4910
  %v4913 = vadd.f32 %v4902, %v4911
  %v4914 = vadd.f32 %v4903, %v4911
  %v4915 = vadd.f32 %v4904, %v4911
  %v4916 = vadd.f32 %v4905, %v4911
  %v4917 = vmax.f32 %v4913, 0.0
  %v4918 = vmax.f32 %v4914, 0.0
  %v4919 = vmax.f32 %v4915, 0.0
  %v4920 = vmax.f32 %v4916, 0.0
  %v4921 = vpack.c.bf16 %v4918, %v4917
  %v4922 = vpack.c.bf16 %v4920, %v4919
  %v4924 = vunpack.c.l.b16 %v4921
  %v4925 = vunpack.c.h.b16 %v4921
  %v4926 = vpack.c.b16 %v4924, %v4924
  %v4927 = vpack.c.b16 %v4925, %v4925
  %4929 = vrot.lane.b32.xlu0 %v4926, 64
  %v4930 = vpop.permute.xlu0 %4929
  %4932 = vst.msk [vmem:[#allocation4 + $0x4] sm:$0xf] %vm52, %v4930
  %4933 = vst.msk [vmem:[%s112 + $0x4] sm:$0xf] %vm45, %v4927
  %v4935 = vunpack.c.l.b16 %v4922
  %v4936 = vunpack.c.h.b16 %v4922
  %v4937 = vpack.c.b16 %v4935, %v4935
  %v4938 = vpack.c.b16 %v4936, %v4936
  %4940 = vrot.lane.b32.xlu0 %v4937, 64
  %v4941 = vpop.permute.xlu0 %4940
  %4943 = vst.msk [vmem:[%s105] sm:$0xf] %vm52, %v4941
  %s4944 = scalar_lea.vmem [#allocation4], 24
  %4945 = vst.msk [vmem:[%s4944] sm:$0xf] %vm45, %v4938
  %v4946 = vld [vmem:[#allocation4] sm:$0xff]
  %v4947 = vld [vmem:[%s7] sm:$0xf]
  %v4948 = vld [vmem:[%s7 + $0x4] sm:$0xf]
  %v4949 = vld [vmem:[%s7 + $0x8] sm:$0xf]
  %v4950 = vld [vmem:[%s7 + $0xc] sm:$0xf]
  %v4951 = vld [vmem:[%s7 + $0x10] sm:$0xf]
  %v4952 = vld [vmem:[%s7 + $0x14] sm:$0xf]
  %v4953 = vld [vmem:[%s7 + $0x18] sm:$0xf]
  %v4954 = vld [vmem:[%s7 + $0x1c] sm:$0xf]
  %v4955 = vld [vmem:[%s7 + $0x20] sm:$0xf]
  %v4956 = vld [vmem:[%s7 + $0x24] sm:$0xf]
  %v4957 = vld [vmem:[%s7 + $0x28] sm:$0xf]
  %v4958 = vld [vmem:[%s7 + $0x2c] sm:$0xf]
  %v4959 = vld [vmem:[%s7 + $0x30] sm:$0xf]
  %v4960 = vld [vmem:[%s7 + $0x34] sm:$0xf]
  %v4961 = vld [vmem:[%s7 + $0x38] sm:$0xf]
  %v4962 = vld [vmem:[%s7 + $0x3c] sm:$0xf]
  %v4963 = vld [vmem:[%s7 + $0x40] sm:$0xf]
  %v4964 = vld [vmem:[%s7 + $0x44] sm:$0xf]
  %v4965 = vld [vmem:[%s7 + $0x48] sm:$0xf]
  %v4966 = vld [vmem:[%s7 + $0x4c] sm:$0xf]
  %v4967 = vld [vmem:[%s7 + $0x50] sm:$0xf]
  %v4968 = vld [vmem:[%s7 + $0x54] sm:$0xf]
  %v4969 = vld [vmem:[%s7 + $0x58] sm:$0xf]
  %v4970 = vld [vmem:[%s7 + $0x5c] sm:$0xf]
  %v4971 = vld [vmem:[%s7 + $0x60] sm:$0xf]
  %v4972 = vld [vmem:[%s7 + $0x64] sm:$0xf]
  %v4973 = vld [vmem:[%s7 + $0x68] sm:$0xf]
  %v4974 = vld [vmem:[%s7 + $0x6c] sm:$0xf]
  %v4975 = vld [vmem:[%s7 + $0x70] sm:$0xf]
  %v4976 = vld [vmem:[%s7 + $0x74] sm:$0xf]
  %v4977 = vld [vmem:[%s7 + $0x78] sm:$0xf]
  %v4978 = vld [vmem:[%s7 + $0x7c] sm:$0xf]
  %v4979 = vld [vmem:[%s112] sm:$0xff]
  %v4980 = vld [vmem:[%s7 + $0x80] sm:$0xf]
  %v4981 = vld [vmem:[%s7 + $0x84] sm:$0xf]
  %v4982 = vld [vmem:[%s7 + $0x88] sm:$0xf]
  %v4983 = vld [vmem:[%s7 + $0x8c] sm:$0xf]
  %v4984 = vld [vmem:[%s7 + $0x90] sm:$0xf]
  %v4985 = vld [vmem:[%s7 + $0x94] sm:$0xf]
  %v4986 = vld [vmem:[%s7 + $0x98] sm:$0xf]
  %v4987 = vld [vmem:[%s7 + $0x9c] sm:$0xf]
  %v4988 = vld [vmem:[%s7 + $0xa0] sm:$0xf]
  %v4989 = vld [vmem:[%s7 + $0xa4] sm:$0xf]
  %v4990 = vld [vmem:[%s7 + $0xa8] sm:$0xf]
  %v4991 = vld [vmem:[%s7 + $0xac] sm:$0xf]
  %v4992 = vld [vmem:[%s7 + $0xb0] sm:$0xf]
  %v4993 = vld [vmem:[%s7 + $0xb4] sm:$0xf]
  %v4994 = vld [vmem:[%s7 + $0xb8] sm:$0xf]
  %v4995 = vld [vmem:[%s7 + $0xbc] sm:$0xf]
  %v4996 = vld [vmem:[%s7 + $0xc0] sm:$0xf]
  %v4997 = vld [vmem:[%s7 + $0xc4] sm:$0xf]
  %v4998 = vld [vmem:[%s7 + $0xc8] sm:$0xf]
  %v4999 = vld [vmem:[%s7 + $0xcc] sm:$0xf]
  %v5000 = vld [vmem:[%s7 + $0xd0] sm:$0xf]
  %v5001 = vld [vmem:[%s7 + $0xd4] sm:$0xf]
  %v5002 = vld [vmem:[%s7 + $0xd8] sm:$0xf]
  %v5003 = vld [vmem:[%s7 + $0xdc] sm:$0xf]
  %v5004 = vld [vmem:[%s7 + $0xe0] sm:$0xf]
  %v5005 = vld [vmem:[%s7 + $0xe4] sm:$0xf]
  %v5006 = vld [vmem:[%s7 + $0xe8] sm:$0xf]
  %v5007 = vld [vmem:[%s7 + $0xec] sm:$0xf]
  %v5008 = vld [vmem:[%s7 + $0xf0] sm:$0xf]
  %v5009 = vld [vmem:[%s7 + $0xf4] sm:$0xf]
  %v5010 = vld [vmem:[%s7 + $0xf8] sm:$0xf]
  %v5011 = vld [vmem:[%s7 + $0xfc] sm:$0xf]
  %v5013 = vunpack.c.l.b16 %v4979
  %v5014 = vunpack.c.h.b16 %v4979
  %v5015 = vpack.c.b16 %v5013, %v5013
  %v5016 = vpack.c.b16 %v5014, %v5014
  %v5051 = vunpack.c.l.b16 %v4980
  %v5052 = vunpack.c.l.b16 %v4981
  %v5053 = vunpack.c.l.b16 %v4982
  %v5054 = vunpack.c.l.b16 %v4983
  %v5055 = vunpack.c.l.b16 %v4984
  %v5056 = vunpack.c.l.b16 %v4985
  %v5057 = vunpack.c.l.b16 %v4986
  %v5058 = vunpack.c.l.b16 %v4987
  %v5059 = vunpack.c.l.b16 %v4988
  %v5060 = vunpack.c.l.b16 %v4989
  %v5061 = vunpack.c.l.b16 %v4990
  %v5062 = vunpack.c.l.b16 %v4991
  %v5063 = vunpack.c.l.b16 %v4992
  %v5064 = vunpack.c.l.b16 %v4993
  %v5065 = vunpack.c.l.b16 %v4994
  %v5066 = vunpack.c.l.b16 %v4995
  %v5067 = vunpack.c.l.b16 %v4996
  %v5068 = vunpack.c.l.b16 %v4997
  %v5069 = vunpack.c.l.b16 %v4998
  %v5070 = vunpack.c.l.b16 %v4999
  %v5071 = vunpack.c.l.b16 %v5000
  %v5072 = vunpack.c.l.b16 %v5001
  %v5073 = vunpack.c.l.b16 %v5002
  %v5074 = vunpack.c.l.b16 %v5003
  %v5075 = vunpack.c.l.b16 %v5004
  %v5076 = vunpack.c.l.b16 %v5005
  %v5077 = vunpack.c.l.b16 %v5006
  %v5078 = vunpack.c.l.b16 %v5007
  %v5079 = vunpack.c.l.b16 %v5008
  %v5080 = vunpack.c.l.b16 %v5009
  %v5081 = vunpack.c.l.b16 %v5010
  %v5082 = vunpack.c.l.b16 %v5011
  %v5083 = vpack.c.b16 %v5052, %v5051
  %v5084 = vpack.c.b16 %v5054, %v5053
  %v5085 = vpack.c.b16 %v5056, %v5055
  %v5086 = vpack.c.b16 %v5058, %v5057
  %v5087 = vpack.c.b16 %v5060, %v5059
  %v5088 = vpack.c.b16 %v5062, %v5061
  %v5089 = vpack.c.b16 %v5064, %v5063
  %v5090 = vpack.c.b16 %v5066, %v5065
  %v5091 = vpack.c.b16 %v5068, %v5067
  %v5092 = vpack.c.b16 %v5070, %v5069
  %v5093 = vpack.c.b16 %v5072, %v5071
  %v5094 = vpack.c.b16 %v5074, %v5073
  %v5095 = vpack.c.b16 %v5076, %v5075
  %v5096 = vpack.c.b16 %v5078, %v5077
  %v5097 = vpack.c.b16 %v5080, %v5079
  %v5098 = vpack.c.b16 %v5082, %v5081
  %5115 = vmatprep.subr.bf16.mxu0 0
  %5116 = vmatpush1.bf16.msra.mxu0 %v5083
  %5117 = vmatprep.subr.bf16.mxu0 0
  %5118 = vmatpush1.bf16.msra.mxu0 %v5084
  %5119 = vmatprep.subr.bf16.mxu0 0
  %5120 = vmatpush1.bf16.msra.mxu0 %v5085
  %5121 = vmatprep.subr.bf16.mxu0 0
  %5122 = vmatpush1.bf16.msra.mxu0 %v5086
  %5123 = vmatprep.subr.bf16.mxu0 0
  %5124 = vmatpush1.bf16.msra.mxu0 %v5087
  %5125 = vmatprep.subr.bf16.mxu0 0
  %5126 = vmatpush1.bf16.msra.mxu0 %v5088
  %5127 = vmatprep.subr.bf16.mxu0 0
  %5128 = vmatpush1.bf16.msra.mxu0 %v5089
  %5129 = vmatprep.subr.bf16.mxu0 0
  %5130 = vmatpush1.bf16.msra.mxu0 %v5090
  %5131 = vmatprep.subr.bf16.mxu0 0
  %5132 = vmatpush1.bf16.msra.mxu0 %v5091
  %5133 = vmatprep.subr.bf16.mxu0 0
  %5134 = vmatpush1.bf16.msra.mxu0 %v5092
  %5135 = vmatprep.subr.bf16.mxu0 0
  %5136 = vmatpush1.bf16.msra.mxu0 %v5093
  %5137 = vmatprep.subr.bf16.mxu0 0
  %5138 = vmatpush1.bf16.msra.mxu0 %v5094
  %5139 = vmatprep.subr.bf16.mxu0 0
  %5140 = vmatpush1.bf16.msra.mxu0 %v5095
  %5141 = vmatprep.subr.bf16.mxu0 0
  %5142 = vmatpush1.bf16.msra.mxu0 %v5096
  %5143 = vmatprep.subr.bf16.mxu0 0
  %5144 = vmatpush1.bf16.msra.mxu0 %v5097
  %5145 = vmatprep.subr.bf16.mxu0 0
  %5146 = vmatpush1.bf16.msra.mxu0 %v5098
  %5147 = vmatprep.mubr.bf16.mxu0 %v5016
  %5148 = vmatmul.mubr.bf16.gmra.mrb[0].mxu0 %v5015
  %v5149 = vpop.f32.mrb[0].mxu0
  %v5150 = vadd.f32 0.0, %v5149
  %v5151 = vpop.f32.mrb[0].mxu0
  %v5152 = vpop.f32.mrb[0].mxu0
  %v5153 = vpop.f32.mrb[0].mxu0
  %5154 = vdwg.mxu0
  %v5156 = vunpack.c.l.b16 %v4946
  %v5157 = vunpack.c.h.b16 %v4946
  %v5158 = vpack.c.b16 %v5156, %v5156
  %v5159 = vpack.c.b16 %v5157, %v5157
  %v5194 = vunpack.c.l.b16 %v4947
  %v5195 = vunpack.c.l.b16 %v4948
  %v5196 = vunpack.c.l.b16 %v4949
  %v5197 = vunpack.c.l.b16 %v4950
  %v5198 = vunpack.c.l.b16 %v4951
  %v5199 = vunpack.c.l.b16 %v4952
  %v5200 = vunpack.c.l.b16 %v4953
  %v5201 = vunpack.c.l.b16 %v4954
  %v5202 = vunpack.c.l.b16 %v4955
  %v5203 = vunpack.c.l.b16 %v4956
  %v5204 = vunpack.c.l.b16 %v4957
  %v5205 = vunpack.c.l.b16 %v4958
  %v5206 = vunpack.c.l.b16 %v4959
  %v5207 = vunpack.c.l.b16 %v4960
  %v5208 = vunpack.c.l.b16 %v4961
  %v5209 = vunpack.c.l.b16 %v4962
  %v5210 = vunpack.c.l.b16 %v4963
  %v5211 = vunpack.c.l.b16 %v4964
  %v5212 = vunpack.c.l.b16 %v4965
  %v5213 = vunpack.c.l.b16 %v4966
  %v5214 = vunpack.c.l.b16 %v4967
  %v5215 = vunpack.c.l.b16 %v4968
  %v5216 = vunpack.c.l.b16 %v4969
  %v5217 = vunpack.c.l.b16 %v4970
  %v5218 = vunpack.c.l.b16 %v4971
  %v5219 = vunpack.c.l.b16 %v4972
  %v5220 = vunpack.c.l.b16 %v4973
  %v5221 = vunpack.c.l.b16 %v4974
  %v5222 = vunpack.c.l.b16 %v4975
  %v5223 = vunpack.c.l.b16 %v4976
  %v5224 = vunpack.c.l.b16 %v4977
  %v5225 = vunpack.c.l.b16 %v4978
  %v5226 = vpack.c.b16 %v5195, %v5194
  %v5227 = vpack.c.b16 %v5197, %v5196
  %v5228 = vpack.c.b16 %v5199, %v5198
  %v5229 = vpack.c.b16 %v5201, %v5200
  %v5230 = vpack.c.b16 %v5203, %v5202
  %v5231 = vpack.c.b16 %v5205, %v5204
  %v5232 = vpack.c.b16 %v5207, %v5206
  %v5233 = vpack.c.b16 %v5209, %v5208
  %v5234 = vpack.c.b16 %v5211, %v5210
  %v5235 = vpack.c.b16 %v5213, %v5212
  %v5236 = vpack.c.b16 %v5215, %v5214
  %v5237 = vpack.c.b16 %v5217, %v5216
  %v5238 = vpack.c.b16 %v5219, %v5218
  %v5239 = vpack.c.b16 %v5221, %v5220
  %v5240 = vpack.c.b16 %v5223, %v5222
  %v5241 = vpack.c.b16 %v5225, %v5224
  %5258 = vmatprep.subr.bf16.mxu0 0
  %5259 = vmatpush1.bf16.msra.mxu0 %v5226
  %5260 = vmatprep.subr.bf16.mxu0 0
  %5261 = vmatpush1.bf16.msra.mxu0 %v5227
  %5262 = vmatprep.subr.bf16.mxu0 0
  %5263 = vmatpush1.bf16.msra.mxu0 %v5228
  %5264 = vmatprep.subr.bf16.mxu0 0
  %5265 = vmatpush1.bf16.msra.mxu0 %v5229
  %5266 = vmatprep.subr.bf16.mxu0 0
  %5267 = vmatpush1.bf16.msra.mxu0 %v5230
  %5268 = vmatprep.subr.bf16.mxu0 0
  %5269 = vmatpush1.bf16.msra.mxu0 %v5231
  %5270 = vmatprep.subr.bf16.mxu0 0
  %5271 = vmatpush1.bf16.msra.mxu0 %v5232
  %5272 = vmatprep.subr.bf16.mxu0 0
  %5273 = vmatpush1.bf16.msra.mxu0 %v5233
  %5274 = vmatprep.subr.bf16.mxu0 0
  %5275 = vmatpush1.bf16.msra.mxu0 %v5234
  %5276 = vmatprep.subr.bf16.mxu0 0
  %5277 = vmatpush1.bf16.msra.mxu0 %v5235
  %5278 = vmatprep.subr.bf16.mxu0 0
  %5279 = vmatpush1.bf16.msra.mxu0 %v5236
  %5280 = vmatprep.subr.bf16.mxu0 0
  %5281 = vmatpush1.bf16.msra.mxu0 %v5237
  %5282 = vmatprep.subr.bf16.mxu0 0
  %5283 = vmatpush1.bf16.msra.mxu0 %v5238
  %5284 = vmatprep.subr.bf16.mxu0 0
  %5285 = vmatpush1.bf16.msra.mxu0 %v5239
  %5286 = vmatprep.subr.bf16.mxu0 0
  %5287 = vmatpush1.bf16.msra.mxu0 %v5240
  %5288 = vmatprep.subr.bf16.mxu0 0
  %5289 = vmatpush1.bf16.msra.mxu0 %v5241
  %5290 = vmatprep.mubr.bf16.mxu0 %v5159
  %5291 = vmatmul.mubr.bf16.gmra.mrb[0].mxu0 %v5158
  %v5292 = vpop.f32.mrb[0].mxu0
  %v5293 = vadd.f32 %v5150, %v5292
  %v5294 = vpop.f32.mrb[0].mxu0
  %v5295 = vpop.f32.mrb[0].mxu0
  %v5296 = vpop.f32.mrb[0].mxu0
  %5297 = vdwg.mxu0
  %v5298 = vld [vmem:[%s105] sm:$0xff]
  %v5299 = vld [vmem:[%s7 + $0x100] sm:$0xf]
  %v5300 = vld [vmem:[%s7 + $0x104] sm:$0xf]
  %v5301 = vld [vmem:[%s7 + $0x108] sm:$0xf]
  %v5302 = vld [vmem:[%s7 + $0x10c] sm:$0xf]
  %v5303 = vld [vmem:[%s7 + $0x110] sm:$0xf]
  %v5304 = vld [vmem:[%s7 + $0x114] sm:$0xf]
  %v5305 = vld [vmem:[%s7 + $0x118] sm:$0xf]
  %v5306 = vld [vmem:[%s7 + $0x11c] sm:$0xf]
  %v5307 = vld [vmem:[%s7 + $0x120] sm:$0xf]
  %v5308 = vld [vmem:[%s7 + $0x124] sm:$0xf]
  %v5309 = vld [vmem:[%s7 + $0x128] sm:$0xf]
  %v5310 = vld [vmem:[%s7 + $0x12c] sm:$0xf]
  %v5311 = vld [vmem:[%s7 + $0x130] sm:$0xf]
  %v5312 = vld [vmem:[%s7 + $0x134] sm:$0xf]
  %v5313 = vld [vmem:[%s7 + $0x138] sm:$0xf]
  %v5314 = vld [vmem:[%s7 + $0x13c] sm:$0xf]
  %v5315 = vld [vmem:[%s7 + $0x140] sm:$0xf]
  %v5316 = vld [vmem:[%s7 + $0x144] sm:$0xf]
  %v5317 = vld [vmem:[%s7 + $0x148] sm:$0xf]
  %v5318 = vld [vmem:[%s7 + $0x14c] sm:$0xf]
  %v5319 = vld [vmem:[%s7 + $0x150] sm:$0xf]
  %v5320 = vld [vmem:[%s7 + $0x154] sm:$0xf]
  %v5321 = vld [vmem:[%s7 + $0x158] sm:$0xf]
  %v5322 = vld [vmem:[%s7 + $0x15c] sm:$0xf]
  %v5323 = vld [vmem:[%s7 + $0x160] sm:$0xf]
  %v5324 = vld [vmem:[%s7 + $0x164] sm:$0xf]
  %v5325 = vld [vmem:[%s7 + $0x168] sm:$0xf]
  %v5326 = vld [vmem:[%s7 + $0x16c] sm:$0xf]
  %v5327 = vld [vmem:[%s7 + $0x170] sm:$0xf]
  %v5328 = vld [vmem:[%s7 + $0x174] sm:$0xf]
  %v5329 = vld [vmem:[%s7 + $0x178] sm:$0xf]
  %v5330 = vld [vmem:[%s7 + $0x17c] sm:$0xf]
  %v5332 = vunpack.c.l.b16 %v5298
  %v5333 = vunpack.c.h.b16 %v5298
  %v5334 = vpack.c.b16 %v5332, %v5332
  %v5335 = vpack.c.b16 %v5333, %v5333
  %v5370 = vunpack.c.l.b16 %v5299
  %v5371 = vunpack.c.l.b16 %v5300
  %v5372 = vunpack.c.l.b16 %v5301
  %v5373 = vunpack.c.l.b16 %v5302
  %v5374 = vunpack.c.l.b16 %v5303
  %v5375 = vunpack.c.l.b16 %v5304
  %v5376 = vunpack.c.l.b16 %v5305
  %v5377 = vunpack.c.l.b16 %v5306
  %v5378 = vunpack.c.l.b16 %v5307
  %v5379 = vunpack.c.l.b16 %v5308
  %v5380 = vunpack.c.l.b16 %v5309
  %v5381 = vunpack.c.l.b16 %v5310
  %v5382 = vunpack.c.l.b16 %v5311
  %v5383 = vunpack.c.l.b16 %v5312
  %v5384 = vunpack.c.l.b16 %v5313
  %v5385 = vunpack.c.l.b16 %v5314
  %v5386 = vunpack.c.l.b16 %v5315
  %v5387 = vunpack.c.l.b16 %v5316
  %v5388 = vunpack.c.l.b16 %v5317
  %v5389 = vunpack.c.l.b16 %v5318
  %v5390 = vunpack.c.l.b16 %v5319
  %v5391 = vunpack.c.l.b16 %v5320
  %v5392 = vunpack.c.l.b16 %v5321
  %v5393 = vunpack.c.l.b16 %v5322
  %v5394 = vunpack.c.l.b16 %v5323
  %v5395 = vunpack.c.l.b16 %v5324
  %v5396 = vunpack.c.l.b16 %v5325
  %v5397 = vunpack.c.l.b16 %v5326
  %v5398 = vunpack.c.l.b16 %v5327
  %v5399 = vunpack.c.l.b16 %v5328
  %v5400 = vunpack.c.l.b16 %v5329
  %v5401 = vunpack.c.l.b16 %v5330
  %v5402 = vpack.c.b16 %v5371, %v5370
  %v5403 = vpack.c.b16 %v5373, %v5372
  %v5404 = vpack.c.b16 %v5375, %v5374
  %v5405 = vpack.c.b16 %v5377, %v5376
  %v5406 = vpack.c.b16 %v5379, %v5378
  %v5407 = vpack.c.b16 %v5381, %v5380
  %v5408 = vpack.c.b16 %v5383, %v5382
  %v5409 = vpack.c.b16 %v5385, %v5384
  %v5410 = vpack.c.b16 %v5387, %v5386
  %v5411 = vpack.c.b16 %v5389, %v5388
  %v5412 = vpack.c.b16 %v5391, %v5390
  %v5413 = vpack.c.b16 %v5393, %v5392
  %v5414 = vpack.c.b16 %v5395, %v5394
  %v5415 = vpack.c.b16 %v5397, %v5396
  %v5416 = vpack.c.b16 %v5399, %v5398
  %v5417 = vpack.c.b16 %v5401, %v5400
  %5434 = vmatprep.subr.bf16.mxu0 0
  %5435 = vmatpush1.bf16.msra.mxu0 %v5402
  %5436 = vmatprep.subr.bf16.mxu0 0
  %5437 = vmatpush1.bf16.msra.mxu0 %v5403
  %5438 = vmatprep.subr.bf16.mxu0 0
  %5439 = vmatpush1.bf16.msra.mxu0 %v5404
  %5440 = vmatprep.subr.bf16.mxu0 0
  %5441 = vmatpush1.bf16.msra.mxu0 %v5405
  %5442 = vmatprep.subr.bf16.mxu0 0
  %5443 = vmatpush1.bf16.msra.mxu0 %v5406
  %5444 = vmatprep.subr.bf16.mxu0 0
  %5445 = vmatpush1.bf16.msra.mxu0 %v5407
  %5446 = vmatprep.subr.bf16.mxu0 0
  %5447 = vmatpush1.bf16.msra.mxu0 %v5408
  %5448 = vmatprep.subr.bf16.mxu0 0
  %5449 = vmatpush1.bf16.msra.mxu0 %v5409
  %5450 = vmatprep.subr.bf16.mxu0 0
  %5451 = vmatpush1.bf16.msra.mxu0 %v5410
  %5452 = vmatprep.subr.bf16.mxu0 0
  %5453 = vmatpush1.bf16.msra.mxu0 %v5411
  %5454 = vmatprep.subr.bf16.mxu0 0
  %5455 = vmatpush1.bf16.msra.mxu0 %v5412
  %5456 = vmatprep.subr.bf16.mxu0 0
  %5457 = vmatpush1.bf16.msra.mxu0 %v5413
  %5458 = vmatprep.subr.bf16.mxu0 0
  %5459 = vmatpush1.bf16.msra.mxu0 %v5414
  %5460 = vmatprep.subr.bf16.mxu0 0
  %5461 = vmatpush1.bf16.msra.mxu0 %v5415
  %5462 = vmatprep.subr.bf16.mxu0 0
  %5463 = vmatpush1.bf16.msra.mxu0 %v5416
  %5464 = vmatprep.subr.bf16.mxu0 0
  %5465 = vmatpush1.bf16.msra.mxu0 %v5417
  %5466 = vmatprep.mubr.bf16.mxu0 %v5335
  %5467 = vmatmul.mubr.bf16.gmra.mrb[0].mxu0 %v5334
  %v5468 = vpop.f32.mrb[0].mxu0
  %v5469 = vadd.f32 0.0, %v5468
  %v5470 = vpop.f32.mrb[0].mxu0
  %v5471 = vpop.f32.mrb[0].mxu0
  %v5472 = vpop.f32.mrb[0].mxu0
  %5473 = vdwg.mxu0
  %v5474 = vadd.f32 %v5293, %v5469
  %v5475 = vld [vmem:[%s4944] sm:$0xff]
  %v5476 = vld [vmem:[%s7 + $0x180] sm:$0xf]
  %v5477 = vld [vmem:[%s7 + $0x184] sm:$0xf]
  %v5478 = vld [vmem:[%s7 + $0x188] sm:$0xf]
  %v5479 = vld [vmem:[%s7 + $0x18c] sm:$0xf]
  %v5480 = vld [vmem:[%s7 + $0x190] sm:$0xf]
  %v5481 = vld [vmem:[%s7 + $0x194] sm:$0xf]
  %v5482 = vld [vmem:[%s7 + $0x198] sm:$0xf]
  %v5483 = vld [vmem:[%s7 + $0x19c] sm:$0xf]
  %v5484 = vld [vmem:[%s7 + $0x1a0] sm:$0xf]
  %v5485 = vld [vmem:[%s7 + $0x1a4] sm:$0xf]
  %v5486 = vld [vmem:[%s7 + $0x1a8] sm:$0xf]
  %v5487 = vld [vmem:[%s7 + $0x1ac] sm:$0xf]
  %v5488 = vld [vmem:[%s7 + $0x1b0] sm:$0xf]
  %v5489 = vld [vmem:[%s7 + $0x1b4] sm:$0xf]
  %v5490 = vld [vmem:[%s7 + $0x1b8] sm:$0xf]
  %v5491 = vld [vmem:[%s7 + $0x1bc] sm:$0xf]
  %v5492 = vld [vmem:[%s7 + $0x1c0] sm:$0xf]
  %v5493 = vld [vmem:[%s7 + $0x1c4] sm:$0xf]
  %v5494 = vld [vmem:[%s7 + $0x1c8] sm:$0xf]
  %v5495 = vld [vmem:[%s7 + $0x1cc] sm:$0xf]
  %v5496 = vld [vmem:[%s7 + $0x1d0] sm:$0xf]
  %v5497 = vld [vmem:[%s7 + $0x1d4] sm:$0xf]
  %v5498 = vld [vmem:[%s7 + $0x1d8] sm:$0xf]
  %v5499 = vld [vmem:[%s7 + $0x1dc] sm:$0xf]
  %v5500 = vld [vmem:[%s7 + $0x1e0] sm:$0xf]
  %v5501 = vld [vmem:[%s7 + $0x1e4] sm:$0xf]
  %v5502 = vld [vmem:[%s7 + $0x1e8] sm:$0xf]
  %v5503 = vld [vmem:[%s7 + $0x1ec] sm:$0xf]
  %v5504 = vld [vmem:[%s7 + $0x1f0] sm:$0xf]
  %v5505 = vld [vmem:[%s7 + $0x1f4] sm:$0xf]
  %v5506 = vld [vmem:[%s7 + $0x1f8] sm:$0xf]
  %v5507 = vld [vmem:[%s7 + $0x1fc] sm:$0xf]
  %v5509 = vunpack.c.l.b16 %v5475
  %v5510 = vunpack.c.h.b16 %v5475
  %v5511 = vpack.c.b16 %v5509, %v5509
  %v5512 = vpack.c.b16 %v5510, %v5510
  %v5547 = vunpack.c.l.b16 %v5476
  %v5548 = vunpack.c.l.b16 %v5477
  %v5549 = vunpack.c.l.b16 %v5478
  %v5550 = vunpack.c.l.b16 %v5479
  %v5551 = vunpack.c.l.b16 %v5480
  %v5552 = vunpack.c.l.b16 %v5481
  %v5553 = vunpack.c.l.b16 %v5482
  %v5554 = vunpack.c.l.b16 %v5483
  %v5555 = vunpack.c.l.b16 %v5484
  %v5556 = vunpack.c.l.b16 %v5485
  %v5557 = vunpack.c.l.b16 %v5486
  %v5558 = vunpack.c.l.b16 %v5487
  %v5559 = vunpack.c.l.b16 %v5488
  %v5560 = vunpack.c.l.b16 %v5489
  %v5561 = vunpack.c.l.b16 %v5490
  %v5562 = vunpack.c.l.b16 %v5491
  %v5563 = vunpack.c.l.b16 %v5492
  %v5564 = vunpack.c.l.b16 %v5493
  %v5565 = vunpack.c.l.b16 %v5494
  %v5566 = vunpack.c.l.b16 %v5495
  %v5567 = vunpack.c.l.b16 %v5496
  %v5568 = vunpack.c.l.b16 %v5497
  %v5569 = vunpack.c.l.b16 %v5498
  %v5570 = vunpack.c.l.b16 %v5499
  %v5571 = vunpack.c.l.b16 %v5500
  %v5572 = vunpack.c.l.b16 %v5501
  %v5573 = vunpack.c.l.b16 %v5502
  %v5574 = vunpack.c.l.b16 %v5503
  %v5575 = vunpack.c.l.b16 %v5504
  %v5576 = vunpack.c.l.b16 %v5505
  %v5577 = vunpack.c.l.b16 %v5506
  %v5578 = vunpack.c.l.b16 %v5507
  %v5579 = vpack.c.b16 %v5548, %v5547
  %v5580 = vpack.c.b16 %v5550, %v5549
  %v5581 = vpack.c.b16 %v5552, %v5551
  %v5582 = vpack.c.b16 %v5554, %v5553
  %v5583 = vpack.c.b16 %v5556, %v5555
  %v5584 = vpack.c.b16 %v5558, %v5557
  %v5585 = vpack.c.b16 %v5560, %v5559
  %v5586 = vpack.c.b16 %v5562, %v5561
  %v5587 = vpack.c.b16 %v5564, %v5563
  %v5588 = vpack.c.b16 %v5566, %v5565
  %v5589 = vpack.c.b16 %v5568, %v5567
  %v5590 = vpack.c.b16 %v5570, %v5569
  %v5591 = vpack.c.b16 %v5572, %v5571
  %v5592 = vpack.c.b16 %v5574, %v5573
  %v5593 = vpack.c.b16 %v5576, %v5575
  %v5594 = vpack.c.b16 %v5578, %v5577
  %5611 = vmatprep.subr.bf16.mxu0 0
  %5612 = vmatpush1.bf16.msra.mxu0 %v5579
  %5613 = vmatprep.subr.bf16.mxu0 0
  %5614 = vmatpush1.bf16.msra.mxu0 %v5580
  %5615 = vmatprep.subr.bf16.mxu0 0
  %5616 = vmatpush1.bf16.msra.mxu0 %v5581
  %5617 = vmatprep.subr.bf16.mxu0 0
  %5618 = vmatpush1.bf16.msra.mxu0 %v5582
  %5619 = vmatprep.subr.bf16.mxu0 0
  %5620 = vmatpush1.bf16.msra.mxu0 %v5583
  %5621 = vmatprep.subr.bf16.mxu0 0
  %5622 = vmatpush1.bf16.msra.mxu0 %v5584
  %5623 = vmatprep.subr.bf16.mxu0 0
  %5624 = vmatpush1.bf16.msra.mxu0 %v5585
  %5625 = vmatprep.subr.bf16.mxu0 0
  %5626 = vmatpush1.bf16.msra.mxu0 %v5586
  %5627 = vmatprep.subr.bf16.mxu0 0
  %5628 = vmatpush1.bf16.msra.mxu0 %v5587
  %5629 = vmatprep.subr.bf16.mxu0 0
  %5630 = vmatpush1.bf16.msra.mxu0 %v5588
  %5631 = vmatprep.subr.bf16.mxu0 0
  %5632 = vmatpush1.bf16.msra.mxu0 %v5589
  %5633 = vmatprep.subr.bf16.mxu0 0
  %5634 = vmatpush1.bf16.msra.mxu0 %v5590
  %5635 = vmatprep.subr.bf16.mxu0 0
  %5636 = vmatpush1.bf16.msra.mxu0 %v5591
  %5637 = vmatprep.subr.bf16.mxu0 0
  %5638 = vmatpush1.bf16.msra.mxu0 %v5592
  %5639 = vmatprep.subr.bf16.mxu0 0
  %5640 = vmatpush1.bf16.msra.mxu0 %v5593
  %5641 = vmatprep.subr.bf16.mxu0 0
  %5642 = vmatpush1.bf16.msra.mxu0 %v5594
  %5643 = vmatprep.mubr.bf16.mxu0 %v5512
  %5644 = vmatmul.mubr.bf16.gmra.mrb[0].mxu0 %v5511
  %v5645 = vpop.f32.mrb[0].mxu0
  %v5646 = vadd.f32 0.0, %v5645
  %v5647 = vpop.f32.mrb[0].mxu0
  %v5648 = vpop.f32.mrb[0].mxu0
  %v5649 = vpop.f32.mrb[0].mxu0
  %5650 = vdwg.mxu0
  %v5651 = vadd.f32 %v5474, %v5646
  %v5652 = vld [vmem:[%s8] sm:$0x1]
  %v5654 = vlaneseq
  %v5655 = vshrl.u32 %v5654, 7
  %v5656 = vsub.s32 0, %v5655
  %v5657 = vrot.slane %v5652, %v5656
  %v5659 = vadd.f32 %v5651, %v5657
  %v5660 = vmax.f32 %v5659, 0.0
  %v5661 = vpack.c.bf16 %v5660, %v5660
  %5662 = vst.msk [vmem:[#allocation5] sm:$0xf] %vm45, %v5661
  %v5663 = vld [vmem:[#allocation5] sm:$0xf]
  %v5664 = vld [vmem:[%s9] sm:$0xf]
  %v5665 = vld [vmem:[%s9 + $0x4] sm:$0xf]
  %v5666 = vld [vmem:[%s9 + $0x8] sm:$0xf]
  %v5667 = vld [vmem:[%s9 + $0xc] sm:$0xf]
  %v5668 = vld [vmem:[%s9 + $0x10] sm:$0xf]
  %v5669 = vld [vmem:[%s9 + $0x14] sm:$0xf]
  %v5670 = vld [vmem:[%s9 + $0x18] sm:$0xf]
  %v5671 = vld [vmem:[%s9 + $0x1c] sm:$0xf]
  %v5672 = vld [vmem:[%s9 + $0x20] sm:$0xf]
  %v5673 = vld [vmem:[%s9 + $0x24] sm:$0xf]
  %v5674 = vld [vmem:[%s9 + $0x28] sm:$0xf]
  %v5675 = vld [vmem:[%s9 + $0x2c] sm:$0xf]
  %v5676 = vld [vmem:[%s9 + $0x30] sm:$0xf]
  %v5677 = vld [vmem:[%s9 + $0x34] sm:$0xf]
  %v5678 = vld [vmem:[%s9 + $0x38] sm:$0xf]
  %v5679 = vld [vmem:[%s9 + $0x3c] sm:$0xf]
  %v5680 = vld [vmem:[%s10] sm:$0x1]
  %v5682 = vlaneseq
  %v5683 = vshrl.u32 %v5682, 7
  %v5684 = vsub.s32 0, %v5683
  %v5685 = vrot.slane %v5680, %v5684
  %v5703 = vunpack.c.l.b16 %v5664
  %v5704 = vunpack.c.l.b16 %v5665
  %v5705 = vunpack.c.l.b16 %v5666
  %v5706 = vunpack.c.l.b16 %v5667
  %v5707 = vunpack.c.l.b16 %v5668
  %v5708 = vunpack.c.l.b16 %v5669
  %v5709 = vunpack.c.l.b16 %v5670
  %v5710 = vunpack.c.l.b16 %v5671
  %v5711 = vunpack.c.l.b16 %v5672
  %v5712 = vunpack.c.l.b16 %v5673
  %v5713 = vunpack.c.l.b16 %v5674
  %v5714 = vunpack.c.l.b16 %v5675
  %v5715 = vunpack.c.l.b16 %v5676
  %v5716 = vunpack.c.l.b16 %v5677
  %v5717 = vunpack.c.l.b16 %v5678
  %v5718 = vunpack.c.l.b16 %v5679
  %v5719 = vpack.c.b16 %v5704, %v5703
  %v5720 = vpack.c.b16 %v5706, %v5705
  %v5721 = vpack.c.b16 %v5708, %v5707
  %v5722 = vpack.c.b16 %v5710, %v5709
  %v5723 = vpack.c.b16 %v5712, %v5711
  %v5724 = vpack.c.b16 %v5714, %v5713
  %v5725 = vpack.c.b16 %v5716, %v5715
  %v5726 = vpack.c.b16 %v5718, %v5717
  %5735 = vmatprep.subr.bf16.mxu0 0
  %5736 = vmatpush1.bf16.msra.mxu0 %v5719
  %5737 = vmatprep.subr.bf16.mxu0 0
  %5738 = vmatpush1.bf16.msra.mxu0 %v5720
  %5739 = vmatprep.subr.bf16.mxu0 0
  %5740 = vmatpush1.bf16.msra.mxu0 %v5721
  %5741 = vmatprep.subr.bf16.mxu0 0
  %5742 = vmatpush1.bf16.msra.mxu0 %v5722
  %5743 = vmatprep.subr.bf16.mxu0 0
  %5744 = vmatpush1.bf16.msra.mxu0 %v5723
  %5745 = vmatprep.subr.bf16.mxu0 0
  %5746 = vmatpush1.bf16.msra.mxu0 %v5724
  %5747 = vmatprep.subr.bf16.mxu0 0
  %5748 = vmatpush1.bf16.msra.mxu0 %v5725
  %5749 = vmatprep.subr.bf16.mxu0 0
  %5750 = vmatpush1.bf16.msra.mxu0 %v5726
  %5751 = vmatprep.subr.bf16.mxu0 0
  %5752 = vmatpush1.bf16.msra.mxu0 0
  %5753 = vmatprep.subr.bf16.mxu0 0
  %5754 = vmatpush1.bf16.msra.mxu0 0
  %5755 = vmatprep.subr.bf16.mxu0 0
  %5756 = vmatpush1.bf16.msra.mxu0 0
  %5757 = vmatprep.subr.bf16.mxu0 0
  %5758 = vmatpush1.bf16.msra.mxu0 0
  %5759 = vmatprep.subr.bf16.mxu0 0
  %5760 = vmatpush1.bf16.msra.mxu0 0
  %5761 = vmatprep.subr.bf16.mxu0 0
  %5762 = vmatpush1.bf16.msra.mxu0 0
  %5763 = vmatprep.subr.bf16.mxu0 0
  %5764 = vmatpush1.bf16.msra.mxu0 0
  %5765 = vmatprep.subr.bf16.mxu0 0
  %5766 = vmatpush1.bf16.msra.mxu0 0
  %5767 = vmatprep.mubr.bf16.mxu0 0
  %5768 = vmatmul.mubr.bf16.gmra.mrb[0].mxu0 %v5663
  %v5769 = vpop.f32.mrb[0].mxu0
  %v5770 = vadd.f32 %v5685, %v5769
  %v5771 = vpop.f32.mrb[0].mxu0
  %v5772 = vpop.f32.mrb[0].mxu0
  %v5773 = vpop.f32.mrb[0].mxu0
  %5774 = vdwg.mxu0
  %v5775 = vmax.f32 %v5770, 0.0
  %v5776 = vpack.c.bf16 %v5775, %v5775
  %v5777 = vld [vmem:[%s11] sm:$0xf]
  %v5778 = vld [vmem:[%s11 + $0x4] sm:$0xf]
  %v5779 = vld [vmem:[%s11 + $0x8] sm:$0xf]
  %v5780 = vld [vmem:[%s11 + $0xc] sm:$0xf]
  %v5781 = vld [vmem:[%s11 + $0x10] sm:$0xf]
  %v5782 = vld [vmem:[%s11 + $0x14] sm:$0xf]
  %v5783 = vld [vmem:[%s11 + $0x18] sm:$0xf]
  %v5784 = vld [vmem:[%s11 + $0x1c] sm:$0xf]
  %v5785 = vld [vmem:[%s11 + $0x20] sm:$0xf]
  %v5786 = vld [vmem:[%s11 + $0x24] sm:$0xf]
  %v5787 = vld [vmem:[%s11 + $0x28] sm:$0xf]
  %v5788 = vld [vmem:[%s11 + $0x2c] sm:$0xf]
  %v5789 = vld [vmem:[%s11 + $0x30] sm:$0xf]
  %v5790 = vld [vmem:[%s11 + $0x34] sm:$0xf]
  %v5791 = vld [vmem:[%s11 + $0x38] sm:$0xf]
  %v5792 = vld [vmem:[%s11 + $0x3c] sm:$0xf]
  %v5793 = vld [vmem:[%s12] sm:$0x1]
  %v5795 = vlaneseq
  %v5796 = vshrl.u32 %v5795, 7
  %v5797 = vsub.s32 0, %v5796
  %v5798 = vrot.slane %v5793, %v5797
  %v5816 = vunpack.c.l.b16 %v5777
  %v5817 = vunpack.c.l.b16 %v5778
  %v5818 = vunpack.c.l.b16 %v5779
  %v5819 = vunpack.c.l.b16 %v5780
  %v5820 = vunpack.c.l.b16 %v5781
  %v5821 = vunpack.c.l.b16 %v5782
  %v5822 = vunpack.c.l.b16 %v5783
  %v5823 = vunpack.c.l.b16 %v5784
  %v5824 = vunpack.c.l.b16 %v5785
  %v5825 = vunpack.c.l.b16 %v5786
  %v5826 = vunpack.c.l.b16 %v5787
  %v5827 = vunpack.c.l.b16 %v5788
  %v5828 = vunpack.c.l.b16 %v5789
  %v5829 = vunpack.c.l.b16 %v5790
  %v5830 = vunpack.c.l.b16 %v5791
  %v5831 = vunpack.c.l.b16 %v5792
  %v5832 = vpack.c.b16 %v5817, %v5816
  %v5833 = vpack.c.b16 %v5819, %v5818
  %v5834 = vpack.c.b16 %v5821, %v5820
  %v5835 = vpack.c.b16 %v5823, %v5822
  %v5836 = vpack.c.b16 %v5825, %v5824
  %v5837 = vpack.c.b16 %v5827, %v5826
  %v5838 = vpack.c.b16 %v5829, %v5828
  %v5839 = vpack.c.b16 %v5831, %v5830
  %5848 = vmatprep.subr.bf16.mxu0 0
  %5849 = vmatpush1.bf16.msra.mxu0 %v5832
  %5850 = vmatprep.subr.bf16.mxu0 0
  %5851 = vmatpush1.bf16.msra.mxu0 %v5833
  %5852 = vmatprep.subr.bf16.mxu0 0
  %5853 = vmatpush1.bf16.msra.mxu0 %v5834
  %5854 = vmatprep.subr.bf16.mxu0 0
  %5855 = vmatpush1.bf16.msra.mxu0 %v5835
  %5856 = vmatprep.subr.bf16.mxu0 0
  %5857 = vmatpush1.bf16.msra.mxu0 %v5836
  %5858 = vmatprep.subr.bf16.mxu0 0
  %5859 = vmatpush1.bf16.msra.mxu0 %v5837
  %5860 = vmatprep.subr.bf16.mxu0 0
  %5861 = vmatpush1.bf16.msra.mxu0 %v5838
  %5862 = vmatprep.subr.bf16.mxu0 0
  %5863 = vmatpush1.bf16.msra.mxu0 %v5839
  %5864 = vmatprep.subr.bf16.mxu0 0
  %5865 = vmatpush1.bf16.msra.mxu0 0
  %5866 = vmatprep.subr.bf16.mxu0 0
  %5867 = vmatpush1.bf16.msra.mxu0 0
  %5868 = vmatprep.subr.bf16.mxu0 0
  %5869 = vmatpush1.bf16.msra.mxu0 0
  %5870 = vmatprep.subr.bf16.mxu0 0
  %5871 = vmatpush1.bf16.msra.mxu0 0
  %5872 = vmatprep.subr.bf16.mxu0 0
  %5873 = vmatpush1.bf16.msra.mxu0 0
  %5874 = vmatprep.subr.bf16.mxu0 0
  %5875 = vmatpush1.bf16.msra.mxu0 0
  %5876 = vmatprep.subr.bf16.mxu0 0
  %5877 = vmatpush1.bf16.msra.mxu0 0
  %5878 = vmatprep.subr.bf16.mxu0 0
  %5879 = vmatpush1.bf16.msra.mxu0 0
  %5880 = vmatprep.mubr.bf16.mxu0 0
  %5881 = vmatmul.mubr.bf16.gmra.mrb[0].mxu0 %v5776
  %v5882 = vpop.f32.mrb[0].mxu0
  %v5883 = vadd.f32 %v5798, %v5882
  %v5884 = vpop.f32.mrb[0].mxu0
  %v5885 = vpop.f32.mrb[0].mxu0
  %v5886 = vpop.f32.mrb[0].mxu0
  %5887 = vdwg.mxu0
  %v5888 = vlaneseq
  %v5889 = vand.u32 %v5888, 127
  %vm5890 = vcmp.lt.s32.totalorder %v5889, 10
  %v5891 = vsel %vm5890, %v5883, -1e+30
  %5892 = vmax.xlane.f32.xlu0 %v5891
  %v5893 = vpop.xlane.xlu0 %5892
  %v5894 = vsub.f32 %v5891, %v5893
  %v5895 = vmul.f32 %v5894, 1.442695
  %v5896 = vpow.pop %v5895
  %5897 = vadd.xlane.f32.xlu0 %v5896
  %v5898 = vpop.xlane.xlu0 %5897
  %v5899 = vlog2.pop %v5898
  %v5900 = vmul.f32 %v5899, 0.6931472
  %v5901 = vsub.f32 %v5894, %v5900
  %5902 = vst [vmem:[%s13] sm:$0xff] %v5901
  // Predicated region
  $region54: #{conv_forward.1} parent=0 // pred_check
    _
  $region55: #{conv_forward.1} parent=0 // pred_check_branch
    %5904 = sbr.rel (0) target = $region57
  $region56: #{conv_forward.1} parent=0 // pred_region
    _
  $region57: #{conv_forward.1} parent=0 // pred_fallthru
    _
  // Predicated region
  $region58: #{conv_forward.1} parent=0 // pred_check
    _
  $region59: #{conv_forward.1} parent=0 // pred_check_branch
    %5906 = sbr.rel (0) target = $region61
  $region60: #{conv_forward.1} parent=0 // pred_region
    _
  $region61: #{conv_forward.1} parent=0 // pred_fallthru
    _

</llo_original>
